<compile_context>
chip_gen: v6e
topology: v6e:2x2x1
jax: 0.10.0
libtpu: 0.0.40
codegen_flags: <defaults>
</compile_context>

<pallas_src>
import functools

import numpy as np
import jax
import jax.numpy as jnp
from jax import lax
from jax.experimental import pallas as pl
from jax.experimental.pallas import tpu as pltpu  # noqa: F401  (TPU backend)

# ---- MCNhead static config (module defaults) ----
ANCHORS = [[137, 256], [248, 272], [386, 271]]
STRIDE = 32.0
N_CLASSES = 0
N_ANCHORS = 3
N_CH = 5 + N_CLASSES
MASKED_ANCHORS = [(w / STRIDE, h / STRIDE) for w, h in ANCHORS]
SEG_THRESH = 0.35
UPSCALE = 8


# ----------------------------- Pallas kernel --------------------------------
def _mcn_head_kernel(x_ref, wd_ref, bd_ref, y_ref, ws_ref, bs_ref, up_ref,
                     det_ref, mask_ref, *, B, H, W):
    """Fused eval-mode MCNhead forward (whole batch, single invocation).

    x_ref:  (B, C, HW)    dconv input (NCHW with spatial flattened)
    wd_ref: (n_out, C)    dconv 1x1 weight       bd_ref: (n_out, 1) bias
    y_ref:  (B, C, HW)    sconv input
    ws_ref: (1, C)        sconv 1x1 weight        bs_ref: (1, 1) bias
    up_ref: (HW, Ho*Wo)   fused separable-bilinear x8 upsample operator
    det_ref:  (N_CH, B)   best box per batch (transposed; wrapper transposes)
    mask_ref: (B, Ho*Wo)  thresholded segmentation mask (lane-dense)
    """
    HW = H * W
    n_cand = N_ANCHORS * HW

    wd = wd_ref[...]
    bd = bd_ref[...]

    # Grid shifts, lane-major (1, HW): col = p % W, row = p // W.
    p = lax.broadcasted_iota(jnp.int32, (1, HW), 1).astype(jnp.float32)
    ys = jnp.floor(p / float(W))
    xs = p - ys * float(W)

    idx = lax.broadcasted_iota(jnp.int32, (1, n_cand), 1)

    det_cols = []
    seg_rows = []
    for b in range(B):                                  # static batch loop (B tiny)
        # ---- detection head: 1x1 conv as (n_out, C) @ (C, HW) on the MXU ----
        ob = jnp.dot(wd, x_ref[b], preferred_element_type=jnp.float32) + bd

        pred_blocks = []
        logit_blocks = []
        for a in range(N_ANCHORS):                      # static anchor loop
            base = a * N_CH
            tx = ob[base + 0:base + 1, :]               # (1, HW) sublane rows
            ty = ob[base + 1:base + 2, :]
            tw = ob[base + 2:base + 3, :]
            th = ob[base + 3:base + 4, :]
            to = ob[base + 4:base + 5, :]

            cx = (jax.nn.sigmoid(tx) + xs) * STRIDE
            cy = (jax.nn.sigmoid(ty) + ys) * STRIDE
            bw = jnp.exp(tw) * (MASKED_ANCHORS[a][0] * STRIDE)
            bh = jnp.exp(th) * (MASKED_ANCHORS[a][1] * STRIDE)
            conf = jax.nn.sigmoid(to)
            x0 = cx - 0.5 * bw
            y0 = cy - 0.5 * bh
            x1 = x0 + bw
            y1 = y0 + bh
            fields = [x0, y0, x1, y1, conf]
            if N_CLASSES > 0:
                fields.append(jax.nn.sigmoid(ob[base + 5:base + N_CH, :]))
            pred_blocks.append(jnp.concatenate(fields, axis=0))   # (N_CH, HW)
            logit_blocks.append(to)

        pred_b = jnp.concatenate(pred_blocks, axis=1)   # (N_CH, NA*HW) lane-major
        logit_b = jnp.concatenate(logit_blocks, axis=1) # (1, NA*HW)

        # First-argmax over the lane axis. sigmoid(sigmoid(x)) is monotonic in x,
        # so the raw objectness logit gives the identical argmax (no extra EUP work).
        mx = jnp.max(logit_b, axis=1, keepdims=True)
        best = jnp.min(jnp.where(logit_b >= mx, idx, n_cand),
                       axis=1, keepdims=True)
        onehot = (idx == best).astype(jnp.float32)      # (1, NA*HW)
        det_cols.append(jnp.sum(pred_b * onehot, axis=1, keepdims=True))  # (N_CH,1)

        # ---- segmentation head: 1x1 conv as (1, C) @ (C, HW) on the MXU ----
        seg_rows.append(jnp.dot(ws_ref[...], y_ref[b],
                                preferred_element_type=jnp.float32))      # (1, HW)

    det_ref[...] = jnp.concatenate(det_cols, axis=1)    # (N_CH, B)

    s = jnp.concatenate(seg_rows, axis=0) + bs_ref[...]                   # (B, HW)
    # fused bilinear x8 upsample: one lane-dense matmul, output (B, Ho*Wo)
    up = jnp.dot(s, up_ref[...], preferred_element_type=jnp.float32)
    mask_ref[...] = (jax.nn.sigmoid(up) > SEG_THRESH).astype(jnp.float32)


# ------------------------------ glue / wrapper ------------------------------
def make_bilinear_matrix(in_size, out_size):
    """Separable bilinear interpolation matrix, align_corners=True
    (matches nn.UpsamplingBilinear2d)."""
    m = np.zeros((out_size, in_size), dtype=np.float32)
    if in_size == 1:
        m[:, 0] = 1.0
        return m
    scale = (in_size - 1) / (out_size - 1)
    for o in range(out_size):
        src = o * scale
        i0 = int(np.floor(src))
        i1 = min(i0 + 1, in_size - 1)
        f = src - i0
        m[o, i0] += 1.0 - f
        m[o, i1] += f
    return m


def mcn_head_eval_forward(xin, yin, params):
    """Eval-mode MCNhead forward. xin, yin: (B, C, H, W) float32 (NCHW)."""
    B, C, H, W = xin.shape
    HW = H * W
    Ho, Wo = H * UPSCALE, W * UPSCALE
    n_out = N_ANCHORS * N_CH

    # NCHW consumed directly — these reshapes are free (row-major contiguous).
    x_flat = xin.reshape(B, C, HW)
    y_flat = yin.reshape(B, C, HW)

    # Fused separable-bilinear upsample operator:
    #   up_flat = s_flat @ up_op,  up_op[h*W+w, o*Wo+q] = uy[o,h] * ux[q,w]
    uy = make_bilinear_matrix(H, Ho)
    ux = make_bilinear_matrix(W, Wo)
    up_op = jnp.asarray(np.ascontiguousarray(np.kron(uy, ux).T))   # (HW, Ho*Wo)

    wd = params["w_d"].reshape(n_out, C)
    bd = params["b_d"].reshape(n_out, 1)
    ws = params["w_s"].reshape(1, C)
    bs = params["b_s"].reshape(1, 1)

    det_t, mask_flat = pl.pallas_call(
        functools.partial(_mcn_head_kernel, B=B, H=H, W=W),
        out_shape=(
            jax.ShapeDtypeStruct((N_CH, B), jnp.float32),
            jax.ShapeDtypeStruct((B, Ho * Wo), jnp.float32),
        ),
    )(x_flat, wd, bd, y_flat, ws, bs, up_op)

    return det_t.T, mask_flat.reshape(B, Ho, Wo)


# --------------------------- pure-JAX reference -----------------------------
def reference_forward(xin, yin, params):
    B, C, H, W = xin.shape
    HW = H * W
    Ho, Wo = H * UPSCALE, W * UPSCALE
    n_out = N_ANCHORS * N_CH

    x = xin.reshape(B, C, HW)
    o = jnp.einsum("oc,bcp->bop", params["w_d"].reshape(n_out, C), x) \
        + params["b_d"].reshape(1, n_out, 1)
    o = o.reshape(B, N_ANCHORS, N_CH, HW).transpose(0, 1, 3, 2)   # (B, NA, HW, NCH)

    xs = jnp.tile(jnp.arange(W, dtype=jnp.float32), H)
    ys = jnp.repeat(jnp.arange(H, dtype=jnp.float32), W)
    aw = jnp.array([a[0] for a in MASKED_ANCHORS], jnp.float32)[None, :, None]
    ah = jnp.array([a[1] for a in MASKED_ANCHORS], jnp.float32)[None, :, None]

    cx = (jax.nn.sigmoid(o[..., 0]) + xs) * STRIDE
    cy = (jax.nn.sigmoid(o[..., 1]) + ys) * STRIDE
    bw = jnp.exp(o[..., 2]) * aw * STRIDE
    bh = jnp.exp(o[..., 3]) * ah * STRIDE
    conf = jax.nn.sigmoid(o[..., 4])
    x0 = cx - bw / 2
    y0 = cy - bh / 2
    x1 = x0 + bw
    y1 = y0 + bh
    pred = jnp.stack([x0, y0, x1, y1, conf], axis=-1).reshape(B, -1, N_CH)
    score = jax.nn.sigmoid(pred[..., 4])
    ind = jnp.argmax(score, axis=-1)
    sel = jnp.take_along_axis(pred, ind[:, None, None], axis=1).reshape(B, N_CH)

    y = yin.reshape(B, C, HW)
    s = jnp.einsum("c,bcp->bp", params["w_s"].reshape(-1), y) \
        + params["b_s"].reshape(())
    uy = jnp.asarray(make_bilinear_matrix(H, Ho))
    ux = jnp.asarray(make_bilinear_matrix(W, Wo))
    up = jnp.einsum("oh,bhw,qw->boq", uy, s.reshape(B, H, W), ux)
    prob = jax.nn.sigmoid(up)
    mask = (prob > SEG_THRESH).astype(jnp.float32)
    return sel, mask, prob


# ---------------------------------- main ------------------------------------
if __name__ == "__main__":
    B, C, H, W = 2, 32, 8, 8        # small shapes: in_ch=32, fsize=8
    n_out = N_ANCHORS * N_CH

    key = jax.random.PRNGKey(0)
    kx, ky, k1, k2, k3, k4 = jax.random.split(key, 6)

    xin = jax.random.normal(kx, (B, C, H, W), jnp.float32)
    yin = jax.random.normal(ky, (B, C, H, W), jnp.float32)

    params = {
        "w_d": jax.random.normal(k1, (n_out, C), jnp.float32) * 0.05,   # dconv 1x1
        "b_d": jax.random.normal(k2, (n_out,), jnp.float32) * 0.05,
        "w_s": jax.random.normal(k3, (C,), jnp.float32) * 0.05,         # sconv (approx)
        "b_s": jax.random.normal(k4, (1,), jnp.float32) * 0.05,
    }

    pred, mask = mcn_head_eval_forward(xin, yin, params)
    jax.block_until_ready((pred, mask))

    ref_pred, ref_mask, ref_prob = reference_forward(xin, yin, params)

    assert pred.shape == (B, N_CH) and mask.shape == (B, H * UPSCALE, W * UPSCALE)
    assert np.allclose(np.asarray(pred), np.asarray(ref_pred), rtol=1e-3, atol=1e-2), \
        "pred mismatch vs JAX reference"
    # Thresholded masks must agree except where the reference probability is
    # numerically on the 0.35 threshold (contraction-order rounding).
    m_k = np.asarray(mask)
    m_r = np.asarray(ref_mask)
    near_thresh = np.abs(np.asarray(ref_prob) - SEG_THRESH) < 1e-5
    assert np.all((m_k == m_r) | near_thresh), "mask mismatch vs JAX reference"

    print("KERNEL_OK")
</pallas_src>

<mosaic_0001>
module attributes {stable_mosaic.version = 11 : i64} {
  func.func @_mcn_head_kernel(%arg0: memref<2x32x64xf32, #tpu.memory_space<vmem>>, %arg1: memref<15x32xf32, #tpu.memory_space<vmem>>, %arg2: memref<15x1xf32, #tpu.memory_space<vmem>>, %arg3: memref<2x32x64xf32, #tpu.memory_space<vmem>>, %arg4: memref<1x32xf32, #tpu.memory_space<vmem>>, %arg5: memref<1x1xf32, #tpu.memory_space<vmem>>, %arg6: memref<64x4096xf32, #tpu.memory_space<vmem>>, %arg7: memref<5x2xf32, #tpu.memory_space<vmem>>, %arg8: memref<2x4096xf32, #tpu.memory_space<vmem>>) attributes {dimension_semantics = [], scalar_prefetch = 0 : i64, scratch_operands = 0 : i64, tpu.core_type = #tpu.core_type<tc>} {
    %c0 = arith.constant 0 : index
    %c0_0 = arith.constant 0 : index
    %0 = vector.load %arg1[%c0, %c0_0] : memref<15x32xf32, #tpu.memory_space<vmem>>, vector<15x32xf32>
    %c0_1 = arith.constant 0 : index
    %c0_2 = arith.constant 0 : index
    %1 = vector.load %arg2[%c0_1, %c0_2] : memref<15x1xf32, #tpu.memory_space<vmem>>, vector<15x1xf32>
    %2 = tpu.iota {dimensions = array<i32: 1>} : vector<1x64xi32>
    %3 = arith.sitofp %2 : vector<1x64xi32> to vector<1x64xf32>
    %cst = arith.constant 8.000000e+00 : f32
    %4 = vector.broadcast %cst : f32 to vector<1x64xf32>
    %5 = arith.divf %3, %4 : vector<1x64xf32>
    %6 = math.floor %5 : vector<1x64xf32>
    %cst_3 = arith.constant 8.000000e+00 : f32
    %7 = vector.broadcast %cst_3 : f32 to vector<1x64xf32>
    %8 = arith.mulf %6, %7 : vector<1x64xf32>
    %9 = arith.subf %3, %8 : vector<1x64xf32>
    %10 = tpu.iota {dimensions = array<i32: 1>} : vector<1x192xi32>
    %c0_4 = arith.constant 0 : index
    %c0_5 = arith.constant 0 : index
    %c0_6 = arith.constant 0 : index
    %11 = vector.load %arg0[%c0_4, %c0_5, %c0_6] : memref<2x32x64xf32, #tpu.memory_space<vmem>>, vector<1x32x64xf32>
    %12 = vector.shape_cast %11 : vector<1x32x64xf32> to vector<32x64xf32>
    %cst_7 = arith.constant dense<0.000000e+00> : vector<15x64xf32>
    %13 = tpu.matmul %0, %12, %cst_7 {dimension_numbers = #tpu.dot_dimension_numbers<[1], [0], [0], [1], [0, 0, 1, 1], [], []>} : vector<15x32xf32>, vector<32x64xf32>, vector<15x64xf32> -> vector<15x64xf32>
    %14 = vector.broadcast %1 : vector<15x1xf32> to vector<15x64xf32>
    %15 = arith.addf %13, %14 : vector<15x64xf32>
    %16 = vector.extract_strided_slice %15 {offsets = [0, 0], sizes = [1, 64], strides = [1, 1]} : vector<15x64xf32> to vector<1x64xf32>
    %17 = vector.extract_strided_slice %15 {offsets = [1, 0], sizes = [1, 64], strides = [1, 1]} : vector<15x64xf32> to vector<1x64xf32>
    %18 = vector.extract_strided_slice %15 {offsets = [2, 0], sizes = [1, 64], strides = [1, 1]} : vector<15x64xf32> to vector<1x64xf32>
    %19 = vector.extract_strided_slice %15 {offsets = [3, 0], sizes = [1, 64], strides = [1, 1]} : vector<15x64xf32> to vector<1x64xf32>
    %20 = vector.extract_strided_slice %15 {offsets = [4, 0], sizes = [1, 64], strides = [1, 1]} : vector<15x64xf32> to vector<1x64xf32>
    %21 = arith.negf %16 : vector<1x64xf32>
    %22 = math.exp %21 : vector<1x64xf32>
    %cst_8 = arith.constant 1.000000e+00 : f32
    %23 = vector.broadcast %cst_8 : f32 to vector<1x64xf32>
    %24 = arith.addf %23, %22 : vector<1x64xf32>
    %25 = arith.divf %23, %24 : vector<1x64xf32>
    %26 = arith.addf %25, %9 : vector<1x64xf32>
    %cst_9 = arith.constant 3.200000e+01 : f32
    %27 = vector.broadcast %cst_9 : f32 to vector<1x64xf32>
    %28 = arith.mulf %26, %27 : vector<1x64xf32>
    %29 = arith.negf %17 : vector<1x64xf32>
    %30 = math.exp %29 : vector<1x64xf32>
    %cst_10 = arith.constant 1.000000e+00 : f32
    %31 = vector.broadcast %cst_10 : f32 to vector<1x64xf32>
    %32 = arith.addf %31, %30 : vector<1x64xf32>
    %33 = arith.divf %31, %32 : vector<1x64xf32>
    %34 = arith.addf %33, %6 : vector<1x64xf32>
    %cst_11 = arith.constant 3.200000e+01 : f32
    %35 = vector.broadcast %cst_11 : f32 to vector<1x64xf32>
    %36 = arith.mulf %34, %35 : vector<1x64xf32>
    %37 = math.exp %18 : vector<1x64xf32>
    %cst_12 = arith.constant 1.370000e+02 : f32
    %38 = vector.broadcast %cst_12 : f32 to vector<1x64xf32>
    %39 = arith.mulf %37, %38 : vector<1x64xf32>
    %40 = math.exp %19 : vector<1x64xf32>
    %cst_13 = arith.constant 2.560000e+02 : f32
    %41 = vector.broadcast %cst_13 : f32 to vector<1x64xf32>
    %42 = arith.mulf %40, %41 : vector<1x64xf32>
    %43 = arith.negf %20 : vector<1x64xf32>
    %44 = math.exp %43 : vector<1x64xf32>
    %cst_14 = arith.constant 1.000000e+00 : f32
    %45 = vector.broadcast %cst_14 : f32 to vector<1x64xf32>
    %46 = arith.addf %45, %44 : vector<1x64xf32>
    %47 = arith.divf %45, %46 : vector<1x64xf32>
    %cst_15 = arith.constant 5.000000e-01 : f32
    %48 = vector.broadcast %cst_15 : f32 to vector<1x64xf32>
    %49 = arith.mulf %48, %39 : vector<1x64xf32>
    %50 = arith.subf %28, %49 : vector<1x64xf32>
    %cst_16 = arith.constant 5.000000e-01 : f32
    %51 = vector.broadcast %cst_16 : f32 to vector<1x64xf32>
    %52 = arith.mulf %51, %42 : vector<1x64xf32>
    %53 = arith.subf %36, %52 : vector<1x64xf32>
    %54 = arith.addf %50, %39 : vector<1x64xf32>
    %55 = arith.addf %53, %42 : vector<1x64xf32>
    %56 = tpu.concatenate %50, %53, %54, %55, %47 in 0 : vector<1x64xf32>, vector<1x64xf32>, vector<1x64xf32>, vector<1x64xf32>, vector<1x64xf32> -> vector<5x64xf32>
    %57 = vector.extract_strided_slice %15 {offsets = [5, 0], sizes = [1, 64], strides = [1, 1]} : vector<15x64xf32> to vector<1x64xf32>
    %58 = vector.extract_strided_slice %15 {offsets = [6, 0], sizes = [1, 64], strides = [1, 1]} : vector<15x64xf32> to vector<1x64xf32>
    %59 = vector.extract_strided_slice %15 {offsets = [7, 0], sizes = [1, 64], strides = [1, 1]} : vector<15x64xf32> to vector<1x64xf32>
    %60 = vector.extract_strided_slice %15 {offsets = [8, 0], sizes = [1, 64], strides = [1, 1]} : vector<15x64xf32> to vector<1x64xf32>
    %61 = vector.extract_strided_slice %15 {offsets = [9, 0], sizes = [1, 64], strides = [1, 1]} : vector<15x64xf32> to vector<1x64xf32>
    %62 = arith.negf %57 : vector<1x64xf32>
    %63 = math.exp %62 : vector<1x64xf32>
    %cst_17 = arith.constant 1.000000e+00 : f32
    %64 = vector.broadcast %cst_17 : f32 to vector<1x64xf32>
    %65 = arith.addf %64, %63 : vector<1x64xf32>
    %66 = arith.divf %64, %65 : vector<1x64xf32>
    %67 = arith.addf %66, %9 : vector<1x64xf32>
    %cst_18 = arith.constant 3.200000e+01 : f32
    %68 = vector.broadcast %cst_18 : f32 to vector<1x64xf32>
    %69 = arith.mulf %67, %68 : vector<1x64xf32>
    %70 = arith.negf %58 : vector<1x64xf32>
    %71 = math.exp %70 : vector<1x64xf32>
    %cst_19 = arith.constant 1.000000e+00 : f32
    %72 = vector.broadcast %cst_19 : f32 to vector<1x64xf32>
    %73 = arith.addf %72, %71 : vector<1x64xf32>
    %74 = arith.divf %72, %73 : vector<1x64xf32>
    %75 = arith.addf %74, %6 : vector<1x64xf32>
    %cst_20 = arith.constant 3.200000e+01 : f32
    %76 = vector.broadcast %cst_20 : f32 to vector<1x64xf32>
    %77 = arith.mulf %75, %76 : vector<1x64xf32>
    %78 = math.exp %59 : vector<1x64xf32>
    %cst_21 = arith.constant 2.480000e+02 : f32
    %79 = vector.broadcast %cst_21 : f32 to vector<1x64xf32>
    %80 = arith.mulf %78, %79 : vector<1x64xf32>
    %81 = math.exp %60 : vector<1x64xf32>
    %cst_22 = arith.constant 2.720000e+02 : f32
    %82 = vector.broadcast %cst_22 : f32 to vector<1x64xf32>
    %83 = arith.mulf %81, %82 : vector<1x64xf32>
    %84 = arith.negf %61 : vector<1x64xf32>
    %85 = math.exp %84 : vector<1x64xf32>
    %cst_23 = arith.constant 1.000000e+00 : f32
    %86 = vector.broadcast %cst_23 : f32 to vector<1x64xf32>
    %87 = arith.addf %86, %85 : vector<1x64xf32>
    %88 = arith.divf %86, %87 : vector<1x64xf32>
    %cst_24 = arith.constant 5.000000e-01 : f32
    %89 = vector.broadcast %cst_24 : f32 to vector<1x64xf32>
    %90 = arith.mulf %89, %80 : vector<1x64xf32>
    %91 = arith.subf %69, %90 : vector<1x64xf32>
    %cst_25 = arith.constant 5.000000e-01 : f32
    %92 = vector.broadcast %cst_25 : f32 to vector<1x64xf32>
    %93 = arith.mulf %92, %83 : vector<1x64xf32>
    %94 = arith.subf %77, %93 : vector<1x64xf32>
    %95 = arith.addf %91, %80 : vector<1x64xf32>
    %96 = arith.addf %94, %83 : vector<1x64xf32>
    %97 = tpu.concatenate %91, %94, %95, %96, %88 in 0 : vector<1x64xf32>, vector<1x64xf32>, vector<1x64xf32>, vector<1x64xf32>, vector<1x64xf32> -> vector<5x64xf32>
    %98 = vector.extract_strided_slice %15 {offsets = [10, 0], sizes = [1, 64], strides = [1, 1]} : vector<15x64xf32> to vector<1x64xf32>
    %99 = vector.extract_strided_slice %15 {offsets = [11, 0], sizes = [1, 64], strides = [1, 1]} : vector<15x64xf32> to vector<1x64xf32>
    %100 = vector.extract_strided_slice %15 {offsets = [12, 0], sizes = [1, 64], strides = [1, 1]} : vector<15x64xf32> to vector<1x64xf32>
    %101 = vector.extract_strided_slice %15 {offsets = [13, 0], sizes = [1, 64], strides = [1, 1]} : vector<15x64xf32> to vector<1x64xf32>
    %102 = vector.extract_strided_slice %15 {offsets = [14, 0], sizes = [1, 64], strides = [1, 1]} : vector<15x64xf32> to vector<1x64xf32>
    %103 = arith.negf %98 : vector<1x64xf32>
    %104 = math.exp %103 : vector<1x64xf32>
    %cst_26 = arith.constant 1.000000e+00 : f32
    %105 = vector.broadcast %cst_26 : f32 to vector<1x64xf32>
    %106 = arith.addf %105, %104 : vector<1x64xf32>
    %107 = arith.divf %105, %106 : vector<1x64xf32>
    %108 = arith.addf %107, %9 : vector<1x64xf32>
    %cst_27 = arith.constant 3.200000e+01 : f32
    %109 = vector.broadcast %cst_27 : f32 to vector<1x64xf32>
    %110 = arith.mulf %108, %109 : vector<1x64xf32>
    %111 = arith.negf %99 : vector<1x64xf32>
    %112 = math.exp %111 : vector<1x64xf32>
    %cst_28 = arith.constant 1.000000e+00 : f32
    %113 = vector.broadcast %cst_28 : f32 to vector<1x64xf32>
    %114 = arith.addf %113, %112 : vector<1x64xf32>
    %115 = arith.divf %113, %114 : vector<1x64xf32>
    %116 = arith.addf %115, %6 : vector<1x64xf32>
    %cst_29 = arith.constant 3.200000e+01 : f32
    %117 = vector.broadcast %cst_29 : f32 to vector<1x64xf32>
    %118 = arith.mulf %116, %117 : vector<1x64xf32>
    %119 = math.exp %100 : vector<1x64xf32>
    %cst_30 = arith.constant 3.860000e+02 : f32
    %120 = vector.broadcast %cst_30 : f32 to vector<1x64xf32>
    %121 = arith.mulf %119, %120 : vector<1x64xf32>
    %122 = math.exp %101 : vector<1x64xf32>
    %cst_31 = arith.constant 2.710000e+02 : f32
    %123 = vector.broadcast %cst_31 : f32 to vector<1x64xf32>
    %124 = arith.mulf %122, %123 : vector<1x64xf32>
    %125 = arith.negf %102 : vector<1x64xf32>
    %126 = math.exp %125 : vector<1x64xf32>
    %cst_32 = arith.constant 1.000000e+00 : f32
    %127 = vector.broadcast %cst_32 : f32 to vector<1x64xf32>
    %128 = arith.addf %127, %126 : vector<1x64xf32>
    %129 = arith.divf %127, %128 : vector<1x64xf32>
    %cst_33 = arith.constant 5.000000e-01 : f32
    %130 = vector.broadcast %cst_33 : f32 to vector<1x64xf32>
    %131 = arith.mulf %130, %121 : vector<1x64xf32>
    %132 = arith.subf %110, %131 : vector<1x64xf32>
    %cst_34 = arith.constant 5.000000e-01 : f32
    %133 = vector.broadcast %cst_34 : f32 to vector<1x64xf32>
    %134 = arith.mulf %133, %124 : vector<1x64xf32>
    %135 = arith.subf %118, %134 : vector<1x64xf32>
    %136 = arith.addf %132, %121 : vector<1x64xf32>
    %137 = arith.addf %135, %124 : vector<1x64xf32>
    %138 = tpu.concatenate %132, %135, %136, %137, %129 in 0 : vector<1x64xf32>, vector<1x64xf32>, vector<1x64xf32>, vector<1x64xf32>, vector<1x64xf32> -> vector<5x64xf32>
    %139 = tpu.concatenate %56, %97, %138 in 1 : vector<5x64xf32>, vector<5x64xf32>, vector<5x64xf32> -> vector<5x192xf32>
    %140 = tpu.concatenate %20, %61, %102 in 1 : vector<1x64xf32>, vector<1x64xf32>, vector<1x64xf32> -> vector<1x192xf32>
    %cst_35 = arith.constant dense<0xFF800000> : vector<1xf32>
    %141 = vector.multi_reduction <maximumf>, %140, %cst_35 [1] : vector<1x192xf32> to vector<1xf32>
    %142 = vector.shape_cast %141 : vector<1xf32> to vector<1x1xf32>
    %143 = vector.broadcast %142 : vector<1x1xf32> to vector<1x192xf32>
    %144 = arith.cmpf oge, %140, %143 : vector<1x192xf32>
    %c192_i32 = arith.constant 192 : i32
    %145 = vector.broadcast %c192_i32 : i32 to vector<1x192xi32>
    %146 = arith.select %144, %10, %145 : vector<1x192xi1>, vector<1x192xi32>
    %cst_36 = arith.constant dense<2147483647> : vector<1xi32>
    %147 = vector.multi_reduction <minsi>, %146, %cst_36 [1] : vector<1x192xi32> to vector<1xi32>
    %148 = vector.shape_cast %147 : vector<1xi32> to vector<1x1xi32>
    %149 = vector.broadcast %148 : vector<1x1xi32> to vector<1x192xi32>
    %150 = arith.cmpi eq, %10, %149 : vector<1x192xi32>
    %151 = arith.extui %150 : vector<1x192xi1> to vector<1x192xi32>
    %152 = arith.sitofp %151 : vector<1x192xi32> to vector<1x192xf32>
    %153 = vector.broadcast %152 : vector<1x192xf32> to vector<5x192xf32>
    %154 = arith.mulf %139, %153 : vector<5x192xf32>
    %cst_37 = arith.constant dense<0.000000e+00> : vector<5xf32>
    %155 = vector.multi_reduction <add>, %154, %cst_37 [1] : vector<5x192xf32> to vector<5xf32>
    %156 = vector.shape_cast %155 : vector<5xf32> to vector<5x1xf32>
    %c0_38 = arith.constant 0 : index
    %c0_39 = arith.constant 0 : index
    %157 = vector.load %arg4[%c0_38, %c0_39] : memref<1x32xf32, #tpu.memory_space<vmem>>, vector<1x32xf32>
    %c0_40 = arith.constant 0 : index
    %c0_41 = arith.constant 0 : index
    %c0_42 = arith.constant 0 : index
    %158 = vector.load %arg3[%c0_40, %c0_41, %c0_42] : memref<2x32x64xf32, #tpu.memory_space<vmem>>, vector<1x32x64xf32>
    %159 = vector.shape_cast %158 : vector<1x32x64xf32> to vector<32x64xf32>
    %cst_43 = arith.constant dense<0.000000e+00> : vector<1x64xf32>
    %160 = tpu.matmul %157, %159, %cst_43 {dimension_numbers = #tpu.dot_dimension_numbers<[1], [0], [0], [1], [0, 0, 1, 1], [], []>} : vector<1x32xf32>, vector<32x64xf32>, vector<1x64xf32> -> vector<1x64xf32>
    %c1 = arith.constant 1 : index
    %c0_44 = arith.constant 0 : index
    %c0_45 = arith.constant 0 : index
    %161 = vector.load %arg0[%c1, %c0_44, %c0_45] : memref<2x32x64xf32, #tpu.memory_space<vmem>>, vector<1x32x64xf32>
    %162 = vector.shape_cast %161 : vector<1x32x64xf32> to vector<32x64xf32>
    %cst_46 = arith.constant dense<0.000000e+00> : vector<15x64xf32>
    %163 = tpu.matmul %0, %162, %cst_46 {dimension_numbers = #tpu.dot_dimension_numbers<[1], [0], [0], [1], [0, 0, 1, 1], [], []>} : vector<15x32xf32>, vector<32x64xf32>, vector<15x64xf32> -> vector<15x64xf32>
    %164 = vector.broadcast %1 : vector<15x1xf32> to vector<15x64xf32>
    %165 = arith.addf %163, %164 : vector<15x64xf32>
    %166 = vector.extract_strided_slice %165 {offsets = [0, 0], sizes = [1, 64], strides = [1, 1]} : vector<15x64xf32> to vector<1x64xf32>
    %167 = vector.extract_strided_slice %165 {offsets = [1, 0], sizes = [1, 64], strides = [1, 1]} : vector<15x64xf32> to vector<1x64xf32>
    %168 = vector.extract_strided_slice %165 {offsets = [2, 0], sizes = [1, 64], strides = [1, 1]} : vector<15x64xf32> to vector<1x64xf32>
    %169 = vector.extract_strided_slice %165 {offsets = [3, 0], sizes = [1, 64], strides = [1, 1]} : vector<15x64xf32> to vector<1x64xf32>
    %170 = vector.extract_strided_slice %165 {offsets = [4, 0], sizes = [1, 64], strides = [1, 1]} : vector<15x64xf32> to vector<1x64xf32>
    %171 = arith.negf %166 : vector<1x64xf32>
    %172 = math.exp %171 : vector<1x64xf32>
    %cst_47 = arith.constant 1.000000e+00 : f32
    %173 = vector.broadcast %cst_47 : f32 to vector<1x64xf32>
    %174 = arith.addf %173, %172 : vector<1x64xf32>
    %175 = arith.divf %173, %174 : vector<1x64xf32>
    %176 = arith.addf %175, %9 : vector<1x64xf32>
    %cst_48 = arith.constant 3.200000e+01 : f32
    %177 = vector.broadcast %cst_48 : f32 to vector<1x64xf32>
    %178 = arith.mulf %176, %177 : vector<1x64xf32>
    %179 = arith.negf %167 : vector<1x64xf32>
    %180 = math.exp %179 : vector<1x64xf32>
    %cst_49 = arith.constant 1.000000e+00 : f32
    %181 = vector.broadcast %cst_49 : f32 to vector<1x64xf32>
    %182 = arith.addf %181, %180 : vector<1x64xf32>
    %183 = arith.divf %181, %182 : vector<1x64xf32>
    %184 = arith.addf %183, %6 : vector<1x64xf32>
    %cst_50 = arith.constant 3.200000e+01 : f32
    %185 = vector.broadcast %cst_50 : f32 to vector<1x64xf32>
    %186 = arith.mulf %184, %185 : vector<1x64xf32>
    %187 = math.exp %168 : vector<1x64xf32>
    %cst_51 = arith.constant 1.370000e+02 : f32
    %188 = vector.broadcast %cst_51 : f32 to vector<1x64xf32>
    %189 = arith.mulf %187, %188 : vector<1x64xf32>
    %190 = math.exp %169 : vector<1x64xf32>
    %cst_52 = arith.constant 2.560000e+02 : f32
    %191 = vector.broadcast %cst_52 : f32 to vector<1x64xf32>
    %192 = arith.mulf %190, %191 : vector<1x64xf32>
    %193 = arith.negf %170 : vector<1x64xf32>
    %194 = math.exp %193 : vector<1x64xf32>
    %cst_53 = arith.constant 1.000000e+00 : f32
    %195 = vector.broadcast %cst_53 : f32 to vector<1x64xf32>
    %196 = arith.addf %195, %194 : vector<1x64xf32>
    %197 = arith.divf %195, %196 : vector<1x64xf32>
    %cst_54 = arith.constant 5.000000e-01 : f32
    %198 = vector.broadcast %cst_54 : f32 to vector<1x64xf32>
    %199 = arith.mulf %198, %189 : vector<1x64xf32>
    %200 = arith.subf %178, %199 : vector<1x64xf32>
    %cst_55 = arith.constant 5.000000e-01 : f32
    %201 = vector.broadcast %cst_55 : f32 to vector<1x64xf32>
    %202 = arith.mulf %201, %192 : vector<1x64xf32>
    %203 = arith.subf %186, %202 : vector<1x64xf32>
    %204 = arith.addf %200, %189 : vector<1x64xf32>
    %205 = arith.addf %203, %192 : vector<1x64xf32>
    %206 = tpu.concatenate %200, %203, %204, %205, %197 in 0 : vector<1x64xf32>, vector<1x64xf32>, vector<1x64xf32>, vector<1x64xf32>, vector<1x64xf32> -> vector<5x64xf32>
    %207 = vector.extract_strided_slice %165 {offsets = [5, 0], sizes = [1, 64], strides = [1, 1]} : vector<15x64xf32> to vector<1x64xf32>
    %208 = vector.extract_strided_slice %165 {offsets = [6, 0], sizes = [1, 64], strides = [1, 1]} : vector<15x64xf32> to vector<1x64xf32>
    %209 = vector.extract_strided_slice %165 {offsets = [7, 0], sizes = [1, 64], strides = [1, 1]} : vector<15x64xf32> to vector<1x64xf32>
    %210 = vector.extract_strided_slice %165 {offsets = [8, 0], sizes = [1, 64], strides = [1, 1]} : vector<15x64xf32> to vector<1x64xf32>
    %211 = vector.extract_strided_slice %165 {offsets = [9, 0], sizes = [1, 64], strides = [1, 1]} : vector<15x64xf32> to vector<1x64xf32>
    %212 = arith.negf %207 : vector<1x64xf32>
    %213 = math.exp %212 : vector<1x64xf32>
    %cst_56 = arith.constant 1.000000e+00 : f32
    %214 = vector.broadcast %cst_56 : f32 to vector<1x64xf32>
    %215 = arith.addf %214, %213 : vector<1x64xf32>
    %216 = arith.divf %214, %215 : vector<1x64xf32>
    %217 = arith.addf %216, %9 : vector<1x64xf32>
    %cst_57 = arith.constant 3.200000e+01 : f32
    %218 = vector.broadcast %cst_57 : f32 to vector<1x64xf32>
    %219 = arith.mulf %217, %218 : vector<1x64xf32>
    %220 = arith.negf %208 : vector<1x64xf32>
    %221 = math.exp %220 : vector<1x64xf32>
    %cst_58 = arith.constant 1.000000e+00 : f32
    %222 = vector.broadcast %cst_58 : f32 to vector<1x64xf32>
    %223 = arith.addf %222, %221 : vector<1x64xf32>
    %224 = arith.divf %222, %223 : vector<1x64xf32>
    %225 = arith.addf %224, %6 : vector<1x64xf32>
    %cst_59 = arith.constant 3.200000e+01 : f32
    %226 = vector.broadcast %cst_59 : f32 to vector<1x64xf32>
    %227 = arith.mulf %225, %226 : vector<1x64xf32>
    %228 = math.exp %209 : vector<1x64xf32>
    %cst_60 = arith.constant 2.480000e+02 : f32
    %229 = vector.broadcast %cst_60 : f32 to vector<1x64xf32>
    %230 = arith.mulf %228, %229 : vector<1x64xf32>
    %231 = math.exp %210 : vector<1x64xf32>
    %cst_61 = arith.constant 2.720000e+02 : f32
    %232 = vector.broadcast %cst_61 : f32 to vector<1x64xf32>
    %233 = arith.mulf %231, %232 : vector<1x64xf32>
    %234 = arith.negf %211 : vector<1x64xf32>
    %235 = math.exp %234 : vector<1x64xf32>
    %cst_62 = arith.constant 1.000000e+00 : f32
    %236 = vector.broadcast %cst_62 : f32 to vector<1x64xf32>
    %237 = arith.addf %236, %235 : vector<1x64xf32>
    %238 = arith.divf %236, %237 : vector<1x64xf32>
    %cst_63 = arith.constant 5.000000e-01 : f32
    %239 = vector.broadcast %cst_63 : f32 to vector<1x64xf32>
    %240 = arith.mulf %239, %230 : vector<1x64xf32>
    %241 = arith.subf %219, %240 : vector<1x64xf32>
    %cst_64 = arith.constant 5.000000e-01 : f32
    %242 = vector.broadcast %cst_64 : f32 to vector<1x64xf32>
    %243 = arith.mulf %242, %233 : vector<1x64xf32>
    %244 = arith.subf %227, %243 : vector<1x64xf32>
    %245 = arith.addf %241, %230 : vector<1x64xf32>
    %246 = arith.addf %244, %233 : vector<1x64xf32>
    %247 = tpu.concatenate %241, %244, %245, %246, %238 in 0 : vector<1x64xf32>, vector<1x64xf32>, vector<1x64xf32>, vector<1x64xf32>, vector<1x64xf32> -> vector<5x64xf32>
    %248 = vector.extract_strided_slice %165 {offsets = [10, 0], sizes = [1, 64], strides = [1, 1]} : vector<15x64xf32> to vector<1x64xf32>
    %249 = vector.extract_strided_slice %165 {offsets = [11, 0], sizes = [1, 64], strides = [1, 1]} : vector<15x64xf32> to vector<1x64xf32>
    %250 = vector.extract_strided_slice %165 {offsets = [12, 0], sizes = [1, 64], strides = [1, 1]} : vector<15x64xf32> to vector<1x64xf32>
    %251 = vector.extract_strided_slice %165 {offsets = [13, 0], sizes = [1, 64], strides = [1, 1]} : vector<15x64xf32> to vector<1x64xf32>
    %252 = vector.extract_strided_slice %165 {offsets = [14, 0], sizes = [1, 64], strides = [1, 1]} : vector<15x64xf32> to vector<1x64xf32>
    %253 = arith.negf %248 : vector<1x64xf32>
    %254 = math.exp %253 : vector<1x64xf32>
    %cst_65 = arith.constant 1.000000e+00 : f32
    %255 = vector.broadcast %cst_65 : f32 to vector<1x64xf32>
    %256 = arith.addf %255, %254 : vector<1x64xf32>
    %257 = arith.divf %255, %256 : vector<1x64xf32>
    %258 = arith.addf %257, %9 : vector<1x64xf32>
    %cst_66 = arith.constant 3.200000e+01 : f32
    %259 = vector.broadcast %cst_66 : f32 to vector<1x64xf32>
    %260 = arith.mulf %258, %259 : vector<1x64xf32>
    %261 = arith.negf %249 : vector<1x64xf32>
    %262 = math.exp %261 : vector<1x64xf32>
    %cst_67 = arith.constant 1.000000e+00 : f32
    %263 = vector.broadcast %cst_67 : f32 to vector<1x64xf32>
    %264 = arith.addf %263, %262 : vector<1x64xf32>
    %265 = arith.divf %263, %264 : vector<1x64xf32>
    %266 = arith.addf %265, %6 : vector<1x64xf32>
    %cst_68 = arith.constant 3.200000e+01 : f32
    %267 = vector.broadcast %cst_68 : f32 to vector<1x64xf32>
    %268 = arith.mulf %266, %267 : vector<1x64xf32>
    %269 = math.exp %250 : vector<1x64xf32>
    %cst_69 = arith.constant 3.860000e+02 : f32
    %270 = vector.broadcast %cst_69 : f32 to vector<1x64xf32>
    %271 = arith.mulf %269, %270 : vector<1x64xf32>
    %272 = math.exp %251 : vector<1x64xf32>
    %cst_70 = arith.constant 2.710000e+02 : f32
    %273 = vector.broadcast %cst_70 : f32 to vector<1x64xf32>
    %274 = arith.mulf %272, %273 : vector<1x64xf32>
    %275 = arith.negf %252 : vector<1x64xf32>
    %276 = math.exp %275 : vector<1x64xf32>
    %cst_71 = arith.constant 1.000000e+00 : f32
    %277 = vector.broadcast %cst_71 : f32 to vector<1x64xf32>
    %278 = arith.addf %277, %276 : vector<1x64xf32>
    %279 = arith.divf %277, %278 : vector<1x64xf32>
    %cst_72 = arith.constant 5.000000e-01 : f32
    %280 = vector.broadcast %cst_72 : f32 to vector<1x64xf32>
    %281 = arith.mulf %280, %271 : vector<1x64xf32>
    %282 = arith.subf %260, %281 : vector<1x64xf32>
    %cst_73 = arith.constant 5.000000e-01 : f32
    %283 = vector.broadcast %cst_73 : f32 to vector<1x64xf32>
    %284 = arith.mulf %283, %274 : vector<1x64xf32>
    %285 = arith.subf %268, %284 : vector<1x64xf32>
    %286 = arith.addf %282, %271 : vector<1x64xf32>
    %287 = arith.addf %285, %274 : vector<1x64xf32>
    %288 = tpu.concatenate %282, %285, %286, %287, %279 in 0 : vector<1x64xf32>, vector<1x64xf32>, vector<1x64xf32>, vector<1x64xf32>, vector<1x64xf32> -> vector<5x64xf32>
    %289 = tpu.concatenate %206, %247, %288 in 1 : vector<5x64xf32>, vector<5x64xf32>, vector<5x64xf32> -> vector<5x192xf32>
    %290 = tpu.concatenate %170, %211, %252 in 1 : vector<1x64xf32>, vector<1x64xf32>, vector<1x64xf32> -> vector<1x192xf32>
    %cst_74 = arith.constant dense<0xFF800000> : vector<1xf32>
    %291 = vector.multi_reduction <maximumf>, %290, %cst_74 [1] : vector<1x192xf32> to vector<1xf32>
    %292 = vector.shape_cast %291 : vector<1xf32> to vector<1x1xf32>
    %293 = vector.broadcast %292 : vector<1x1xf32> to vector<1x192xf32>
    %294 = arith.cmpf oge, %290, %293 : vector<1x192xf32>
    %c192_i32_75 = arith.constant 192 : i32
    %295 = vector.broadcast %c192_i32_75 : i32 to vector<1x192xi32>
    %296 = arith.select %294, %10, %295 : vector<1x192xi1>, vector<1x192xi32>
    %cst_76 = arith.constant dense<2147483647> : vector<1xi32>
    %297 = vector.multi_reduction <minsi>, %296, %cst_76 [1] : vector<1x192xi32> to vector<1xi32>
    %298 = vector.shape_cast %297 : vector<1xi32> to vector<1x1xi32>
    %299 = vector.broadcast %298 : vector<1x1xi32> to vector<1x192xi32>
    %300 = arith.cmpi eq, %10, %299 : vector<1x192xi32>
    %301 = arith.extui %300 : vector<1x192xi1> to vector<1x192xi32>
    %302 = arith.sitofp %301 : vector<1x192xi32> to vector<1x192xf32>
    %303 = vector.broadcast %302 : vector<1x192xf32> to vector<5x192xf32>
    %304 = arith.mulf %289, %303 : vector<5x192xf32>
    %cst_77 = arith.constant dense<0.000000e+00> : vector<5xf32>
    %305 = vector.multi_reduction <add>, %304, %cst_77 [1] : vector<5x192xf32> to vector<5xf32>
    %306 = vector.shape_cast %305 : vector<5xf32> to vector<5x1xf32>
    %c0_78 = arith.constant 0 : index
    %c0_79 = arith.constant 0 : index
    %307 = vector.load %arg4[%c0_78, %c0_79] : memref<1x32xf32, #tpu.memory_space<vmem>>, vector<1x32xf32>
    %c1_80 = arith.constant 1 : index
    %c0_81 = arith.constant 0 : index
    %c0_82 = arith.constant 0 : index
    %308 = vector.load %arg3[%c1_80, %c0_81, %c0_82] : memref<2x32x64xf32, #tpu.memory_space<vmem>>, vector<1x32x64xf32>
    %309 = vector.shape_cast %308 : vector<1x32x64xf32> to vector<32x64xf32>
    %cst_83 = arith.constant dense<0.000000e+00> : vector<1x64xf32>
    %310 = tpu.matmul %307, %309, %cst_83 {dimension_numbers = #tpu.dot_dimension_numbers<[1], [0], [0], [1], [0, 0, 1, 1], [], []>} : vector<1x32xf32>, vector<32x64xf32>, vector<1x64xf32> -> vector<1x64xf32>
    %311 = tpu.concatenate %156, %306 in 1 : vector<5x1xf32>, vector<5x1xf32> -> vector<5x2xf32>
    %c0_84 = arith.constant 0 : index
    %c0_85 = arith.constant 0 : index
    %312 = vector.load %arg7[%c0_84, %c0_85] : memref<5x2xf32, #tpu.memory_space<vmem>>, vector<5x2xf32>
    tpu.vector_store %arg7[%c0_84, %c0_85], %311 {strides = array<i32>} : memref<5x2xf32, #tpu.memory_space<vmem>>, vector<5x2xf32>,
    %313 = tpu.concatenate %160, %310 in 0 : vector<1x64xf32>, vector<1x64xf32> -> vector<2x64xf32>
    %c0_86 = arith.constant 0 : index
    %c0_87 = arith.constant 0 : index
    %314 = vector.load %arg5[%c0_86, %c0_87] : memref<1x1xf32, #tpu.memory_space<vmem>>, vector<1x1xf32>
    %315 = vector.broadcast %314 : vector<1x1xf32> to vector<2x64xf32>
    %316 = arith.addf %313, %315 : vector<2x64xf32>
    %c0_88 = arith.constant 0 : index
    %c0_89 = arith.constant 0 : index
    %317 = vector.load %arg6[%c0_88, %c0_89] : memref<64x4096xf32, #tpu.memory_space<vmem>>, vector<64x4096xf32>
    %cst_90 = arith.constant dense<0.000000e+00> : vector<2x4096xf32>
    %318 = tpu.matmul %316, %317, %cst_90 {dimension_numbers = #tpu.dot_dimension_numbers<[1], [0], [0], [1], [0, 0, 1, 1], [], []>} : vector<2x64xf32>, vector<64x4096xf32>, vector<2x4096xf32> -> vector<2x4096xf32>
    %319 = arith.negf %318 : vector<2x4096xf32>
    %320 = math.exp %319 : vector<2x4096xf32>
    %cst_91 = arith.constant 1.000000e+00 : f32
    %321 = vector.broadcast %cst_91 : f32 to vector<2x4096xf32>
    %322 = arith.addf %321, %320 : vector<2x4096xf32>
    %323 = arith.divf %321, %322 : vector<2x4096xf32>
    %cst_92 = arith.constant 3.500000e-01 : f32
    %324 = vector.broadcast %cst_92 : f32 to vector<2x4096xf32>
    %325 = arith.cmpf ogt, %323, %324 : vector<2x4096xf32>
    %326 = arith.extui %325 : vector<2x4096xi1> to vector<2x4096xi32>
    %327 = arith.sitofp %326 : vector<2x4096xi32> to vector<2x4096xf32>
    %c0_93 = arith.constant 0 : index
    %c0_94 = arith.constant 0 : index
    %328 = vector.load %arg8[%c0_93, %c0_94] : memref<2x4096xf32, #tpu.memory_space<vmem>>, vector<2x4096xf32>
    tpu.vector_store %arg8[%c0_93, %c0_94], %327 {strides = array<i32>} : memref<2x4096xf32, #tpu.memory_space<vmem>>, vector<2x4096xf32>,
    return
  }
}

</mosaic_0001>

<llo_original>
// kernel: tpu_custom_call.1
$region0: #{tpu_custom_call.1}
  #allocation0 [shape = 'u32[]', space=smem, size = 0x4, offset = 0x4, fixed_abs, tag = 'smem constant byte address 0x4 - core index']
  #allocation1 [shape = 'u32[144,128]{1,0:T(1,128)}', space=vmem, size = 0x12000, scoped, tag = 'internal scratch']
  #allocation2 [shape = 'f32[1,1]{1,0:T(1,128)S(1)}', space=vmem, size = 0x200, scoped, tag = 'scoped memory for tpu_custom_call.1']
  %s0 = inlined_call_operand.hbm [shape: f32[2,32,64], index: 0, kind: input, shape index: {}]
  %s1 = inlined_call_operand.vmem [shape: f32[15,32], index: 1, kind: input, shape index: {}]
  %s2 = inlined_call_operand.vmem [shape: f32[15,1], index: 2, kind: input, shape index: {}]
  %s3 = inlined_call_operand.hbm [shape: f32[2,32,64], index: 3, kind: input, shape index: {}]
  %s4 = inlined_call_operand.vmem [shape: f32[1,32], index: 4, kind: input, shape index: {}]
  %s5 = inlined_call_operand.<no memory space> [shape: f32[1,1], index: 5, kind: input, shape index: {}]
  %s6 = inlined_call_operand.hbm [shape: f32[64,4096], index: 6, kind: input, shape index: {}]
  %s7 = inlined_call_operand.vmem [shape: f32[5,2], index: 7, kind: output, shape index: {0}]
  %s8 = inlined_call_operand.hbm [shape: f32[2,4096], index: 8, kind: output, shape index: {1}]
  %9 = xla_tuple %s7, %s8
  %s10 = sld [smem:[#allocation0]]
  $region58: #{tpu_custom_call.1} parent=0
    _
  %s12 = ssub.s32 1, %s10
  %s13 = scalar_select 0, %s12, %s10
  %v14 = vstv %s5
  %15 = vst [vmem:[#allocation2] sm:$0x1] %v14
  $region1: #{tpu_custom_call.1} parent=0
    #allocation3 [shape = 'u8[32768]{0}', space=vmem, size = 0x8000, scoped, tag = 'input window, operand 0, single buffered']
    #allocation4 [shape = 's32[1]{0}', space=sflag, size = 0x4, scoped, tag = 'scoped memory for tpu_custom_call.1']
    #allocation5 [shape = 's32[1]{0}', space=sflag, size = 0x4, scoped, tag = 'scoped memory for tpu_custom_call.1']
    #allocation6 [shape = 'u8[32768]{0}', space=vmem, size = 0x8000, scoped, tag = 'input window, operand 3, single buffered']
    #allocation7 [shape = 's32[1]{0}', space=sflag, size = 0x4, scoped, tag = 'scoped memory for tpu_custom_call.1']
    #allocation8 [shape = 'u8[1048576]{0}', space=vmem, size = 0x100000, scoped, tag = 'input window, operand 6, single buffered']
    #allocation9 [shape = 'u8[32768]{0}', space=vmem, size = 0x8000, scoped, tag = 'output window, operand 1, single buffered']
    %16 = vsyncpa [#allocation4], 0
    %17 = vsyncpa [#allocation7], 0
    %18 = vsyncpa [#allocation5], 0
    // Predicated region
    $region2: #{tpu_custom_call.1} parent=1 // pred_check
      _
    $region3: #{tpu_custom_call.1} parent=1 // pred_check_branch
      %20 = sbr.rel (0) target = $region5
    $region4: #{tpu_custom_call.1} parent=1 // pred_region
      %s22 = ssub.s32 1024, 1024
      %23 = vsyncadd [#allocation4], %s22
      %s24 = sshll.u32 [#allocation3], 4
      %s25 = int_to_ptr.vmem [resolvable:$true] %s24
      %30 = dma.hbm_to_vmem [thread:$0]  %s0, 1024, %s25, [#allocation4], 128, 128, 8
    $region5: #{tpu_custom_call.1} parent=1 // pred_fallthru
      _
    // Predicated region
    $region6: #{tpu_custom_call.1} parent=1 // pred_check
      _
    $region7: #{tpu_custom_call.1} parent=1 // pred_check_branch
      %32 = sbr.rel (0) target = $region9
    $region8: #{tpu_custom_call.1} parent=1 // pred_region
      _
    $region9: #{tpu_custom_call.1} parent=1 // pred_fallthru
      _
    // Predicated region
    $region10: #{tpu_custom_call.1} parent=1 // pred_check
      _
    $region11: #{tpu_custom_call.1} parent=1 // pred_check_branch
      %34 = sbr.rel (0) target = $region13
    $region12: #{tpu_custom_call.1} parent=1 // pred_region
      _
    $region13: #{tpu_custom_call.1} parent=1 // pred_fallthru
      _
    // Predicated region
    $region14: #{tpu_custom_call.1} parent=1 // pred_check
      _
    $region15: #{tpu_custom_call.1} parent=1 // pred_check_branch
      %36 = sbr.rel (0) target = $region17
    $region16: #{tpu_custom_call.1} parent=1 // pred_region
      %s38 = ssub.s32 1024, 1024
      %39 = vsyncadd [#allocation7], %s38
      %s40 = sshll.u32 [#allocation6], 4
      %s41 = int_to_ptr.vmem [resolvable:$true] %s40
      %46 = dma.hbm_to_vmem [thread:$0]  %s3, 1024, %s41, [#allocation7], 128, 128, 8
    $region17: #{tpu_custom_call.1} parent=1 // pred_fallthru
      _
    // Predicated region
    $region18: #{tpu_custom_call.1} parent=1 // pred_check
      _
    $region19: #{tpu_custom_call.1} parent=1 // pred_check_branch
      %48 = sbr.rel (0) target = $region21
    $region20: #{tpu_custom_call.1} parent=1 // pred_region
      _
    $region21: #{tpu_custom_call.1} parent=1 // pred_fallthru
      _
    // Predicated region
    $region22: #{tpu_custom_call.1} parent=1 // pred_check
      _
    $region23: #{tpu_custom_call.1} parent=1 // pred_check_branch
      %50 = sbr.rel (0) target = $region25
    $region24: #{tpu_custom_call.1} parent=1 // pred_region
      _
    $region25: #{tpu_custom_call.1} parent=1 // pred_fallthru
      _
    // Predicated region
    $region26: #{tpu_custom_call.1} parent=1 // pred_check
      _
    $region27: #{tpu_custom_call.1} parent=1 // pred_check_branch
      %52 = sbr.rel (0) target = $region29
    $region28: #{tpu_custom_call.1} parent=1 // pred_region
      %s54 = ssub.s32 32768, 32768
      %55 = vsyncadd [#allocation7], %s54
      %s56 = sshll.u32 [#allocation8], 4
      %s57 = int_to_ptr.vmem [resolvable:$true] %s56
      %62 = dma.hbm_to_vmem [thread:$0]  %s6, 32768, %s57, [#allocation7], 4096, 4096, 256
    $region29: #{tpu_custom_call.1} parent=1 // pred_fallthru
      _
    // Predicated region
    $region30: #{tpu_custom_call.1} parent=1 // pred_check
      _
    $region31: #{tpu_custom_call.1} parent=1 // pred_check_branch
      %64 = sbr.rel (0) target = $region33
    $region32: #{tpu_custom_call.1} parent=1 // pred_region
      %65 = dma.done [#allocation4], 1024
    $region33: #{tpu_custom_call.1} parent=1 // pred_fallthru
      _
    // Predicated region
    $region34: #{tpu_custom_call.1} parent=1 // pred_check
      _
    $region35: #{tpu_custom_call.1} parent=1 // pred_check_branch
      %67 = sbr.rel (0) target = $region37
    $region36: #{tpu_custom_call.1} parent=1 // pred_region
      %68 = dma.done [#allocation7], 1024
    $region37: #{tpu_custom_call.1} parent=1 // pred_fallthru
      _
    // Predicated region
    $region38: #{tpu_custom_call.1} parent=1 // pred_check
      _
    $region39: #{tpu_custom_call.1} parent=1 // pred_check_branch
      %70 = sbr.rel (0) target = $region41
    $region40: #{tpu_custom_call.1} parent=1 // pred_region
      %71 = dma.done [#allocation7], 32768
    $region41: #{tpu_custom_call.1} parent=1 // pred_fallthru
      _
    %v72 = vld [vmem:[%s1] sm:$0xff]
    %v73 = vld [vmem:[%s1 + $0x8] sm:$0x7f]
    %v74 = vld [vmem:[%s2] sm:$0xff]
    %v75 = vld [vmem:[%s2 + $0x8] sm:$0x7f]
    %v76 = vlaneseq
    %v77 = vand.u32 %v76, 127
    %v78 = vcvt.s32.f32 %v77
    %v79 = vrcp.pop 8.0
    %v80 = vmul.f32 %v78, %v79
    %v81 = vfloor.f32 %v80
    %v82 = vmul.f32 %v81, 8.0
    %v83 = vsub.f32 %v78, %v82
    %v84 = vadd.s32 %v77, 128
    %v85 = vld [vmem:[#allocation3] sm:$0xff]
    %v86 = vld [vmem:[#allocation3 + $0x8] sm:$0xff]
    %v87 = vld [vmem:[#allocation3 + $0x10] sm:$0xff]
    %v88 = vld [vmem:[#allocation3 + $0x18] sm:$0xff]
    %90 = vset.pattern.permute.xlu0 0
    %91 = vperm.xlu0 %90, %v74
    %v92 = vpop.permute.xlu0 %91
    %95 = vset.pattern.permute.xlu0 0
    %96 = vperm.xlu0 %95, %v75
    %v97 = vpop.permute.xlu0 %96
    %vm99 = vcmask 261120
    %v101 = vsel %vm99, %v72, 0
    %v104 = vsel %vm99, %v73, 0
    %106 = vmatprep.subr.mxu0 0.0
    %107 = vmatpush1.msra.mxu0 0.0
    %108 = vmatprep.subr.mxu0 0.0
    %109 = vmatpush1.msra.mxu0 0.0
    %110 = vmatprep.subr.mxu0 0.0
    %111 = vmatpush1.msra.mxu0 0.0
    %112 = vmatprep.subr.mxu0 0.0
    %113 = vmatpush1.msra.mxu0 0.0
    %114 = vmatprep.subr.mxu0 0.0
    %115 = vmatpush1.msra.mxu0 0.0
    %116 = vmatprep.subr.mxu0 0.0
    %117 = vmatpush1.msra.mxu0 0.0
    %118 = vmatprep.subr.mxu0 0.0
    %119 = vmatpush1.msra.mxu0 0.0
    %120 = vmatprep.subr.mxu0 0.0
    %121 = vmatpush1.msra.mxu0 0.0
    %122 = vmatprep.subr.mxu0 0.0
    %123 = vmatpush1.msra.mxu0 0.0
    %124 = vmatprep.subr.mxu0 0.0
    %125 = vmatpush1.msra.mxu0 0.0
    %126 = vmatprep.subr.mxu0 0.0
    %127 = vmatpush1.msra.mxu0 0.0
    %128 = vmatprep.subr.mxu0 0.0
    %129 = vmatpush1.msra.mxu0 0.0
    %130 = vmatprep.subr.mxu0 0.0
    %131 = vmatpush1.msra.mxu0 %v88
    %132 = vmatprep.subr.mxu0 0.0
    %133 = vmatpush1.msra.mxu0 %v87
    %134 = vmatprep.subr.mxu0 0.0
    %135 = vmatpush1.msra.mxu0 %v86
    %136 = vmatprep.subr.mxu0 0.0
    %137 = vmatpush1.msra.mxu0 %v85
    %138 = vmatprep.subr.mxu0 0.0
    %139 = vmatpush2.msra.mxu0 0.0
    %140 = vmatprep.subr.mxu0 0.0
    %141 = vmatpush2.msra.mxu0 0.0
    %142 = vmatprep.subr.mxu0 0.0
    %143 = vmatpush2.msra.mxu0 0.0
    %144 = vmatprep.subr.mxu0 0.0
    %145 = vmatpush2.msra.mxu0 0.0
    %146 = vmatprep.subr.mxu0 0.0
    %147 = vmatpush2.msra.mxu0 0.0
    %148 = vmatprep.subr.mxu0 0.0
    %149 = vmatpush2.msra.mxu0 0.0
    %150 = vmatprep.subr.mxu0 0.0
    %151 = vmatpush2.msra.mxu0 0.0
    %152 = vmatprep.subr.mxu0 0.0
    %153 = vmatpush2.msra.mxu0 0.0
    %154 = vmatprep.subr.mxu0 0.0
    %155 = vmatpush2.msra.mxu0 0.0
    %156 = vmatprep.subr.mxu0 0.0
    %157 = vmatpush2.msra.mxu0 0.0
    %158 = vmatprep.subr.mxu0 0.0
    %159 = vmatpush2.msra.mxu0 0.0
    %160 = vmatprep.subr.mxu0 0.0
    %161 = vmatpush2.msra.mxu0 0.0
    %162 = vmatprep.subr.mxu0 0.0
    %163 = vmatpush2.msra.mxu0 0.0
    %164 = vmatprep.subr.mxu0 0.0
    %165 = vmatpush2.msra.mxu0 0.0
    %166 = vmatprep.subr.mxu0 0.0
    %167 = vmatpush2.msra.mxu0 0.0
    %168 = vmatprep.subr.mxu0 0.0
    %169 = vmatpush2.msra.mxu0 0.0
    %170 = vmatprep.mubr.f32.mxu0 0.0
    %171 = vmatmul.mubr.f32.gmra.mxu0 %v101
    %v172 = vpop.f32.mrf.mxu0
    %v173 = vadd.f32 %v92, %v172
    %v174 = vpop.f32.mrf.mxu0
    %175 = vmatprep.mubr.f32.mxu0 0.0
    %176 = vmatmul.mubr.f32.gmra.mxu0 %v104
    %v177 = vpop.f32.mrf.mxu0
    %v178 = vadd.f32 %v97, %v177
    %v179 = vpop.f32.mrf.mxu0
    %180 = vdwg.mxu0
    %v181 = vxor.u32 %v173, 2147483648
    %v182 = vmul.f32 %v181, 1.442695
    %v183 = vpow.pop %v182
    %v184 = vadd.f32 %v183, 1.0
    %v185 = vrcp.pop %v184
    %v186 = vmul.f32 1.0, %v185
    %v187 = vadd.f32 %v186, %v83
    %v188 = vmul.f32 %v187, 32.0
    %v189 = vadd.f32 %v186, %v81
    %v190 = vmul.f32 %v189, 32.0
    %v191 = vmul.f32 %v173, 1.442695
    %v192 = vpow.pop %v191
    %v193 = vmul.f32 %v192, 137.0
    %v194 = vmul.f32 %v192, 256.0
    %v195 = vmul.f32 %v193, 0.5
    %v197 = vrot.slane %v195, 2
    %v199 = vsub.f32 %v188, %v197
    %v200 = vmul.f32 %v194, 0.5
    %v202 = vrot.slane %v200, 2
    %v204 = vsub.f32 %v190, %v202
    %v206 = vrot.slane %v193, 2
    %v208 = vadd.f32 %v199, %v206
    %v210 = vrot.slane %v194, 2
    %v212 = vadd.f32 %v204, %v210
    %v214 = vrot.slane %v208, 6
    %v217 = vrot.slane %v212, 6
    %vm219 = vcmask 1040384
    %v220 = vsel %vm219, %v199, %v204
    %vm221 = vcmask 1041408
    %v222 = vsel %vm221, %v220, %v214
    %vm223 = vcmask 1042432
    %v224 = vsel %vm223, %v222, %v217
    %vm225 = vcmask 1043456
    %v226 = vsel %vm225, %v224, %v186
    %v227 = vmul.f32 %v192, 248.0
    %v228 = vmul.f32 %v178, 1.442695
    %v229 = vpow.pop %v228
    %v230 = vmul.f32 %v229, 272.0
    %v231 = vxor.u32 %v178, 2147483648
    %v232 = vmul.f32 %v231, 1.442695
    %v233 = vpow.pop %v232
    %v234 = vadd.f32 %v233, 1.0
    %v235 = vrcp.pop %v234
    %v236 = vmul.f32 1.0, %v235
    %v237 = vmul.f32 %v227, 0.5
    %v239 = vrot.slane %v237, 2
    %v241 = vsub.f32 %v188, %v239
    %v242 = vmul.f32 %v230, 0.5
    %v244 = vrot.slane %v242, 2
    %v246 = vsub.f32 %v190, %v244
    %v248 = vrot.slane %v227, 2
    %v250 = vadd.f32 %v241, %v248
    %v252 = vrot.slane %v230, 2
    %v254 = vadd.f32 %v246, %v252
    %v256 = vrot.slane %v241, 5
    %v259 = vrot.slane %v246, 5
    %v262 = vrot.slane %v250, 3
    %v265 = vrot.slane %v254, 3
    %v268 = vrot.slane %v236, 5
    %v270 = vsel %vm219, %v256, %v259
    %v271 = vsel %vm221, %v270, %v262
    %v272 = vsel %vm223, %v271, %v265
    %v273 = vsel %vm225, %v272, %v268
    %v274 = vadd.f32 %v236, %v83
    %v275 = vmul.f32 %v274, 32.0
    %v276 = vadd.f32 %v236, %v81
    %v277 = vmul.f32 %v276, 32.0
    %v278 = vmul.f32 %v229, 386.0
    %v279 = vmul.f32 %v229, 271.0
    %v280 = vmul.f32 %v278, 0.5
    %v282 = vrot.slane %v280, 2
    %v284 = vsub.f32 %v275, %v282
    %v285 = vmul.f32 %v279, 0.5
    %v287 = vrot.slane %v285, 2
    %v289 = vsub.f32 %v277, %v287
    %v291 = vrot.slane %v278, 2
    %v293 = vadd.f32 %v284, %v291
    %v295 = vrot.slane %v279, 2
    %v297 = vadd.f32 %v289, %v295
    %v299 = vrot.slane %v284, 2
    %v302 = vrot.slane %v289, 2
    %v304 = vrot.slane %v236, 2
    %v306 = vsel %vm219, %v299, %v302
    %v307 = vsel %vm221, %v306, %v293
    %v308 = vsel %vm223, %v307, %v297
    %v309 = vsel %vm225, %v308, %v304
    %311 = vrot.lane.b32.xlu0 %v273, 64
    %v312 = vpop.permute.xlu0 %311
    %vm314 = vcmask 523264
    %v315 = vsel %vm314, %v226, %v312
    %v317 = vrot.slane %v178, 5
    %318 = vrot.lane.b32.xlu0 %v317, 64
    %v319 = vpop.permute.xlu0 %318
    %v321 = vrot.slane %v178, 2
    %v323 = vsel %vm314, %v173, %v319
    %vm324 = vcmask 1044484
    %v325 = vsel %vm324, %v323, -inf
    %vm326 = vcmask 520196
    %v327 = vsel %vm326, %v321, -inf
    %v328 = vmax.f32 %v325, %v327
    %329 = vmax.xlane.f32.xlu0 %v328
    %v330 = vpop.xlane.xlu0 %329
    %vm331 = vcmp.ge.f32.partialorder %v323, %v330
    %vm332 = vcmp.ge.f32.partialorder %v321, %v330
    %v333 = vsel %vm331, %v77, 192
    %v334 = vsel %vm332, %v84, 192
    %v335 = vsel %vm324, %v333, 2147483647
    %v336 = vsel %vm326, %v334, 2147483647
    %vm337 = vcmp.lt.s32.totalorder %v335, %v336
    %v338 = vsel %vm337, %v335, %v336
    %v339 = vand.u32 %v338, 65535
    %v340 = vshra.s32 %v338, 16
    %v341 = vcvt.s32.f32 %v339
    %v342 = vcvt.s32.f32 %v340
    %343 = vmin.xlane.f32.xlu0 %v342
    %v344 = vpop.xlane.xlu0 %343
    %vm345 = vcmp.eq.f32.partialorder %v342, %v344
    %v346 = vsel %vm345, %v341, inf
    %347 = vmin.xlane.f32.xlu0 %v346
    %v348 = vpop.xlane.xlu0 %347
    %v349 = vcvt.f32.s32 %v348
    %v350 = vcvt.f32.s32 %v344
    %v351 = vshll.u32 %v350, 16
    %v352 = vadd.s32 %v351, %v349
    %vm353 = vcmp.eq.s32.totalorder %v77, %v352
    %vm354 = vcmp.eq.s32.totalorder %v84, %v352
    %v355 = vsel %vm353, 1, 0
    %v356 = vsel %vm354, 1, 0
    %v357 = vcvt.s32.f32 %v355
    %v358 = vcvt.s32.f32 %v356
    %v359 = vlaneseq
    %v360 = vshrl.u32 %v359, 7
    %v361 = vsub.s32 4, %v360
    %v362 = vrot.slane %v357, %v361
    %v363 = vlaneseq
    %v364 = vshrl.u32 %v363, 7
    %v365 = vsub.s32 4, %v364
    %v366 = vrot.slane %v358, %v365
    %v367 = vmul.f32 %v315, %v362
    %v368 = vmul.f32 %v309, %v366
    %vm369 = vcmask 1044480
    %v370 = vsel %vm369, %v367, 0.0
    %vm371 = vcmask 520192
    %v372 = vsel %vm371, %v368, 0.0
    %v373 = vadd.f32 %v370, %v372
    %374 = vadd.xlane.f32.xlu0 %v373
    %v375 = vpop.xlane.xlu0 %374
    %v376 = vld [vmem:[%s4] sm:$0x1]
    %v377 = vld [vmem:[#allocation6] sm:$0xff]
    %v378 = vld [vmem:[#allocation6 + $0x8] sm:$0xff]
    %v379 = vld [vmem:[#allocation6 + $0x10] sm:$0xff]
    %v380 = vld [vmem:[#allocation6 + $0x18] sm:$0xff]
    %v382 = vsel %vm99, %v376, 0
    %384 = vmatprep.subr.mxu0 0.0
    %385 = vmatpush1.msra.mxu0 0.0
    %386 = vmatprep.subr.mxu0 0.0
    %387 = vmatpush1.msra.mxu0 0.0
    %388 = vmatprep.subr.mxu0 0.0
    %389 = vmatpush1.msra.mxu0 0.0
    %390 = vmatprep.subr.mxu0 0.0
    %391 = vmatpush1.msra.mxu0 0.0
    %392 = vmatprep.subr.mxu0 0.0
    %393 = vmatpush1.msra.mxu0 0.0
    %394 = vmatprep.subr.mxu0 0.0
    %395 = vmatpush1.msra.mxu0 0.0
    %396 = vmatprep.subr.mxu0 0.0
    %397 = vmatpush1.msra.mxu0 0.0
    %398 = vmatprep.subr.mxu0 0.0
    %399 = vmatpush1.msra.mxu0 0.0
    %400 = vmatprep.subr.mxu0 0.0
    %401 = vmatpush1.msra.mxu0 0.0
    %402 = vmatprep.subr.mxu0 0.0
    %403 = vmatpush1.msra.mxu0 0.0
    %404 = vmatprep.subr.mxu0 0.0
    %405 = vmatpush1.msra.mxu0 0.0
    %406 = vmatprep.subr.mxu0 0.0
    %407 = vmatpush1.msra.mxu0 0.0
    %408 = vmatprep.subr.mxu0 0.0
    %409 = vmatpush1.msra.mxu0 %v380
    %410 = vmatprep.subr.mxu0 0.0
    %411 = vmatpush1.msra.mxu0 %v379
    %412 = vmatprep.subr.mxu0 0.0
    %413 = vmatpush1.msra.mxu0 %v378
    %414 = vmatprep.subr.mxu0 0.0
    %415 = vmatpush1.msra.mxu0 %v377
    %416 = vmatprep.subr.mxu0 0.0
    %417 = vmatpush2.msra.mxu0 0.0
    %418 = vmatprep.subr.mxu0 0.0
    %419 = vmatpush2.msra.mxu0 0.0
    %420 = vmatprep.subr.mxu0 0.0
    %421 = vmatpush2.msra.mxu0 0.0
    %422 = vmatprep.subr.mxu0 0.0
    %423 = vmatpush2.msra.mxu0 0.0
    %424 = vmatprep.subr.mxu0 0.0
    %425 = vmatpush2.msra.mxu0 0.0
    %426 = vmatprep.subr.mxu0 0.0
    %427 = vmatpush2.msra.mxu0 0.0
    %428 = vmatprep.subr.mxu0 0.0
    %429 = vmatpush2.msra.mxu0 0.0
    %430 = vmatprep.subr.mxu0 0.0
    %431 = vmatpush2.msra.mxu0 0.0
    %432 = vmatprep.subr.mxu0 0.0
    %433 = vmatpush2.msra.mxu0 0.0
    %434 = vmatprep.subr.mxu0 0.0
    %435 = vmatpush2.msra.mxu0 0.0
    %436 = vmatprep.subr.mxu0 0.0
    %437 = vmatpush2.msra.mxu0 0.0
    %438 = vmatprep.subr.mxu0 0.0
    %439 = vmatpush2.msra.mxu0 0.0
    %440 = vmatprep.subr.mxu0 0.0
    %441 = vmatpush2.msra.mxu0 0.0
    %442 = vmatprep.subr.mxu0 0.0
    %443 = vmatpush2.msra.mxu0 0.0
    %444 = vmatprep.subr.mxu0 0.0
    %445 = vmatpush2.msra.mxu0 0.0
    %446 = vmatprep.subr.mxu0 0.0
    %447 = vmatpush2.msra.mxu0 0.0
    %448 = vmatprep.mubr.f32.mxu0 0.0
    %449 = vmatmul.mubr.f32.gmra.mxu0 %v382
    %v450 = vpop.f32.mrf.mxu0
    %v451 = vadd.f32 0.0, %v450
    %v452 = vpop.f32.mrf.mxu0
    %453 = vdwg.mxu0
    %s454 = scalar_lea.vmem [#allocation3], 32
    %v455 = vld [vmem:[%s454] sm:$0xff]
    %v456 = vld [vmem:[%s454 + $0x8] sm:$0xff]
    %v457 = vld [vmem:[%s454 + $0x10] sm:$0xff]
    %v458 = vld [vmem:[%s454 + $0x18] sm:$0xff]
    %459 = vmatprep.subr.mxu0 0.0
    %460 = vmatpush1.msra.mxu0 0.0
    %461 = vmatprep.subr.mxu0 0.0
    %462 = vmatpush1.msra.mxu0 0.0
    %463 = vmatprep.subr.mxu0 0.0
    %464 = vmatpush1.msra.mxu0 0.0
    %465 = vmatprep.subr.mxu0 0.0
    %466 = vmatpush1.msra.mxu0 0.0
    %467 = vmatprep.subr.mxu0 0.0
    %468 = vmatpush1.msra.mxu0 0.0
    %469 = vmatprep.subr.mxu0 0.0
    %470 = vmatpush1.msra.mxu0 0.0
    %471 = vmatprep.subr.mxu0 0.0
    %472 = vmatpush1.msra.mxu0 0.0
    %473 = vmatprep.subr.mxu0 0.0
    %474 = vmatpush1.msra.mxu0 0.0
    %475 = vmatprep.subr.mxu0 0.0
    %476 = vmatpush1.msra.mxu0 0.0
    %477 = vmatprep.subr.mxu0 0.0
    %478 = vmatpush1.msra.mxu0 0.0
    %479 = vmatprep.subr.mxu0 0.0
    %480 = vmatpush1.msra.mxu0 0.0
    %481 = vmatprep.subr.mxu0 0.0
    %482 = vmatpush1.msra.mxu0 0.0
    %483 = vmatprep.subr.mxu0 0.0
    %484 = vmatpush1.msra.mxu0 %v458
    %485 = vmatprep.subr.mxu0 0.0
    %486 = vmatpush1.msra.mxu0 %v457
    %487 = vmatprep.subr.mxu0 0.0
    %488 = vmatpush1.msra.mxu0 %v456
    %489 = vmatprep.subr.mxu0 0.0
    %490 = vmatpush1.msra.mxu0 %v455
    %491 = vmatprep.subr.mxu0 0.0
    %492 = vmatpush2.msra.mxu0 0.0
    %493 = vmatprep.subr.mxu0 0.0
    %494 = vmatpush2.msra.mxu0 0.0
    %495 = vmatprep.subr.mxu0 0.0
    %496 = vmatpush2.msra.mxu0 0.0
    %497 = vmatprep.subr.mxu0 0.0
    %498 = vmatpush2.msra.mxu0 0.0
    %499 = vmatprep.subr.mxu0 0.0
    %500 = vmatpush2.msra.mxu0 0.0
    %501 = vmatprep.subr.mxu0 0.0
    %502 = vmatpush2.msra.mxu0 0.0
    %503 = vmatprep.subr.mxu0 0.0
    %504 = vmatpush2.msra.mxu0 0.0
    %505 = vmatprep.subr.mxu0 0.0
    %506 = vmatpush2.msra.mxu0 0.0
    %507 = vmatprep.subr.mxu0 0.0
    %508 = vmatpush2.msra.mxu0 0.0
    %509 = vmatprep.subr.mxu0 0.0
    %510 = vmatpush2.msra.mxu0 0.0
    %511 = vmatprep.subr.mxu0 0.0
    %512 = vmatpush2.msra.mxu0 0.0
    %513 = vmatprep.subr.mxu0 0.0
    %514 = vmatpush2.msra.mxu0 0.0
    %515 = vmatprep.subr.mxu0 0.0
    %516 = vmatpush2.msra.mxu0 0.0
    %517 = vmatprep.subr.mxu0 0.0
    %518 = vmatpush2.msra.mxu0 0.0
    %519 = vmatprep.subr.mxu0 0.0
    %520 = vmatpush2.msra.mxu0 0.0
    %521 = vmatprep.subr.mxu0 0.0
    %522 = vmatpush2.msra.mxu0 0.0
    %523 = vmatprep.mubr.f32.mxu0 0.0
    %524 = vmatmul.mubr.f32.gmra.mxu0 %v101
    %v525 = vpop.f32.mrf.mxu0
    %v526 = vadd.f32 %v92, %v525
    %v527 = vpop.f32.mrf.mxu0
    %528 = vmatprep.mubr.f32.mxu0 0.0
    %529 = vmatmul.mubr.f32.gmra.mxu0 %v104
    %v530 = vpop.f32.mrf.mxu0
    %v531 = vadd.f32 %v97, %v530
    %v532 = vpop.f32.mrf.mxu0
    %533 = vdwg.mxu0
    %v534 = vxor.u32 %v526, 2147483648
    %v535 = vmul.f32 %v534, 1.442695
    %v536 = vpow.pop %v535
    %v537 = vadd.f32 %v536, 1.0
    %v538 = vrcp.pop %v537
    %v539 = vmul.f32 1.0, %v538
    %v540 = vadd.f32 %v539, %v83
    %v541 = vmul.f32 %v540, 32.0
    %v542 = vadd.f32 %v539, %v81
    %v543 = vmul.f32 %v542, 32.0
    %v544 = vmul.f32 %v526, 1.442695
    %v545 = vpow.pop %v544
    %v546 = vmul.f32 %v545, 137.0
    %v547 = vmul.f32 %v545, 256.0
    %v548 = vmul.f32 %v546, 0.5
    %v550 = vrot.slane %v548, 2
    %v552 = vsub.f32 %v541, %v550
    %v553 = vmul.f32 %v547, 0.5
    %v555 = vrot.slane %v553, 2
    %v557 = vsub.f32 %v543, %v555
    %v559 = vrot.slane %v546, 2
    %v561 = vadd.f32 %v552, %v559
    %v563 = vrot.slane %v547, 2
    %v565 = vadd.f32 %v557, %v563
    %v567 = vrot.slane %v561, 6
    %v570 = vrot.slane %v565, 6
    %v572 = vsel %vm219, %v552, %v557
    %v573 = vsel %vm221, %v572, %v567
    %v574 = vsel %vm223, %v573, %v570
    %v575 = vsel %vm225, %v574, %v539
    %v576 = vmul.f32 %v545, 248.0
    %v577 = vmul.f32 %v531, 1.442695
    %v578 = vpow.pop %v577
    %v579 = vmul.f32 %v578, 272.0
    %v580 = vxor.u32 %v531, 2147483648
    %v581 = vmul.f32 %v580, 1.442695
    %v582 = vpow.pop %v581
    %v583 = vadd.f32 %v582, 1.0
    %v584 = vrcp.pop %v583
    %v585 = vmul.f32 1.0, %v584
    %v586 = vmul.f32 %v576, 0.5
    %v588 = vrot.slane %v586, 2
    %v590 = vsub.f32 %v541, %v588
    %v591 = vmul.f32 %v579, 0.5
    %v593 = vrot.slane %v591, 2
    %v595 = vsub.f32 %v543, %v593
    %v597 = vrot.slane %v576, 2
    %v599 = vadd.f32 %v590, %v597
    %v601 = vrot.slane %v579, 2
    %v603 = vadd.f32 %v595, %v601
    %v605 = vrot.slane %v590, 5
    %v608 = vrot.slane %v595, 5
    %v611 = vrot.slane %v599, 3
    %v614 = vrot.slane %v603, 3
    %v617 = vrot.slane %v585, 5
    %v619 = vsel %vm219, %v605, %v608
    %v620 = vsel %vm221, %v619, %v611
    %v621 = vsel %vm223, %v620, %v614
    %v622 = vsel %vm225, %v621, %v617
    %v623 = vadd.f32 %v585, %v83
    %v624 = vmul.f32 %v623, 32.0
    %v625 = vadd.f32 %v585, %v81
    %v626 = vmul.f32 %v625, 32.0
    %v627 = vmul.f32 %v578, 386.0
    %v628 = vmul.f32 %v578, 271.0
    %v629 = vmul.f32 %v627, 0.5
    %v631 = vrot.slane %v629, 2
    %v633 = vsub.f32 %v624, %v631
    %v634 = vmul.f32 %v628, 0.5
    %v636 = vrot.slane %v634, 2
    %v638 = vsub.f32 %v626, %v636
    %v640 = vrot.slane %v627, 2
    %v642 = vadd.f32 %v633, %v640
    %v644 = vrot.slane %v628, 2
    %v646 = vadd.f32 %v638, %v644
    %v648 = vrot.slane %v633, 2
    %v651 = vrot.slane %v638, 2
    %v653 = vrot.slane %v585, 2
    %v655 = vsel %vm219, %v648, %v651
    %v656 = vsel %vm221, %v655, %v642
    %v657 = vsel %vm223, %v656, %v646
    %v658 = vsel %vm225, %v657, %v653
    %660 = vrot.lane.b32.xlu0 %v622, 64
    %v661 = vpop.permute.xlu0 %660
    %v663 = vsel %vm314, %v575, %v661
    %v665 = vrot.slane %v531, 5
    %666 = vrot.lane.b32.xlu0 %v665, 64
    %v667 = vpop.permute.xlu0 %666
    %v669 = vrot.slane %v531, 2
    %v671 = vsel %vm314, %v526, %v667
    %v672 = vsel %vm324, %v671, -inf
    %v673 = vsel %vm326, %v669, -inf
    %v674 = vmax.f32 %v672, %v673
    %675 = vmax.xlane.f32.xlu0 %v674
    %v676 = vpop.xlane.xlu0 %675
    %vm677 = vcmp.ge.f32.partialorder %v671, %v676
    %vm678 = vcmp.ge.f32.partialorder %v669, %v676
    %v679 = vsel %vm677, %v77, 192
    %v680 = vsel %vm678, %v84, 192
    %v681 = vsel %vm324, %v679, 2147483647
    %v682 = vsel %vm326, %v680, 2147483647
    %vm683 = vcmp.lt.s32.totalorder %v681, %v682
    %v684 = vsel %vm683, %v681, %v682
    %v685 = vand.u32 %v684, 65535
    %v686 = vshra.s32 %v684, 16
    %v687 = vcvt.s32.f32 %v685
    %v688 = vcvt.s32.f32 %v686
    %689 = vmin.xlane.f32.xlu0 %v688
    %v690 = vpop.xlane.xlu0 %689
    %vm691 = vcmp.eq.f32.partialorder %v688, %v690
    %v692 = vsel %vm691, %v687, inf
    %693 = vmin.xlane.f32.xlu0 %v692
    %v694 = vpop.xlane.xlu0 %693
    %v695 = vcvt.f32.s32 %v694
    %v696 = vcvt.f32.s32 %v690
    %v697 = vshll.u32 %v696, 16
    %v698 = vadd.s32 %v697, %v695
    %vm699 = vcmp.eq.s32.totalorder %v77, %v698
    %vm700 = vcmp.eq.s32.totalorder %v84, %v698
    %v701 = vsel %vm699, 1, 0
    %v702 = vsel %vm700, 1, 0
    %v703 = vcvt.s32.f32 %v701
    %v704 = vcvt.s32.f32 %v702
    %v705 = vlaneseq
    %v706 = vshrl.u32 %v705, 7
    %v707 = vsub.s32 4, %v706
    %v708 = vrot.slane %v703, %v707
    %v709 = vlaneseq
    %v710 = vshrl.u32 %v709, 7
    %v711 = vsub.s32 4, %v710
    %v712 = vrot.slane %v704, %v711
    %v713 = vmul.f32 %v663, %v708
    %v714 = vmul.f32 %v658, %v712
    %v715 = vsel %vm369, %v713, 0.0
    %v716 = vsel %vm371, %v714, 0.0
    %v717 = vadd.f32 %v715, %v716
    %718 = vadd.xlane.f32.xlu0 %v717
    %v719 = vpop.xlane.xlu0 %718
    %s720 = scalar_lea.vmem [#allocation6], 32
    %v721 = vld [vmem:[%s720] sm:$0xff]
    %v722 = vld [vmem:[%s720 + $0x8] sm:$0xff]
    %v723 = vld [vmem:[%s720 + $0x10] sm:$0xff]
    %v724 = vld [vmem:[%s720 + $0x18] sm:$0xff]
    %725 = vmatprep.subr.mxu0 0.0
    %726 = vmatpush1.msra.mxu0 0.0
    %727 = vmatprep.subr.mxu0 0.0
    %728 = vmatpush1.msra.mxu0 0.0
    %729 = vmatprep.subr.mxu0 0.0
    %730 = vmatpush1.msra.mxu0 0.0
    %731 = vmatprep.subr.mxu0 0.0
    %732 = vmatpush1.msra.mxu0 0.0
    %733 = vmatprep.subr.mxu0 0.0
    %734 = vmatpush1.msra.mxu0 0.0
    %735 = vmatprep.subr.mxu0 0.0
    %736 = vmatpush1.msra.mxu0 0.0
    %737 = vmatprep.subr.mxu0 0.0
    %738 = vmatpush1.msra.mxu0 0.0
    %739 = vmatprep.subr.mxu0 0.0
    %740 = vmatpush1.msra.mxu0 0.0
    %741 = vmatprep.subr.mxu0 0.0
    %742 = vmatpush1.msra.mxu0 0.0
    %743 = vmatprep.subr.mxu0 0.0
    %744 = vmatpush1.msra.mxu0 0.0
    %745 = vmatprep.subr.mxu0 0.0
    %746 = vmatpush1.msra.mxu0 0.0
    %747 = vmatprep.subr.mxu0 0.0
    %748 = vmatpush1.msra.mxu0 0.0
    %749 = vmatprep.subr.mxu0 0.0
    %750 = vmatpush1.msra.mxu0 %v724
    %751 = vmatprep.subr.mxu0 0.0
    %752 = vmatpush1.msra.mxu0 %v723
    %753 = vmatprep.subr.mxu0 0.0
    %754 = vmatpush1.msra.mxu0 %v722
    %755 = vmatprep.subr.mxu0 0.0
    %756 = vmatpush1.msra.mxu0 %v721
    %757 = vmatprep.subr.mxu0 0.0
    %758 = vmatpush2.msra.mxu0 0.0
    %759 = vmatprep.subr.mxu0 0.0
    %760 = vmatpush2.msra.mxu0 0.0
    %761 = vmatprep.subr.mxu0 0.0
    %762 = vmatpush2.msra.mxu0 0.0
    %763 = vmatprep.subr.mxu0 0.0
    %764 = vmatpush2.msra.mxu0 0.0
    %765 = vmatprep.subr.mxu0 0.0
    %766 = vmatpush2.msra.mxu0 0.0
    %767 = vmatprep.subr.mxu0 0.0
    %768 = vmatpush2.msra.mxu0 0.0
    %769 = vmatprep.subr.mxu0 0.0
    %770 = vmatpush2.msra.mxu0 0.0
    %771 = vmatprep.subr.mxu0 0.0
    %772 = vmatpush2.msra.mxu0 0.0
    %773 = vmatprep.subr.mxu0 0.0
    %774 = vmatpush2.msra.mxu0 0.0
    %775 = vmatprep.subr.mxu0 0.0
    %776 = vmatpush2.msra.mxu0 0.0
    %777 = vmatprep.subr.mxu0 0.0
    %778 = vmatpush2.msra.mxu0 0.0
    %779 = vmatprep.subr.mxu0 0.0
    %780 = vmatpush2.msra.mxu0 0.0
    %781 = vmatprep.subr.mxu0 0.0
    %782 = vmatpush2.msra.mxu0 0.0
    %783 = vmatprep.subr.mxu0 0.0
    %784 = vmatpush2.msra.mxu0 0.0
    %785 = vmatprep.subr.mxu0 0.0
    %786 = vmatpush2.msra.mxu0 0.0
    %787 = vmatprep.subr.mxu0 0.0
    %788 = vmatpush2.msra.mxu0 0.0
    %789 = vmatprep.mubr.f32.mxu0 0.0
    %790 = vmatmul.mubr.f32.gmra.mxu0 %v382
    %v791 = vpop.f32.mrf.mxu0
    %v792 = vadd.f32 0.0, %v791
    %v793 = vpop.f32.mrf.mxu0
    %794 = vdwg.mxu0
    %vm795 = vcmask 7168
    %v796 = vsel %vm795, %v375, %v719
    %vm797 = vcmask 12288
    %798 = vst.msk [vmem:[%s7] sm:$0x1f] %vm797, %v796
    %v800 = vrot.slane %v792, 7
    %v802 = vsel %vm219, %v451, %v800
    %v803 = vld [vmem:[#allocation2] sm:$0x1]
    %v805 = vlaneseq
    %v806 = vshrl.u32 %v805, 7
    %v807 = vsub.s32 0, %v806
    %v808 = vrot.slane %v803, %v807
    %809 = vset.pattern.permute.xlu0 0
    %810 = vperm.xlu0 %809, %v808
    %v811 = vpop.permute.xlu0 %810
    %v813 = vadd.f32 %v802, %v811
    %v814 = vld [vmem:[#allocation8] sm:$0xff]
    %v815 = vld [vmem:[#allocation8 + $0x8] sm:$0xff]
    %v816 = vld [vmem:[#allocation8 + $0x10] sm:$0xff]
    %v817 = vld [vmem:[#allocation8 + $0x18] sm:$0xff]
    %v818 = vld [vmem:[#allocation8 + $0x20] sm:$0xff]
    %v819 = vld [vmem:[#allocation8 + $0x28] sm:$0xff]
    %v820 = vld [vmem:[#allocation8 + $0x30] sm:$0xff]
    %v821 = vld [vmem:[#allocation8 + $0x38] sm:$0xff]
    %v822 = vld [vmem:[#allocation8 + $0x40] sm:$0xff]
    %v823 = vld [vmem:[#allocation8 + $0x48] sm:$0xff]
    %v824 = vld [vmem:[#allocation8 + $0x50] sm:$0xff]
    %v825 = vld [vmem:[#allocation8 + $0x58] sm:$0xff]
    %v826 = vld [vmem:[#allocation8 + $0x60] sm:$0xff]
    %v827 = vld [vmem:[#allocation8 + $0x68] sm:$0xff]
    %v828 = vld [vmem:[#allocation8 + $0x70] sm:$0xff]
    %v829 = vld [vmem:[#allocation8 + $0x78] sm:$0xff]
    %v830 = vld [vmem:[#allocation8 + $0x80] sm:$0xff]
    %v831 = vld [vmem:[#allocation8 + $0x88] sm:$0xff]
    %v832 = vld [vmem:[#allocation8 + $0x90] sm:$0xff]
    %v833 = vld [vmem:[#allocation8 + $0x98] sm:$0xff]
    %v834 = vld [vmem:[#allocation8 + $0xa0] sm:$0xff]
    %v835 = vld [vmem:[#allocation8 + $0xa8] sm:$0xff]
    %v836 = vld [vmem:[#allocation8 + $0xb0] sm:$0xff]
    %v837 = vld [vmem:[#allocation8 + $0xb8] sm:$0xff]
    %v838 = vld [vmem:[#allocation8 + $0xc0] sm:$0xff]
    %v839 = vld [vmem:[#allocation8 + $0xc8] sm:$0xff]
    %v840 = vld [vmem:[#allocation8 + $0xd0] sm:$0xff]
    %v841 = vld [vmem:[#allocation8 + $0xd8] sm:$0xff]
    %v842 = vld [vmem:[#allocation8 + $0xe0] sm:$0xff]
    %v843 = vld [vmem:[#allocation8 + $0xe8] sm:$0xff]
    %v844 = vld [vmem:[#allocation8 + $0xf0] sm:$0xff]
    %v845 = vld [vmem:[#allocation8 + $0xf8] sm:$0xff]
    %v846 = vld [vmem:[#allocation8 + $0x100] sm:$0xff]
    %v847 = vld [vmem:[#allocation8 + $0x108] sm:$0xff]
    %v848 = vld [vmem:[#allocation8 + $0x110] sm:$0xff]
    %v849 = vld [vmem:[#allocation8 + $0x118] sm:$0xff]
    %v850 = vld [vmem:[#allocation8 + $0x120] sm:$0xff]
    %v851 = vld [vmem:[#allocation8 + $0x128] sm:$0xff]
    %v852 = vld [vmem:[#allocation8 + $0x130] sm:$0xff]
    %v853 = vld [vmem:[#allocation8 + $0x138] sm:$0xff]
    %v854 = vld [vmem:[#allocation8 + $0x140] sm:$0xff]
    %v855 = vld [vmem:[#allocation8 + $0x148] sm:$0xff]
    %v856 = vld [vmem:[#allocation8 + $0x150] sm:$0xff]
    %v857 = vld [vmem:[#allocation8 + $0x158] sm:$0xff]
    %v858 = vld [vmem:[#allocation8 + $0x160] sm:$0xff]
    %v859 = vld [vmem:[#allocation8 + $0x168] sm:$0xff]
    %v860 = vld [vmem:[#allocation8 + $0x170] sm:$0xff]
    %v861 = vld [vmem:[#allocation8 + $0x178] sm:$0xff]
    %v862 = vld [vmem:[#allocation8 + $0x180] sm:$0xff]
    %v863 = vld [vmem:[#allocation8 + $0x188] sm:$0xff]
    %v864 = vld [vmem:[#allocation8 + $0x190] sm:$0xff]
    %v865 = vld [vmem:[#allocation8 + $0x198] sm:$0xff]
    %v866 = vld [vmem:[#allocation8 + $0x1a0] sm:$0xff]
    %v867 = vld [vmem:[#allocation8 + $0x1a8] sm:$0xff]
    %v868 = vld [vmem:[#allocation8 + $0x1b0] sm:$0xff]
    %v869 = vld [vmem:[#allocation8 + $0x1b8] sm:$0xff]
    %v870 = vld [vmem:[#allocation8 + $0x1c0] sm:$0xff]
    %v871 = vld [vmem:[#allocation8 + $0x1c8] sm:$0xff]
    %v872 = vld [vmem:[#allocation8 + $0x1d0] sm:$0xff]
    %v873 = vld [vmem:[#allocation8 + $0x1d8] sm:$0xff]
    %v874 = vld [vmem:[#allocation8 + $0x1e0] sm:$0xff]
    %v875 = vld [vmem:[#allocation8 + $0x1e8] sm:$0xff]
    %v876 = vld [vmem:[#allocation8 + $0x1f0] sm:$0xff]
    %v877 = vld [vmem:[#allocation8 + $0x1f8] sm:$0xff]
    %v878 = vld [vmem:[#allocation8 + $0x200] sm:$0xff]
    %v879 = vld [vmem:[#allocation8 + $0x208] sm:$0xff]
    %v880 = vld [vmem:[#allocation8 + $0x210] sm:$0xff]
    %v881 = vld [vmem:[#allocation8 + $0x218] sm:$0xff]
    %v882 = vld [vmem:[#allocation8 + $0x220] sm:$0xff]
    %v883 = vld [vmem:[#allocation8 + $0x228] sm:$0xff]
    %v884 = vld [vmem:[#allocation8 + $0x230] sm:$0xff]
    %v885 = vld [vmem:[#allocation8 + $0x238] sm:$0xff]
    %v886 = vld [vmem:[#allocation8 + $0x240] sm:$0xff]
    %v887 = vld [vmem:[#allocation8 + $0x248] sm:$0xff]
    %v888 = vld [vmem:[#allocation8 + $0x250] sm:$0xff]
    %v889 = vld [vmem:[#allocation8 + $0x258] sm:$0xff]
    %v890 = vld [vmem:[#allocation8 + $0x260] sm:$0xff]
    %v891 = vld [vmem:[#allocation8 + $0x268] sm:$0xff]
    %v892 = vld [vmem:[#allocation8 + $0x270] sm:$0xff]
    %v893 = vld [vmem:[#allocation8 + $0x278] sm:$0xff]
    %v894 = vld [vmem:[#allocation8 + $0x280] sm:$0xff]
    %v895 = vld [vmem:[#allocation8 + $0x288] sm:$0xff]
    %v896 = vld [vmem:[#allocation8 + $0x290] sm:$0xff]
    %v897 = vld [vmem:[#allocation8 + $0x298] sm:$0xff]
    %v898 = vld [vmem:[#allocation8 + $0x2a0] sm:$0xff]
    %v899 = vld [vmem:[#allocation8 + $0x2a8] sm:$0xff]
    %v900 = vld [vmem:[#allocation8 + $0x2b0] sm:$0xff]
    %v901 = vld [vmem:[#allocation8 + $0x2b8] sm:$0xff]
    %v902 = vld [vmem:[#allocation8 + $0x2c0] sm:$0xff]
    %v903 = vld [vmem:[#allocation8 + $0x2c8] sm:$0xff]
    %v904 = vld [vmem:[#allocation8 + $0x2d0] sm:$0xff]
    %v905 = vld [vmem:[#allocation8 + $0x2d8] sm:$0xff]
    %v906 = vld [vmem:[#allocation8 + $0x2e0] sm:$0xff]
    %v907 = vld [vmem:[#allocation8 + $0x2e8] sm:$0xff]
    %v908 = vld [vmem:[#allocation8 + $0x2f0] sm:$0xff]
    %v909 = vld [vmem:[#allocation8 + $0x2f8] sm:$0xff]
    %v910 = vld [vmem:[#allocation8 + $0x300] sm:$0xff]
    %v911 = vld [vmem:[#allocation8 + $0x308] sm:$0xff]
    %v912 = vld [vmem:[#allocation8 + $0x310] sm:$0xff]
    %v913 = vld [vmem:[#allocation8 + $0x318] sm:$0xff]
    %v914 = vld [vmem:[#allocation8 + $0x320] sm:$0xff]
    %v915 = vld [vmem:[#allocation8 + $0x328] sm:$0xff]
    %v916 = vld [vmem:[#allocation8 + $0x330] sm:$0xff]
    %v917 = vld [vmem:[#allocation8 + $0x338] sm:$0xff]
    %v918 = vld [vmem:[#allocation8 + $0x340] sm:$0xff]
    %v919 = vld [vmem:[#allocation8 + $0x348] sm:$0xff]
    %v920 = vld [vmem:[#allocation8 + $0x350] sm:$0xff]
    %v921 = vld [vmem:[#allocation8 + $0x358] sm:$0xff]
    %v922 = vld [vmem:[#allocation8 + $0x360] sm:$0xff]
    %v923 = vld [vmem:[#allocation8 + $0x368] sm:$0xff]
    %v924 = vld [vmem:[#allocation8 + $0x370] sm:$0xff]
    %v925 = vld [vmem:[#allocation8 + $0x378] sm:$0xff]
    %v926 = vld [vmem:[#allocation8 + $0x380] sm:$0xff]
    %v927 = vld [vmem:[#allocation8 + $0x388] sm:$0xff]
    %v928 = vld [vmem:[#allocation8 + $0x390] sm:$0xff]
    %v929 = vld [vmem:[#allocation8 + $0x398] sm:$0xff]
    %v930 = vld [vmem:[#allocation8 + $0x3a0] sm:$0xff]
    %v931 = vld [vmem:[#allocation8 + $0x3a8] sm:$0xff]
    %v932 = vld [vmem:[#allocation8 + $0x3b0] sm:$0xff]
    %v933 = vld [vmem:[#allocation8 + $0x3b8] sm:$0xff]
    %v934 = vld [vmem:[#allocation8 + $0x3c0] sm:$0xff]
    %v935 = vld [vmem:[#allocation8 + $0x3c8] sm:$0xff]
    %v936 = vld [vmem:[#allocation8 + $0x3d0] sm:$0xff]
    %v937 = vld [vmem:[#allocation8 + $0x3d8] sm:$0xff]
    %v938 = vld [vmem:[#allocation8 + $0x3e0] sm:$0xff]
    %v939 = vld [vmem:[#allocation8 + $0x3e8] sm:$0xff]
    %v940 = vld [vmem:[#allocation8 + $0x3f0] sm:$0xff]
    %v941 = vld [vmem:[#allocation8 + $0x3f8] sm:$0xff]
    %v942 = vld [vmem:[#allocation8 + $0x400] sm:$0xff]
    %v943 = vld [vmem:[#allocation8 + $0x408] sm:$0xff]
    %v944 = vld [vmem:[#allocation8 + $0x410] sm:$0xff]
    %v945 = vld [vmem:[#allocation8 + $0x418] sm:$0xff]
    %v946 = vld [vmem:[#allocation8 + $0x420] sm:$0xff]
    %v947 = vld [vmem:[#allocation8 + $0x428] sm:$0xff]
    %v948 = vld [vmem:[#allocation8 + $0x430] sm:$0xff]
    %v949 = vld [vmem:[#allocation8 + $0x438] sm:$0xff]
    %v950 = vld [vmem:[#allocation8 + $0x440] sm:$0xff]
    %v951 = vld [vmem:[#allocation8 + $0x448] sm:$0xff]
    %v952 = vld [vmem:[#allocation8 + $0x450] sm:$0xff]
    %v953 = vld [vmem:[#allocation8 + $0x458] sm:$0xff]
    %v954 = vld [vmem:[#allocation8 + $0x460] sm:$0xff]
    %v955 = vld [vmem:[#allocation8 + $0x468] sm:$0xff]
    %v956 = vld [vmem:[#allocation8 + $0x470] sm:$0xff]
    %v957 = vld [vmem:[#allocation8 + $0x478] sm:$0xff]
    %v958 = vld [vmem:[#allocation8 + $0x480] sm:$0xff]
    %v959 = vld [vmem:[#allocation8 + $0x488] sm:$0xff]
    %v960 = vld [vmem:[#allocation8 + $0x490] sm:$0xff]
    %v961 = vld [vmem:[#allocation8 + $0x498] sm:$0xff]
    %v962 = vld [vmem:[#allocation8 + $0x4a0] sm:$0xff]
    %v963 = vld [vmem:[#allocation8 + $0x4a8] sm:$0xff]
    %v964 = vld [vmem:[#allocation8 + $0x4b0] sm:$0xff]
    %v965 = vld [vmem:[#allocation8 + $0x4b8] sm:$0xff]
    %v966 = vld [vmem:[#allocation8 + $0x4c0] sm:$0xff]
    %v967 = vld [vmem:[#allocation8 + $0x4c8] sm:$0xff]
    %v968 = vld [vmem:[#allocation8 + $0x4d0] sm:$0xff]
    %v969 = vld [vmem:[#allocation8 + $0x4d8] sm:$0xff]
    %v970 = vld [vmem:[#allocation8 + $0x4e0] sm:$0xff]
    %v971 = vld [vmem:[#allocation8 + $0x4e8] sm:$0xff]
    %v972 = vld [vmem:[#allocation8 + $0x4f0] sm:$0xff]
    %v973 = vld [vmem:[#allocation8 + $0x4f8] sm:$0xff]
    %v974 = vld [vmem:[#allocation8 + $0x500] sm:$0xff]
    %v975 = vld [vmem:[#allocation8 + $0x508] sm:$0xff]
    %v976 = vld [vmem:[#allocation8 + $0x510] sm:$0xff]
    %v977 = vld [vmem:[#allocation8 + $0x518] sm:$0xff]
    %v978 = vld [vmem:[#allocation8 + $0x520] sm:$0xff]
    %v979 = vld [vmem:[#allocation8 + $0x528] sm:$0xff]
    %v980 = vld [vmem:[#allocation8 + $0x530] sm:$0xff]
    %v981 = vld [vmem:[#allocation8 + $0x538] sm:$0xff]
    %v982 = vld [vmem:[#allocation8 + $0x540] sm:$0xff]
    %v983 = vld [vmem:[#allocation8 + $0x548] sm:$0xff]
    %v984 = vld [vmem:[#allocation8 + $0x550] sm:$0xff]
    %v985 = vld [vmem:[#allocation8 + $0x558] sm:$0xff]
    %v986 = vld [vmem:[#allocation8 + $0x560] sm:$0xff]
    %v987 = vld [vmem:[#allocation8 + $0x568] sm:$0xff]
    %v988 = vld [vmem:[#allocation8 + $0x570] sm:$0xff]
    %v989 = vld [vmem:[#allocation8 + $0x578] sm:$0xff]
    %v990 = vld [vmem:[#allocation8 + $0x580] sm:$0xff]
    %v991 = vld [vmem:[#allocation8 + $0x588] sm:$0xff]
    %v992 = vld [vmem:[#allocation8 + $0x590] sm:$0xff]
    %v993 = vld [vmem:[#allocation8 + $0x598] sm:$0xff]
    %v994 = vld [vmem:[#allocation8 + $0x5a0] sm:$0xff]
    %v995 = vld [vmem:[#allocation8 + $0x5a8] sm:$0xff]
    %v996 = vld [vmem:[#allocation8 + $0x5b0] sm:$0xff]
    %v997 = vld [vmem:[#allocation8 + $0x5b8] sm:$0xff]
    %v998 = vld [vmem:[#allocation8 + $0x5c0] sm:$0xff]
    %v999 = vld [vmem:[#allocation8 + $0x5c8] sm:$0xff]
    %v1000 = vld [vmem:[#allocation8 + $0x5d0] sm:$0xff]
    %v1001 = vld [vmem:[#allocation8 + $0x5d8] sm:$0xff]
    %v1002 = vld [vmem:[#allocation8 + $0x5e0] sm:$0xff]
    %v1003 = vld [vmem:[#allocation8 + $0x5e8] sm:$0xff]
    %v1004 = vld [vmem:[#allocation8 + $0x5f0] sm:$0xff]
    %v1005 = vld [vmem:[#allocation8 + $0x5f8] sm:$0xff]
    %v1006 = vld [vmem:[#allocation8 + $0x600] sm:$0xff]
    %v1007 = vld [vmem:[#allocation8 + $0x608] sm:$0xff]
    %v1008 = vld [vmem:[#allocation8 + $0x610] sm:$0xff]
    %v1009 = vld [vmem:[#allocation8 + $0x618] sm:$0xff]
    %v1010 = vld [vmem:[#allocation8 + $0x620] sm:$0xff]
    %v1011 = vld [vmem:[#allocation8 + $0x628] sm:$0xff]
    %v1012 = vld [vmem:[#allocation8 + $0x630] sm:$0xff]
    %v1013 = vld [vmem:[#allocation8 + $0x638] sm:$0xff]
    %v1014 = vld [vmem:[#allocation8 + $0x640] sm:$0xff]
    %v1015 = vld [vmem:[#allocation8 + $0x648] sm:$0xff]
    %v1016 = vld [vmem:[#allocation8 + $0x650] sm:$0xff]
    %v1017 = vld [vmem:[#allocation8 + $0x658] sm:$0xff]
    %v1018 = vld [vmem:[#allocation8 + $0x660] sm:$0xff]
    %v1019 = vld [vmem:[#allocation8 + $0x668] sm:$0xff]
    %v1020 = vld [vmem:[#allocation8 + $0x670] sm:$0xff]
    %v1021 = vld [vmem:[#allocation8 + $0x678] sm:$0xff]
    %v1022 = vld [vmem:[#allocation8 + $0x680] sm:$0xff]
    %v1023 = vld [vmem:[#allocation8 + $0x688] sm:$0xff]
    %v1024 = vld [vmem:[#allocation8 + $0x690] sm:$0xff]
    %v1025 = vld [vmem:[#allocation8 + $0x698] sm:$0xff]
    %v1026 = vld [vmem:[#allocation8 + $0x6a0] sm:$0xff]
    %v1027 = vld [vmem:[#allocation8 + $0x6a8] sm:$0xff]
    %v1028 = vld [vmem:[#allocation8 + $0x6b0] sm:$0xff]
    %v1029 = vld [vmem:[#allocation8 + $0x6b8] sm:$0xff]
    %v1030 = vld [vmem:[#allocation8 + $0x6c0] sm:$0xff]
    %v1031 = vld [vmem:[#allocation8 + $0x6c8] sm:$0xff]
    %v1032 = vld [vmem:[#allocation8 + $0x6d0] sm:$0xff]
    %v1033 = vld [vmem:[#allocation8 + $0x6d8] sm:$0xff]
    %v1034 = vld [vmem:[#allocation8 + $0x6e0] sm:$0xff]
    %v1035 = vld [vmem:[#allocation8 + $0x6e8] sm:$0xff]
    %v1036 = vld [vmem:[#allocation8 + $0x6f0] sm:$0xff]
    %v1037 = vld [vmem:[#allocation8 + $0x6f8] sm:$0xff]
    %v1038 = vld [vmem:[#allocation8 + $0x700] sm:$0xff]
    %v1039 = vld [vmem:[#allocation8 + $0x708] sm:$0xff]
    %v1040 = vld [vmem:[#allocation8 + $0x710] sm:$0xff]
    %v1041 = vld [vmem:[#allocation8 + $0x718] sm:$0xff]
    %v1042 = vld [vmem:[#allocation8 + $0x720] sm:$0xff]
    %v1043 = vld [vmem:[#allocation8 + $0x728] sm:$0xff]
    %v1044 = vld [vmem:[#allocation8 + $0x730] sm:$0xff]
    %v1045 = vld [vmem:[#allocation8 + $0x738] sm:$0xff]
    %v1046 = vld [vmem:[#allocation8 + $0x740] sm:$0xff]
    %v1047 = vld [vmem:[#allocation8 + $0x748] sm:$0xff]
    %v1048 = vld [vmem:[#allocation8 + $0x750] sm:$0xff]
    %v1049 = vld [vmem:[#allocation8 + $0x758] sm:$0xff]
    %v1050 = vld [vmem:[#allocation8 + $0x760] sm:$0xff]
    %v1051 = vld [vmem:[#allocation8 + $0x768] sm:$0xff]
    %v1052 = vld [vmem:[#allocation8 + $0x770] sm:$0xff]
    %v1053 = vld [vmem:[#allocation8 + $0x778] sm:$0xff]
    %v1054 = vld [vmem:[#allocation8 + $0x780] sm:$0xff]
    %v1055 = vld [vmem:[#allocation8 + $0x788] sm:$0xff]
    %v1056 = vld [vmem:[#allocation8 + $0x790] sm:$0xff]
    %v1057 = vld [vmem:[#allocation8 + $0x798] sm:$0xff]
    %v1058 = vld [vmem:[#allocation8 + $0x7a0] sm:$0xff]
    %v1059 = vld [vmem:[#allocation8 + $0x7a8] sm:$0xff]
    %v1060 = vld [vmem:[#allocation8 + $0x7b0] sm:$0xff]
    %v1061 = vld [vmem:[#allocation8 + $0x7b8] sm:$0xff]
    %v1062 = vld [vmem:[#allocation8 + $0x7c0] sm:$0xff]
    %v1063 = vld [vmem:[#allocation8 + $0x7c8] sm:$0xff]
    %v1064 = vld [vmem:[#allocation8 + $0x7d0] sm:$0xff]
    %v1065 = vld [vmem:[#allocation8 + $0x7d8] sm:$0xff]
    %v1066 = vld [vmem:[#allocation8 + $0x7e0] sm:$0xff]
    %v1067 = vld [vmem:[#allocation8 + $0x7e8] sm:$0xff]
    %v1068 = vld [vmem:[#allocation8 + $0x7f0] sm:$0xff]
    %v1069 = vld [vmem:[#allocation8 + $0x7f8] sm:$0xff]
    %v1071 = vsel %vm314, %v813, 0
    %1073 = vmatprep.subr.mxu0 0.0
    %1074 = vmatpush1.msra.mxu0 0.0
    %1075 = vmatprep.subr.mxu0 0.0
    %1076 = vmatpush1.msra.mxu0 0.0
    %1077 = vmatprep.subr.mxu0 0.0
    %1078 = vmatpush1.msra.mxu0 0.0
    %1079 = vmatprep.subr.mxu0 0.0
    %1080 = vmatpush1.msra.mxu0 0.0
    %1081 = vmatprep.subr.mxu0 0.0
    %1082 = vmatpush1.msra.mxu0 0.0
    %1083 = vmatprep.subr.mxu0 0.0
    %1084 = vmatpush1.msra.mxu0 0.0
    %1085 = vmatprep.subr.mxu0 0.0
    %1086 = vmatpush1.msra.mxu0 0.0
    %1087 = vmatprep.subr.mxu0 0.0
    %1088 = vmatpush1.msra.mxu0 0.0
    %1089 = vmatprep.subr.mxu0 %v1039
    %1090 = vmatpush1.msra.mxu0 %v1038
    %1091 = vmatprep.subr.mxu0 %v1007
    %1092 = vmatpush1.msra.mxu0 %v1006
    %1093 = vmatprep.subr.mxu0 %v975
    %1094 = vmatpush1.msra.mxu0 %v974
    %1095 = vmatprep.subr.mxu0 %v943
    %1096 = vmatpush1.msra.mxu0 %v942
    %1097 = vmatprep.subr.mxu0 %v911
    %1098 = vmatpush1.msra.mxu0 %v910
    %1099 = vmatprep.subr.mxu0 %v879
    %1100 = vmatpush1.msra.mxu0 %v878
    %1101 = vmatprep.subr.mxu0 %v847
    %1102 = vmatpush1.msra.mxu0 %v846
    %1103 = vmatprep.subr.mxu0 %v815
    %1104 = vmatpush1.msra.mxu0 %v814
    %1105 = vmatprep.subr.mxu0 0.0
    %1106 = vmatpush2.msra.mxu0 0.0
    %1107 = vmatprep.subr.mxu0 0.0
    %1108 = vmatpush2.msra.mxu0 0.0
    %1109 = vmatprep.subr.mxu0 0.0
    %1110 = vmatpush2.msra.mxu0 0.0
    %1111 = vmatprep.subr.mxu0 0.0
    %1112 = vmatpush2.msra.mxu0 0.0
    %1113 = vmatprep.subr.mxu0 0.0
    %1114 = vmatpush2.msra.mxu0 0.0
    %1115 = vmatprep.subr.mxu0 0.0
    %1116 = vmatpush2.msra.mxu0 0.0
    %1117 = vmatprep.subr.mxu0 0.0
    %1118 = vmatpush2.msra.mxu0 0.0
    %1119 = vmatprep.subr.mxu0 0.0
    %1120 = vmatpush2.msra.mxu0 0.0
    %1121 = vmatprep.subr.mxu0 0.0
    %1122 = vmatpush2.msra.mxu0 0.0
    %1123 = vmatprep.subr.mxu0 0.0
    %1124 = vmatpush2.msra.mxu0 0.0
    %1125 = vmatprep.subr.mxu0 0.0
    %1126 = vmatpush2.msra.mxu0 0.0
    %1127 = vmatprep.subr.mxu0 0.0
    %1128 = vmatpush2.msra.mxu0 0.0
    %1129 = vmatprep.subr.mxu0 0.0
    %1130 = vmatpush2.msra.mxu0 0.0
    %1131 = vmatprep.subr.mxu0 0.0
    %1132 = vmatpush2.msra.mxu0 0.0
    %1133 = vmatprep.subr.mxu0 0.0
    %1134 = vmatpush2.msra.mxu0 0.0
    %1135 = vmatprep.subr.mxu0 0.0
    %1136 = vmatpush2.msra.mxu0 0.0
    %1137 = vmatprep.mubr.f32.mxu0 0.0
    %1138 = vmatmul.mubr.f32.gmra.mxu0 %v1071
    %v1139 = vpop.f32.mrf.mxu0
    %v1140 = vadd.f32 0.0, %v1139
    %v1141 = vpop.f32.mrf.mxu0
    %v1142 = vadd.f32 0.0, %v1141
    %1143 = vdwg.mxu0
    %1144 = vmatprep.subr.mxu0 0.0
    %1145 = vmatpush1.msra.mxu0 0.0
    %1146 = vmatprep.subr.mxu0 0.0
    %1147 = vmatpush1.msra.mxu0 0.0
    %1148 = vmatprep.subr.mxu0 0.0
    %1149 = vmatpush1.msra.mxu0 0.0
    %1150 = vmatprep.subr.mxu0 0.0
    %1151 = vmatpush1.msra.mxu0 0.0
    %1152 = vmatprep.subr.mxu0 0.0
    %1153 = vmatpush1.msra.mxu0 0.0
    %1154 = vmatprep.subr.mxu0 0.0
    %1155 = vmatpush1.msra.mxu0 0.0
    %1156 = vmatprep.subr.mxu0 0.0
    %1157 = vmatpush1.msra.mxu0 0.0
    %1158 = vmatprep.subr.mxu0 0.0
    %1159 = vmatpush1.msra.mxu0 0.0
    %1160 = vmatprep.subr.mxu0 %v1041
    %1161 = vmatpush1.msra.mxu0 %v1040
    %1162 = vmatprep.subr.mxu0 %v1009
    %1163 = vmatpush1.msra.mxu0 %v1008
    %1164 = vmatprep.subr.mxu0 %v977
    %1165 = vmatpush1.msra.mxu0 %v976
    %1166 = vmatprep.subr.mxu0 %v945
    %1167 = vmatpush1.msra.mxu0 %v944
    %1168 = vmatprep.subr.mxu0 %v913
    %1169 = vmatpush1.msra.mxu0 %v912
    %1170 = vmatprep.subr.mxu0 %v881
    %1171 = vmatpush1.msra.mxu0 %v880
    %1172 = vmatprep.subr.mxu0 %v849
    %1173 = vmatpush1.msra.mxu0 %v848
    %1174 = vmatprep.subr.mxu0 %v817
    %1175 = vmatpush1.msra.mxu0 %v816
    %1176 = vmatprep.subr.mxu0 0.0
    %1177 = vmatpush2.msra.mxu0 0.0
    %1178 = vmatprep.subr.mxu0 0.0
    %1179 = vmatpush2.msra.mxu0 0.0
    %1180 = vmatprep.subr.mxu0 0.0
    %1181 = vmatpush2.msra.mxu0 0.0
    %1182 = vmatprep.subr.mxu0 0.0
    %1183 = vmatpush2.msra.mxu0 0.0
    %1184 = vmatprep.subr.mxu0 0.0
    %1185 = vmatpush2.msra.mxu0 0.0
    %1186 = vmatprep.subr.mxu0 0.0
    %1187 = vmatpush2.msra.mxu0 0.0
    %1188 = vmatprep.subr.mxu0 0.0
    %1189 = vmatpush2.msra.mxu0 0.0
    %1190 = vmatprep.subr.mxu0 0.0
    %1191 = vmatpush2.msra.mxu0 0.0
    %1192 = vmatprep.subr.mxu0 0.0
    %1193 = vmatpush2.msra.mxu0 0.0
    %1194 = vmatprep.subr.mxu0 0.0
    %1195 = vmatpush2.msra.mxu0 0.0
    %1196 = vmatprep.subr.mxu0 0.0
    %1197 = vmatpush2.msra.mxu0 0.0
    %1198 = vmatprep.subr.mxu0 0.0
    %1199 = vmatpush2.msra.mxu0 0.0
    %1200 = vmatprep.subr.mxu0 0.0
    %1201 = vmatpush2.msra.mxu0 0.0
    %1202 = vmatprep.subr.mxu0 0.0
    %1203 = vmatpush2.msra.mxu0 0.0
    %1204 = vmatprep.subr.mxu0 0.0
    %1205 = vmatpush2.msra.mxu0 0.0
    %1206 = vmatprep.subr.mxu0 0.0
    %1207 = vmatpush2.msra.mxu0 0.0
    %1208 = vmatprep.mubr.f32.mxu0 0.0
    %1209 = vmatmul.mubr.f32.gmra.mxu0 %v1071
    %v1210 = vpop.f32.mrf.mxu0
    %v1211 = vadd.f32 0.0, %v1210
    %v1212 = vpop.f32.mrf.mxu0
    %v1213 = vadd.f32 0.0, %v1212
    %1214 = vdwg.mxu0
    %1215 = vmatprep.subr.mxu0 0.0
    %1216 = vmatpush1.msra.mxu0 0.0
    %1217 = vmatprep.subr.mxu0 0.0
    %1218 = vmatpush1.msra.mxu0 0.0
    %1219 = vmatprep.subr.mxu0 0.0
    %1220 = vmatpush1.msra.mxu0 0.0
    %1221 = vmatprep.subr.mxu0 0.0
    %1222 = vmatpush1.msra.mxu0 0.0
    %1223 = vmatprep.subr.mxu0 0.0
    %1224 = vmatpush1.msra.mxu0 0.0
    %1225 = vmatprep.subr.mxu0 0.0
    %1226 = vmatpush1.msra.mxu0 0.0
    %1227 = vmatprep.subr.mxu0 0.0
    %1228 = vmatpush1.msra.mxu0 0.0
    %1229 = vmatprep.subr.mxu0 0.0
    %1230 = vmatpush1.msra.mxu0 0.0
    %1231 = vmatprep.subr.mxu0 %v1043
    %1232 = vmatpush1.msra.mxu0 %v1042
    %1233 = vmatprep.subr.mxu0 %v1011
    %1234 = vmatpush1.msra.mxu0 %v1010
    %1235 = vmatprep.subr.mxu0 %v979
    %1236 = vmatpush1.msra.mxu0 %v978
    %1237 = vmatprep.subr.mxu0 %v947
    %1238 = vmatpush1.msra.mxu0 %v946
    %1239 = vmatprep.subr.mxu0 %v915
    %1240 = vmatpush1.msra.mxu0 %v914
    %1241 = vmatprep.subr.mxu0 %v883
    %1242 = vmatpush1.msra.mxu0 %v882
    %1243 = vmatprep.subr.mxu0 %v851
    %1244 = vmatpush1.msra.mxu0 %v850
    %1245 = vmatprep.subr.mxu0 %v819
    %1246 = vmatpush1.msra.mxu0 %v818
    %1247 = vmatprep.subr.mxu0 0.0
    %1248 = vmatpush2.msra.mxu0 0.0
    %1249 = vmatprep.subr.mxu0 0.0
    %1250 = vmatpush2.msra.mxu0 0.0
    %1251 = vmatprep.subr.mxu0 0.0
    %1252 = vmatpush2.msra.mxu0 0.0
    %1253 = vmatprep.subr.mxu0 0.0
    %1254 = vmatpush2.msra.mxu0 0.0
    %1255 = vmatprep.subr.mxu0 0.0
    %1256 = vmatpush2.msra.mxu0 0.0
    %1257 = vmatprep.subr.mxu0 0.0
    %1258 = vmatpush2.msra.mxu0 0.0
    %1259 = vmatprep.subr.mxu0 0.0
    %1260 = vmatpush2.msra.mxu0 0.0
    %1261 = vmatprep.subr.mxu0 0.0
    %1262 = vmatpush2.msra.mxu0 0.0
    %1263 = vmatprep.subr.mxu0 0.0
    %1264 = vmatpush2.msra.mxu0 0.0
    %1265 = vmatprep.subr.mxu0 0.0
    %1266 = vmatpush2.msra.mxu0 0.0
    %1267 = vmatprep.subr.mxu0 0.0
    %1268 = vmatpush2.msra.mxu0 0.0
    %1269 = vmatprep.subr.mxu0 0.0
    %1270 = vmatpush2.msra.mxu0 0.0
    %1271 = vmatprep.subr.mxu0 0.0
    %1272 = vmatpush2.msra.mxu0 0.0
    %1273 = vmatprep.subr.mxu0 0.0
    %1274 = vmatpush2.msra.mxu0 0.0
    %1275 = vmatprep.subr.mxu0 0.0
    %1276 = vmatpush2.msra.mxu0 0.0
    %1277 = vmatprep.subr.mxu0 0.0
    %1278 = vmatpush2.msra.mxu0 0.0
    %1279 = vmatprep.mubr.f32.mxu0 0.0
    %1280 = vmatmul.mubr.f32.gmra.mxu0 %v1071
    %v1281 = vpop.f32.mrf.mxu0
    %v1282 = vadd.f32 0.0, %v1281
    %v1283 = vpop.f32.mrf.mxu0
    %v1284 = vadd.f32 0.0, %v1283
    %1285 = vdwg.mxu0
    %1286 = vmatprep.subr.mxu0 0.0
    %1287 = vmatpush1.msra.mxu0 0.0
    %1288 = vmatprep.subr.mxu0 0.0
    %1289 = vmatpush1.msra.mxu0 0.0
    %1290 = vmatprep.subr.mxu0 0.0
    %1291 = vmatpush1.msra.mxu0 0.0
    %1292 = vmatprep.subr.mxu0 0.0
    %1293 = vmatpush1.msra.mxu0 0.0
    %1294 = vmatprep.subr.mxu0 0.0
    %1295 = vmatpush1.msra.mxu0 0.0
    %1296 = vmatprep.subr.mxu0 0.0
    %1297 = vmatpush1.msra.mxu0 0.0
    %1298 = vmatprep.subr.mxu0 0.0
    %1299 = vmatpush1.msra.mxu0 0.0
    %1300 = vmatprep.subr.mxu0 0.0
    %1301 = vmatpush1.msra.mxu0 0.0
    %1302 = vmatprep.subr.mxu0 %v1045
    %1303 = vmatpush1.msra.mxu0 %v1044
    %1304 = vmatprep.subr.mxu0 %v1013
    %1305 = vmatpush1.msra.mxu0 %v1012
    %1306 = vmatprep.subr.mxu0 %v981
    %1307 = vmatpush1.msra.mxu0 %v980
    %1308 = vmatprep.subr.mxu0 %v949
    %1309 = vmatpush1.msra.mxu0 %v948
    %1310 = vmatprep.subr.mxu0 %v917
    %1311 = vmatpush1.msra.mxu0 %v916
    %1312 = vmatprep.subr.mxu0 %v885
    %1313 = vmatpush1.msra.mxu0 %v884
    %1314 = vmatprep.subr.mxu0 %v853
    %1315 = vmatpush1.msra.mxu0 %v852
    %1316 = vmatprep.subr.mxu0 %v821
    %1317 = vmatpush1.msra.mxu0 %v820
    %1318 = vmatprep.subr.mxu0 0.0
    %1319 = vmatpush2.msra.mxu0 0.0
    %1320 = vmatprep.subr.mxu0 0.0
    %1321 = vmatpush2.msra.mxu0 0.0
    %1322 = vmatprep.subr.mxu0 0.0
    %1323 = vmatpush2.msra.mxu0 0.0
    %1324 = vmatprep.subr.mxu0 0.0
    %1325 = vmatpush2.msra.mxu0 0.0
    %1326 = vmatprep.subr.mxu0 0.0
    %1327 = vmatpush2.msra.mxu0 0.0
    %1328 = vmatprep.subr.mxu0 0.0
    %1329 = vmatpush2.msra.mxu0 0.0
    %1330 = vmatprep.subr.mxu0 0.0
    %1331 = vmatpush2.msra.mxu0 0.0
    %1332 = vmatprep.subr.mxu0 0.0
    %1333 = vmatpush2.msra.mxu0 0.0
    %1334 = vmatprep.subr.mxu0 0.0
    %1335 = vmatpush2.msra.mxu0 0.0
    %1336 = vmatprep.subr.mxu0 0.0
    %1337 = vmatpush2.msra.mxu0 0.0
    %1338 = vmatprep.subr.mxu0 0.0
    %1339 = vmatpush2.msra.mxu0 0.0
    %1340 = vmatprep.subr.mxu0 0.0
    %1341 = vmatpush2.msra.mxu0 0.0
    %1342 = vmatprep.subr.mxu0 0.0
    %1343 = vmatpush2.msra.mxu0 0.0
    %1344 = vmatprep.subr.mxu0 0.0
    %1345 = vmatpush2.msra.mxu0 0.0
    %1346 = vmatprep.subr.mxu0 0.0
    %1347 = vmatpush2.msra.mxu0 0.0
    %1348 = vmatprep.subr.mxu0 0.0
    %1349 = vmatpush2.msra.mxu0 0.0
    %1350 = vmatprep.mubr.f32.mxu0 0.0
    %1351 = vmatmul.mubr.f32.gmra.mxu0 %v1071
    %v1352 = vpop.f32.mrf.mxu0
    %v1353 = vadd.f32 0.0, %v1352
    %v1354 = vpop.f32.mrf.mxu0
    %v1355 = vadd.f32 0.0, %v1354
    %1356 = vdwg.mxu0
    %1357 = vmatprep.subr.mxu0 0.0
    %1358 = vmatpush1.msra.mxu0 0.0
    %1359 = vmatprep.subr.mxu0 0.0
    %1360 = vmatpush1.msra.mxu0 0.0
    %1361 = vmatprep.subr.mxu0 0.0
    %1362 = vmatpush1.msra.mxu0 0.0
    %1363 = vmatprep.subr.mxu0 0.0
    %1364 = vmatpush1.msra.mxu0 0.0
    %1365 = vmatprep.subr.mxu0 0.0
    %1366 = vmatpush1.msra.mxu0 0.0
    %1367 = vmatprep.subr.mxu0 0.0
    %1368 = vmatpush1.msra.mxu0 0.0
    %1369 = vmatprep.subr.mxu0 0.0
    %1370 = vmatpush1.msra.mxu0 0.0
    %1371 = vmatprep.subr.mxu0 0.0
    %1372 = vmatpush1.msra.mxu0 0.0
    %1373 = vmatprep.subr.mxu0 %v1047
    %1374 = vmatpush1.msra.mxu0 %v1046
    %1375 = vmatprep.subr.mxu0 %v1015
    %1376 = vmatpush1.msra.mxu0 %v1014
    %1377 = vmatprep.subr.mxu0 %v983
    %1378 = vmatpush1.msra.mxu0 %v982
    %1379 = vmatprep.subr.mxu0 %v951
    %1380 = vmatpush1.msra.mxu0 %v950
    %1381 = vmatprep.subr.mxu0 %v919
    %1382 = vmatpush1.msra.mxu0 %v918
    %1383 = vmatprep.subr.mxu0 %v887
    %1384 = vmatpush1.msra.mxu0 %v886
    %1385 = vmatprep.subr.mxu0 %v855
    %1386 = vmatpush1.msra.mxu0 %v854
    %1387 = vmatprep.subr.mxu0 %v823
    %1388 = vmatpush1.msra.mxu0 %v822
    %1389 = vmatprep.subr.mxu0 0.0
    %1390 = vmatpush2.msra.mxu0 0.0
    %1391 = vmatprep.subr.mxu0 0.0
    %1392 = vmatpush2.msra.mxu0 0.0
    %1393 = vmatprep.subr.mxu0 0.0
    %1394 = vmatpush2.msra.mxu0 0.0
    %1395 = vmatprep.subr.mxu0 0.0
    %1396 = vmatpush2.msra.mxu0 0.0
    %1397 = vmatprep.subr.mxu0 0.0
    %1398 = vmatpush2.msra.mxu0 0.0
    %1399 = vmatprep.subr.mxu0 0.0
    %1400 = vmatpush2.msra.mxu0 0.0
    %1401 = vmatprep.subr.mxu0 0.0
    %1402 = vmatpush2.msra.mxu0 0.0
    %1403 = vmatprep.subr.mxu0 0.0
    %1404 = vmatpush2.msra.mxu0 0.0
    %1405 = vmatprep.subr.mxu0 0.0
    %1406 = vmatpush2.msra.mxu0 0.0
    %1407 = vmatprep.subr.mxu0 0.0
    %1408 = vmatpush2.msra.mxu0 0.0
    %1409 = vmatprep.subr.mxu0 0.0
    %1410 = vmatpush2.msra.mxu0 0.0
    %1411 = vmatprep.subr.mxu0 0.0
    %1412 = vmatpush2.msra.mxu0 0.0
    %1413 = vmatprep.subr.mxu0 0.0
    %1414 = vmatpush2.msra.mxu0 0.0
    %1415 = vmatprep.subr.mxu0 0.0
    %1416 = vmatpush2.msra.mxu0 0.0
    %1417 = vmatprep.subr.mxu0 0.0
    %1418 = vmatpush2.msra.mxu0 0.0
    %1419 = vmatprep.subr.mxu0 0.0
    %1420 = vmatpush2.msra.mxu0 0.0
    %1421 = vmatprep.mubr.f32.mxu0 0.0
    %1422 = vmatmul.mubr.f32.gmra.mxu0 %v1071
    %v1423 = vpop.f32.mrf.mxu0
    %v1424 = vadd.f32 0.0, %v1423
    %v1425 = vpop.f32.mrf.mxu0
    %v1426 = vadd.f32 0.0, %v1425
    %1427 = vdwg.mxu0
    %1428 = vmatprep.subr.mxu0 0.0
    %1429 = vmatpush1.msra.mxu0 0.0
    %1430 = vmatprep.subr.mxu0 0.0
    %1431 = vmatpush1.msra.mxu0 0.0
    %1432 = vmatprep.subr.mxu0 0.0
    %1433 = vmatpush1.msra.mxu0 0.0
    %1434 = vmatprep.subr.mxu0 0.0
    %1435 = vmatpush1.msra.mxu0 0.0
    %1436 = vmatprep.subr.mxu0 0.0
    %1437 = vmatpush1.msra.mxu0 0.0
    %1438 = vmatprep.subr.mxu0 0.0
    %1439 = vmatpush1.msra.mxu0 0.0
    %1440 = vmatprep.subr.mxu0 0.0
    %1441 = vmatpush1.msra.mxu0 0.0
    %1442 = vmatprep.subr.mxu0 0.0
    %1443 = vmatpush1.msra.mxu0 0.0
    %1444 = vmatprep.subr.mxu0 %v1049
    %1445 = vmatpush1.msra.mxu0 %v1048
    %1446 = vmatprep.subr.mxu0 %v1017
    %1447 = vmatpush1.msra.mxu0 %v1016
    %1448 = vmatprep.subr.mxu0 %v985
    %1449 = vmatpush1.msra.mxu0 %v984
    %1450 = vmatprep.subr.mxu0 %v953
    %1451 = vmatpush1.msra.mxu0 %v952
    %1452 = vmatprep.subr.mxu0 %v921
    %1453 = vmatpush1.msra.mxu0 %v920
    %1454 = vmatprep.subr.mxu0 %v889
    %1455 = vmatpush1.msra.mxu0 %v888
    %1456 = vmatprep.subr.mxu0 %v857
    %1457 = vmatpush1.msra.mxu0 %v856
    %1458 = vmatprep.subr.mxu0 %v825
    %1459 = vmatpush1.msra.mxu0 %v824
    %1460 = vmatprep.subr.mxu0 0.0
    %1461 = vmatpush2.msra.mxu0 0.0
    %1462 = vmatprep.subr.mxu0 0.0
    %1463 = vmatpush2.msra.mxu0 0.0
    %1464 = vmatprep.subr.mxu0 0.0
    %1465 = vmatpush2.msra.mxu0 0.0
    %1466 = vmatprep.subr.mxu0 0.0
    %1467 = vmatpush2.msra.mxu0 0.0
    %1468 = vmatprep.subr.mxu0 0.0
    %1469 = vmatpush2.msra.mxu0 0.0
    %1470 = vmatprep.subr.mxu0 0.0
    %1471 = vmatpush2.msra.mxu0 0.0
    %1472 = vmatprep.subr.mxu0 0.0
    %1473 = vmatpush2.msra.mxu0 0.0
    %1474 = vmatprep.subr.mxu0 0.0
    %1475 = vmatpush2.msra.mxu0 0.0
    %1476 = vmatprep.subr.mxu0 0.0
    %1477 = vmatpush2.msra.mxu0 0.0
    %1478 = vmatprep.subr.mxu0 0.0
    %1479 = vmatpush2.msra.mxu0 0.0
    %1480 = vmatprep.subr.mxu0 0.0
    %1481 = vmatpush2.msra.mxu0 0.0
    %1482 = vmatprep.subr.mxu0 0.0
    %1483 = vmatpush2.msra.mxu0 0.0
    %1484 = vmatprep.subr.mxu0 0.0
    %1485 = vmatpush2.msra.mxu0 0.0
    %1486 = vmatprep.subr.mxu0 0.0
    %1487 = vmatpush2.msra.mxu0 0.0
    %1488 = vmatprep.subr.mxu0 0.0
    %1489 = vmatpush2.msra.mxu0 0.0
    %1490 = vmatprep.subr.mxu0 0.0
    %1491 = vmatpush2.msra.mxu0 0.0
    %1492 = vmatprep.mubr.f32.mxu0 0.0
    %1493 = vmatmul.mubr.f32.gmra.mxu0 %v1071
    %v1494 = vpop.f32.mrf.mxu0
    %v1495 = vadd.f32 0.0, %v1494
    %v1496 = vpop.f32.mrf.mxu0
    %v1497 = vadd.f32 0.0, %v1496
    %1498 = vdwg.mxu0
    %1499 = vmatprep.subr.mxu0 0.0
    %1500 = vmatpush1.msra.mxu0 0.0
    %1501 = vmatprep.subr.mxu0 0.0
    %1502 = vmatpush1.msra.mxu0 0.0
    %1503 = vmatprep.subr.mxu0 0.0
    %1504 = vmatpush1.msra.mxu0 0.0
    %1505 = vmatprep.subr.mxu0 0.0
    %1506 = vmatpush1.msra.mxu0 0.0
    %1507 = vmatprep.subr.mxu0 0.0
    %1508 = vmatpush1.msra.mxu0 0.0
    %1509 = vmatprep.subr.mxu0 0.0
    %1510 = vmatpush1.msra.mxu0 0.0
    %1511 = vmatprep.subr.mxu0 0.0
    %1512 = vmatpush1.msra.mxu0 0.0
    %1513 = vmatprep.subr.mxu0 0.0
    %1514 = vmatpush1.msra.mxu0 0.0
    %1515 = vmatprep.subr.mxu0 %v1051
    %1516 = vmatpush1.msra.mxu0 %v1050
    %1517 = vmatprep.subr.mxu0 %v1019
    %1518 = vmatpush1.msra.mxu0 %v1018
    %1519 = vmatprep.subr.mxu0 %v987
    %1520 = vmatpush1.msra.mxu0 %v986
    %1521 = vmatprep.subr.mxu0 %v955
    %1522 = vmatpush1.msra.mxu0 %v954
    %1523 = vmatprep.subr.mxu0 %v923
    %1524 = vmatpush1.msra.mxu0 %v922
    %1525 = vmatprep.subr.mxu0 %v891
    %1526 = vmatpush1.msra.mxu0 %v890
    %1527 = vmatprep.subr.mxu0 %v859
    %1528 = vmatpush1.msra.mxu0 %v858
    %1529 = vmatprep.subr.mxu0 %v827
    %1530 = vmatpush1.msra.mxu0 %v826
    %1531 = vmatprep.subr.mxu0 0.0
    %1532 = vmatpush2.msra.mxu0 0.0
    %1533 = vmatprep.subr.mxu0 0.0
    %1534 = vmatpush2.msra.mxu0 0.0
    %1535 = vmatprep.subr.mxu0 0.0
    %1536 = vmatpush2.msra.mxu0 0.0
    %1537 = vmatprep.subr.mxu0 0.0
    %1538 = vmatpush2.msra.mxu0 0.0
    %1539 = vmatprep.subr.mxu0 0.0
    %1540 = vmatpush2.msra.mxu0 0.0
    %1541 = vmatprep.subr.mxu0 0.0
    %1542 = vmatpush2.msra.mxu0 0.0
    %1543 = vmatprep.subr.mxu0 0.0
    %1544 = vmatpush2.msra.mxu0 0.0
    %1545 = vmatprep.subr.mxu0 0.0
    %1546 = vmatpush2.msra.mxu0 0.0
    %1547 = vmatprep.subr.mxu0 0.0
    %1548 = vmatpush2.msra.mxu0 0.0
    %1549 = vmatprep.subr.mxu0 0.0
    %1550 = vmatpush2.msra.mxu0 0.0
    %1551 = vmatprep.subr.mxu0 0.0
    %1552 = vmatpush2.msra.mxu0 0.0
    %1553 = vmatprep.subr.mxu0 0.0
    %1554 = vmatpush2.msra.mxu0 0.0
    %1555 = vmatprep.subr.mxu0 0.0
    %1556 = vmatpush2.msra.mxu0 0.0
    %1557 = vmatprep.subr.mxu0 0.0
    %1558 = vmatpush2.msra.mxu0 0.0
    %1559 = vmatprep.subr.mxu0 0.0
    %1560 = vmatpush2.msra.mxu0 0.0
    %1561 = vmatprep.subr.mxu0 0.0
    %1562 = vmatpush2.msra.mxu0 0.0
    %1563 = vmatprep.mubr.f32.mxu0 0.0
    %1564 = vmatmul.mubr.f32.gmra.mxu0 %v1071
    %v1565 = vpop.f32.mrf.mxu0
    %v1566 = vadd.f32 0.0, %v1565
    %v1567 = vpop.f32.mrf.mxu0
    %v1568 = vadd.f32 0.0, %v1567
    %1569 = vdwg.mxu0
    %1570 = vmatprep.subr.mxu0 0.0
    %1571 = vmatpush1.msra.mxu0 0.0
    %1572 = vmatprep.subr.mxu0 0.0
    %1573 = vmatpush1.msra.mxu0 0.0
    %1574 = vmatprep.subr.mxu0 0.0
    %1575 = vmatpush1.msra.mxu0 0.0
    %1576 = vmatprep.subr.mxu0 0.0
    %1577 = vmatpush1.msra.mxu0 0.0
    %1578 = vmatprep.subr.mxu0 0.0
    %1579 = vmatpush1.msra.mxu0 0.0
    %1580 = vmatprep.subr.mxu0 0.0
    %1581 = vmatpush1.msra.mxu0 0.0
    %1582 = vmatprep.subr.mxu0 0.0
    %1583 = vmatpush1.msra.mxu0 0.0
    %1584 = vmatprep.subr.mxu0 0.0
    %1585 = vmatpush1.msra.mxu0 0.0
    %1586 = vmatprep.subr.mxu0 %v1053
    %1587 = vmatpush1.msra.mxu0 %v1052
    %1588 = vmatprep.subr.mxu0 %v1021
    %1589 = vmatpush1.msra.mxu0 %v1020
    %1590 = vmatprep.subr.mxu0 %v989
    %1591 = vmatpush1.msra.mxu0 %v988
    %1592 = vmatprep.subr.mxu0 %v957
    %1593 = vmatpush1.msra.mxu0 %v956
    %1594 = vmatprep.subr.mxu0 %v925
    %1595 = vmatpush1.msra.mxu0 %v924
    %1596 = vmatprep.subr.mxu0 %v893
    %1597 = vmatpush1.msra.mxu0 %v892
    %1598 = vmatprep.subr.mxu0 %v861
    %1599 = vmatpush1.msra.mxu0 %v860
    %1600 = vmatprep.subr.mxu0 %v829
    %1601 = vmatpush1.msra.mxu0 %v828
    %1602 = vmatprep.subr.mxu0 0.0
    %1603 = vmatpush2.msra.mxu0 0.0
    %1604 = vmatprep.subr.mxu0 0.0
    %1605 = vmatpush2.msra.mxu0 0.0
    %1606 = vmatprep.subr.mxu0 0.0
    %1607 = vmatpush2.msra.mxu0 0.0
    %1608 = vmatprep.subr.mxu0 0.0
    %1609 = vmatpush2.msra.mxu0 0.0
    %1610 = vmatprep.subr.mxu0 0.0
    %1611 = vmatpush2.msra.mxu0 0.0
    %1612 = vmatprep.subr.mxu0 0.0
    %1613 = vmatpush2.msra.mxu0 0.0
    %1614 = vmatprep.subr.mxu0 0.0
    %1615 = vmatpush2.msra.mxu0 0.0
    %1616 = vmatprep.subr.mxu0 0.0
    %1617 = vmatpush2.msra.mxu0 0.0
    %1618 = vmatprep.subr.mxu0 0.0
    %1619 = vmatpush2.msra.mxu0 0.0
    %1620 = vmatprep.subr.mxu0 0.0
    %1621 = vmatpush2.msra.mxu0 0.0
    %1622 = vmatprep.subr.mxu0 0.0
    %1623 = vmatpush2.msra.mxu0 0.0
    %1624 = vmatprep.subr.mxu0 0.0
    %1625 = vmatpush2.msra.mxu0 0.0
    %1626 = vmatprep.subr.mxu0 0.0
    %1627 = vmatpush2.msra.mxu0 0.0
    %1628 = vmatprep.subr.mxu0 0.0
    %1629 = vmatpush2.msra.mxu0 0.0
    %1630 = vmatprep.subr.mxu0 0.0
    %1631 = vmatpush2.msra.mxu0 0.0
    %1632 = vmatprep.subr.mxu0 0.0
    %1633 = vmatpush2.msra.mxu0 0.0
    %1634 = vmatprep.mubr.f32.mxu0 0.0
    %1635 = vmatmul.mubr.f32.gmra.mxu0 %v1071
    %v1636 = vpop.f32.mrf.mxu0
    %v1637 = vadd.f32 0.0, %v1636
    %v1638 = vpop.f32.mrf.mxu0
    %v1639 = vadd.f32 0.0, %v1638
    %1640 = vdwg.mxu0
    %1641 = vmatprep.subr.mxu0 0.0
    %1642 = vmatpush1.msra.mxu0 0.0
    %1643 = vmatprep.subr.mxu0 0.0
    %1644 = vmatpush1.msra.mxu0 0.0
    %1645 = vmatprep.subr.mxu0 0.0
    %1646 = vmatpush1.msra.mxu0 0.0
    %1647 = vmatprep.subr.mxu0 0.0
    %1648 = vmatpush1.msra.mxu0 0.0
    %1649 = vmatprep.subr.mxu0 0.0
    %1650 = vmatpush1.msra.mxu0 0.0
    %1651 = vmatprep.subr.mxu0 0.0
    %1652 = vmatpush1.msra.mxu0 0.0
    %1653 = vmatprep.subr.mxu0 0.0
    %1654 = vmatpush1.msra.mxu0 0.0
    %1655 = vmatprep.subr.mxu0 0.0
    %1656 = vmatpush1.msra.mxu0 0.0
    %1657 = vmatprep.subr.mxu0 %v1055
    %1658 = vmatpush1.msra.mxu0 %v1054
    %1659 = vmatprep.subr.mxu0 %v1023
    %1660 = vmatpush1.msra.mxu0 %v1022
    %1661 = vmatprep.subr.mxu0 %v991
    %1662 = vmatpush1.msra.mxu0 %v990
    %1663 = vmatprep.subr.mxu0 %v959
    %1664 = vmatpush1.msra.mxu0 %v958
    %1665 = vmatprep.subr.mxu0 %v927
    %1666 = vmatpush1.msra.mxu0 %v926
    %1667 = vmatprep.subr.mxu0 %v895
    %1668 = vmatpush1.msra.mxu0 %v894
    %1669 = vmatprep.subr.mxu0 %v863
    %1670 = vmatpush1.msra.mxu0 %v862
    %1671 = vmatprep.subr.mxu0 %v831
    %1672 = vmatpush1.msra.mxu0 %v830
    %1673 = vmatprep.subr.mxu0 0.0
    %1674 = vmatpush2.msra.mxu0 0.0
    %1675 = vmatprep.subr.mxu0 0.0
    %1676 = vmatpush2.msra.mxu0 0.0
    %1677 = vmatprep.subr.mxu0 0.0
    %1678 = vmatpush2.msra.mxu0 0.0
    %1679 = vmatprep.subr.mxu0 0.0
    %1680 = vmatpush2.msra.mxu0 0.0
    %1681 = vmatprep.subr.mxu0 0.0
    %1682 = vmatpush2.msra.mxu0 0.0
    %1683 = vmatprep.subr.mxu0 0.0
    %1684 = vmatpush2.msra.mxu0 0.0
    %1685 = vmatprep.subr.mxu0 0.0
    %1686 = vmatpush2.msra.mxu0 0.0
    %1687 = vmatprep.subr.mxu0 0.0
    %1688 = vmatpush2.msra.mxu0 0.0
    %1689 = vmatprep.subr.mxu0 0.0
    %1690 = vmatpush2.msra.mxu0 0.0
    %1691 = vmatprep.subr.mxu0 0.0
    %1692 = vmatpush2.msra.mxu0 0.0
    %1693 = vmatprep.subr.mxu0 0.0
    %1694 = vmatpush2.msra.mxu0 0.0
    %1695 = vmatprep.subr.mxu0 0.0
    %1696 = vmatpush2.msra.mxu0 0.0
    %1697 = vmatprep.subr.mxu0 0.0
    %1698 = vmatpush2.msra.mxu0 0.0
    %1699 = vmatprep.subr.mxu0 0.0
    %1700 = vmatpush2.msra.mxu0 0.0
    %1701 = vmatprep.subr.mxu0 0.0
    %1702 = vmatpush2.msra.mxu0 0.0
    %1703 = vmatprep.subr.mxu0 0.0
    %1704 = vmatpush2.msra.mxu0 0.0
    %1705 = vmatprep.mubr.f32.mxu0 0.0
    %1706 = vmatmul.mubr.f32.gmra.mxu0 %v1071
    %v1707 = vpop.f32.mrf.mxu0
    %v1708 = vadd.f32 0.0, %v1707
    %v1709 = vpop.f32.mrf.mxu0
    %v1710 = vadd.f32 0.0, %v1709
    %1711 = vdwg.mxu0
    %1712 = vmatprep.subr.mxu0 0.0
    %1713 = vmatpush1.msra.mxu0 0.0
    %1714 = vmatprep.subr.mxu0 0.0
    %1715 = vmatpush1.msra.mxu0 0.0
    %1716 = vmatprep.subr.mxu0 0.0
    %1717 = vmatpush1.msra.mxu0 0.0
    %1718 = vmatprep.subr.mxu0 0.0
    %1719 = vmatpush1.msra.mxu0 0.0
    %1720 = vmatprep.subr.mxu0 0.0
    %1721 = vmatpush1.msra.mxu0 0.0
    %1722 = vmatprep.subr.mxu0 0.0
    %1723 = vmatpush1.msra.mxu0 0.0
    %1724 = vmatprep.subr.mxu0 0.0
    %1725 = vmatpush1.msra.mxu0 0.0
    %1726 = vmatprep.subr.mxu0 0.0
    %1727 = vmatpush1.msra.mxu0 0.0
    %1728 = vmatprep.subr.mxu0 %v1057
    %1729 = vmatpush1.msra.mxu0 %v1056
    %1730 = vmatprep.subr.mxu0 %v1025
    %1731 = vmatpush1.msra.mxu0 %v1024
    %1732 = vmatprep.subr.mxu0 %v993
    %1733 = vmatpush1.msra.mxu0 %v992
    %1734 = vmatprep.subr.mxu0 %v961
    %1735 = vmatpush1.msra.mxu0 %v960
    %1736 = vmatprep.subr.mxu0 %v929
    %1737 = vmatpush1.msra.mxu0 %v928
    %1738 = vmatprep.subr.mxu0 %v897
    %1739 = vmatpush1.msra.mxu0 %v896
    %1740 = vmatprep.subr.mxu0 %v865
    %1741 = vmatpush1.msra.mxu0 %v864
    %1742 = vmatprep.subr.mxu0 %v833
    %1743 = vmatpush1.msra.mxu0 %v832
    %1744 = vmatprep.subr.mxu0 0.0
    %1745 = vmatpush2.msra.mxu0 0.0
    %1746 = vmatprep.subr.mxu0 0.0
    %1747 = vmatpush2.msra.mxu0 0.0
    %1748 = vmatprep.subr.mxu0 0.0
    %1749 = vmatpush2.msra.mxu0 0.0
    %1750 = vmatprep.subr.mxu0 0.0
    %1751 = vmatpush2.msra.mxu0 0.0
    %1752 = vmatprep.subr.mxu0 0.0
    %1753 = vmatpush2.msra.mxu0 0.0
    %1754 = vmatprep.subr.mxu0 0.0
    %1755 = vmatpush2.msra.mxu0 0.0
    %1756 = vmatprep.subr.mxu0 0.0
    %1757 = vmatpush2.msra.mxu0 0.0
    %1758 = vmatprep.subr.mxu0 0.0
    %1759 = vmatpush2.msra.mxu0 0.0
    %1760 = vmatprep.subr.mxu0 0.0
    %1761 = vmatpush2.msra.mxu0 0.0
    %1762 = vmatprep.subr.mxu0 0.0
    %1763 = vmatpush2.msra.mxu0 0.0
    %1764 = vmatprep.subr.mxu0 0.0
    %1765 = vmatpush2.msra.mxu0 0.0
    %1766 = vmatprep.subr.mxu0 0.0
    %1767 = vmatpush2.msra.mxu0 0.0
    %1768 = vmatprep.subr.mxu0 0.0
    %1769 = vmatpush2.msra.mxu0 0.0
    %1770 = vmatprep.subr.mxu0 0.0
    %1771 = vmatpush2.msra.mxu0 0.0
    %1772 = vmatprep.subr.mxu0 0.0
    %1773 = vmatpush2.msra.mxu0 0.0
    %1774 = vmatprep.subr.mxu0 0.0
    %1775 = vmatpush2.msra.mxu0 0.0
    %1776 = vmatprep.mubr.f32.mxu0 0.0
    %1777 = vmatmul.mubr.f32.gmra.mxu0 %v1071
    %v1778 = vpop.f32.mrf.mxu0
    %v1779 = vadd.f32 0.0, %v1778
    %v1780 = vpop.f32.mrf.mxu0
    %v1781 = vadd.f32 0.0, %v1780
    %1782 = vdwg.mxu0
    %1783 = vmatprep.subr.mxu0 0.0
    %1784 = vmatpush1.msra.mxu0 0.0
    %1785 = vmatprep.subr.mxu0 0.0
    %1786 = vmatpush1.msra.mxu0 0.0
    %1787 = vmatprep.subr.mxu0 0.0
    %1788 = vmatpush1.msra.mxu0 0.0
    %1789 = vmatprep.subr.mxu0 0.0
    %1790 = vmatpush1.msra.mxu0 0.0
    %1791 = vmatprep.subr.mxu0 0.0
    %1792 = vmatpush1.msra.mxu0 0.0
    %1793 = vmatprep.subr.mxu0 0.0
    %1794 = vmatpush1.msra.mxu0 0.0
    %1795 = vmatprep.subr.mxu0 0.0
    %1796 = vmatpush1.msra.mxu0 0.0
    %1797 = vmatprep.subr.mxu0 0.0
    %1798 = vmatpush1.msra.mxu0 0.0
    %1799 = vmatprep.subr.mxu0 %v1059
    %1800 = vmatpush1.msra.mxu0 %v1058
    %1801 = vmatprep.subr.mxu0 %v1027
    %1802 = vmatpush1.msra.mxu0 %v1026
    %1803 = vmatprep.subr.mxu0 %v995
    %1804 = vmatpush1.msra.mxu0 %v994
    %1805 = vmatprep.subr.mxu0 %v963
    %1806 = vmatpush1.msra.mxu0 %v962
    %1807 = vmatprep.subr.mxu0 %v931
    %1808 = vmatpush1.msra.mxu0 %v930
    %1809 = vmatprep.subr.mxu0 %v899
    %1810 = vmatpush1.msra.mxu0 %v898
    %1811 = vmatprep.subr.mxu0 %v867
    %1812 = vmatpush1.msra.mxu0 %v866
    %1813 = vmatprep.subr.mxu0 %v835
    %1814 = vmatpush1.msra.mxu0 %v834
    %1815 = vmatprep.subr.mxu0 0.0
    %1816 = vmatpush2.msra.mxu0 0.0
    %1817 = vmatprep.subr.mxu0 0.0
    %1818 = vmatpush2.msra.mxu0 0.0
    %1819 = vmatprep.subr.mxu0 0.0
    %1820 = vmatpush2.msra.mxu0 0.0
    %1821 = vmatprep.subr.mxu0 0.0
    %1822 = vmatpush2.msra.mxu0 0.0
    %1823 = vmatprep.subr.mxu0 0.0
    %1824 = vmatpush2.msra.mxu0 0.0
    %1825 = vmatprep.subr.mxu0 0.0
    %1826 = vmatpush2.msra.mxu0 0.0
    %1827 = vmatprep.subr.mxu0 0.0
    %1828 = vmatpush2.msra.mxu0 0.0
    %1829 = vmatprep.subr.mxu0 0.0
    %1830 = vmatpush2.msra.mxu0 0.0
    %1831 = vmatprep.subr.mxu0 0.0
    %1832 = vmatpush2.msra.mxu0 0.0
    %1833 = vmatprep.subr.mxu0 0.0
    %1834 = vmatpush2.msra.mxu0 0.0
    %1835 = vmatprep.subr.mxu0 0.0
    %1836 = vmatpush2.msra.mxu0 0.0
    %1837 = vmatprep.subr.mxu0 0.0
    %1838 = vmatpush2.msra.mxu0 0.0
    %1839 = vmatprep.subr.mxu0 0.0
    %1840 = vmatpush2.msra.mxu0 0.0
    %1841 = vmatprep.subr.mxu0 0.0
    %1842 = vmatpush2.msra.mxu0 0.0
    %1843 = vmatprep.subr.mxu0 0.0
    %1844 = vmatpush2.msra.mxu0 0.0
    %1845 = vmatprep.subr.mxu0 0.0
    %1846 = vmatpush2.msra.mxu0 0.0
    %1847 = vmatprep.mubr.f32.mxu0 0.0
    %1848 = vmatmul.mubr.f32.gmra.mxu0 %v1071
    %v1849 = vpop.f32.mrf.mxu0
    %v1850 = vadd.f32 0.0, %v1849
    %v1851 = vpop.f32.mrf.mxu0
    %v1852 = vadd.f32 0.0, %v1851
    %1853 = vdwg.mxu0
    %1854 = vmatprep.subr.mxu0 0.0
    %1855 = vmatpush1.msra.mxu0 0.0
    %1856 = vmatprep.subr.mxu0 0.0
    %1857 = vmatpush1.msra.mxu0 0.0
    %1858 = vmatprep.subr.mxu0 0.0
    %1859 = vmatpush1.msra.mxu0 0.0
    %1860 = vmatprep.subr.mxu0 0.0
    %1861 = vmatpush1.msra.mxu0 0.0
    %1862 = vmatprep.subr.mxu0 0.0
    %1863 = vmatpush1.msra.mxu0 0.0
    %1864 = vmatprep.subr.mxu0 0.0
    %1865 = vmatpush1.msra.mxu0 0.0
    %1866 = vmatprep.subr.mxu0 0.0
    %1867 = vmatpush1.msra.mxu0 0.0
    %1868 = vmatprep.subr.mxu0 0.0
    %1869 = vmatpush1.msra.mxu0 0.0
    %1870 = vmatprep.subr.mxu0 %v1061
    %1871 = vmatpush1.msra.mxu0 %v1060
    %1872 = vmatprep.subr.mxu0 %v1029
    %1873 = vmatpush1.msra.mxu0 %v1028
    %1874 = vmatprep.subr.mxu0 %v997
    %1875 = vmatpush1.msra.mxu0 %v996
    %1876 = vmatprep.subr.mxu0 %v965
    %1877 = vmatpush1.msra.mxu0 %v964
    %1878 = vmatprep.subr.mxu0 %v933
    %1879 = vmatpush1.msra.mxu0 %v932
    %1880 = vmatprep.subr.mxu0 %v901
    %1881 = vmatpush1.msra.mxu0 %v900
    %1882 = vmatprep.subr.mxu0 %v869
    %1883 = vmatpush1.msra.mxu0 %v868
    %1884 = vmatprep.subr.mxu0 %v837
    %1885 = vmatpush1.msra.mxu0 %v836
    %1886 = vmatprep.subr.mxu0 0.0
    %1887 = vmatpush2.msra.mxu0 0.0
    %1888 = vmatprep.subr.mxu0 0.0
    %1889 = vmatpush2.msra.mxu0 0.0
    %1890 = vmatprep.subr.mxu0 0.0
    %1891 = vmatpush2.msra.mxu0 0.0
    %1892 = vmatprep.subr.mxu0 0.0
    %1893 = vmatpush2.msra.mxu0 0.0
    %1894 = vmatprep.subr.mxu0 0.0
    %1895 = vmatpush2.msra.mxu0 0.0
    %1896 = vmatprep.subr.mxu0 0.0
    %1897 = vmatpush2.msra.mxu0 0.0
    %1898 = vmatprep.subr.mxu0 0.0
    %1899 = vmatpush2.msra.mxu0 0.0
    %1900 = vmatprep.subr.mxu0 0.0
    %1901 = vmatpush2.msra.mxu0 0.0
    %1902 = vmatprep.subr.mxu0 0.0
    %1903 = vmatpush2.msra.mxu0 0.0
    %1904 = vmatprep.subr.mxu0 0.0
    %1905 = vmatpush2.msra.mxu0 0.0
    %1906 = vmatprep.subr.mxu0 0.0
    %1907 = vmatpush2.msra.mxu0 0.0
    %1908 = vmatprep.subr.mxu0 0.0
    %1909 = vmatpush2.msra.mxu0 0.0
    %1910 = vmatprep.subr.mxu0 0.0
    %1911 = vmatpush2.msra.mxu0 0.0
    %1912 = vmatprep.subr.mxu0 0.0
    %1913 = vmatpush2.msra.mxu0 0.0
    %1914 = vmatprep.subr.mxu0 0.0
    %1915 = vmatpush2.msra.mxu0 0.0
    %1916 = vmatprep.subr.mxu0 0.0
    %1917 = vmatpush2.msra.mxu0 0.0
    %1918 = vmatprep.mubr.f32.mxu0 0.0
    %1919 = vmatmul.mubr.f32.gmra.mxu0 %v1071
    %v1920 = vpop.f32.mrf.mxu0
    %v1921 = vadd.f32 0.0, %v1920
    %v1922 = vpop.f32.mrf.mxu0
    %v1923 = vadd.f32 0.0, %v1922
    %1924 = vdwg.mxu0
    %1925 = vmatprep.subr.mxu0 0.0
    %1926 = vmatpush1.msra.mxu0 0.0
    %1927 = vmatprep.subr.mxu0 0.0
    %1928 = vmatpush1.msra.mxu0 0.0
    %1929 = vmatprep.subr.mxu0 0.0
    %1930 = vmatpush1.msra.mxu0 0.0
    %1931 = vmatprep.subr.mxu0 0.0
    %1932 = vmatpush1.msra.mxu0 0.0
    %1933 = vmatprep.subr.mxu0 0.0
    %1934 = vmatpush1.msra.mxu0 0.0
    %1935 = vmatprep.subr.mxu0 0.0
    %1936 = vmatpush1.msra.mxu0 0.0
    %1937 = vmatprep.subr.mxu0 0.0
    %1938 = vmatpush1.msra.mxu0 0.0
    %1939 = vmatprep.subr.mxu0 0.0
    %1940 = vmatpush1.msra.mxu0 0.0
    %1941 = vmatprep.subr.mxu0 %v1063
    %1942 = vmatpush1.msra.mxu0 %v1062
    %1943 = vmatprep.subr.mxu0 %v1031
    %1944 = vmatpush1.msra.mxu0 %v1030
    %1945 = vmatprep.subr.mxu0 %v999
    %1946 = vmatpush1.msra.mxu0 %v998
    %1947 = vmatprep.subr.mxu0 %v967
    %1948 = vmatpush1.msra.mxu0 %v966
    %1949 = vmatprep.subr.mxu0 %v935
    %1950 = vmatpush1.msra.mxu0 %v934
    %1951 = vmatprep.subr.mxu0 %v903
    %1952 = vmatpush1.msra.mxu0 %v902
    %1953 = vmatprep.subr.mxu0 %v871
    %1954 = vmatpush1.msra.mxu0 %v870
    %1955 = vmatprep.subr.mxu0 %v839
    %1956 = vmatpush1.msra.mxu0 %v838
    %1957 = vmatprep.subr.mxu0 0.0
    %1958 = vmatpush2.msra.mxu0 0.0
    %1959 = vmatprep.subr.mxu0 0.0
    %1960 = vmatpush2.msra.mxu0 0.0
    %1961 = vmatprep.subr.mxu0 0.0
    %1962 = vmatpush2.msra.mxu0 0.0
    %1963 = vmatprep.subr.mxu0 0.0
    %1964 = vmatpush2.msra.mxu0 0.0
    %1965 = vmatprep.subr.mxu0 0.0
    %1966 = vmatpush2.msra.mxu0 0.0
    %1967 = vmatprep.subr.mxu0 0.0
    %1968 = vmatpush2.msra.mxu0 0.0
    %1969 = vmatprep.subr.mxu0 0.0
    %1970 = vmatpush2.msra.mxu0 0.0
    %1971 = vmatprep.subr.mxu0 0.0
    %1972 = vmatpush2.msra.mxu0 0.0
    %1973 = vmatprep.subr.mxu0 0.0
    %1974 = vmatpush2.msra.mxu0 0.0
    %1975 = vmatprep.subr.mxu0 0.0
    %1976 = vmatpush2.msra.mxu0 0.0
    %1977 = vmatprep.subr.mxu0 0.0
    %1978 = vmatpush2.msra.mxu0 0.0
    %1979 = vmatprep.subr.mxu0 0.0
    %1980 = vmatpush2.msra.mxu0 0.0
    %1981 = vmatprep.subr.mxu0 0.0
    %1982 = vmatpush2.msra.mxu0 0.0
    %1983 = vmatprep.subr.mxu0 0.0
    %1984 = vmatpush2.msra.mxu0 0.0
    %1985 = vmatprep.subr.mxu0 0.0
    %1986 = vmatpush2.msra.mxu0 0.0
    %1987 = vmatprep.subr.mxu0 0.0
    %1988 = vmatpush2.msra.mxu0 0.0
    %1989 = vmatprep.mubr.f32.mxu0 0.0
    %1990 = vmatmul.mubr.f32.gmra.mxu0 %v1071
    %v1991 = vpop.f32.mrf.mxu0
    %v1992 = vadd.f32 0.0, %v1991
    %v1993 = vpop.f32.mrf.mxu0
    %v1994 = vadd.f32 0.0, %v1993
    %1995 = vdwg.mxu0
    %1996 = vmatprep.subr.mxu0 0.0
    %1997 = vmatpush1.msra.mxu0 0.0
    %1998 = vmatprep.subr.mxu0 0.0
    %1999 = vmatpush1.msra.mxu0 0.0
    %2000 = vmatprep.subr.mxu0 0.0
    %2001 = vmatpush1.msra.mxu0 0.0
    %2002 = vmatprep.subr.mxu0 0.0
    %2003 = vmatpush1.msra.mxu0 0.0
    %2004 = vmatprep.subr.mxu0 0.0
    %2005 = vmatpush1.msra.mxu0 0.0
    %2006 = vmatprep.subr.mxu0 0.0
    %2007 = vmatpush1.msra.mxu0 0.0
    %2008 = vmatprep.subr.mxu0 0.0
    %2009 = vmatpush1.msra.mxu0 0.0
    %2010 = vmatprep.subr.mxu0 0.0
    %2011 = vmatpush1.msra.mxu0 0.0
    %2012 = vmatprep.subr.mxu0 %v1065
    %2013 = vmatpush1.msra.mxu0 %v1064
    %2014 = vmatprep.subr.mxu0 %v1033
    %2015 = vmatpush1.msra.mxu0 %v1032
    %2016 = vmatprep.subr.mxu0 %v1001
    %2017 = vmatpush1.msra.mxu0 %v1000
    %2018 = vmatprep.subr.mxu0 %v969
    %2019 = vmatpush1.msra.mxu0 %v968
    %2020 = vmatprep.subr.mxu0 %v937
    %2021 = vmatpush1.msra.mxu0 %v936
    %2022 = vmatprep.subr.mxu0 %v905
    %2023 = vmatpush1.msra.mxu0 %v904
    %2024 = vmatprep.subr.mxu0 %v873
    %2025 = vmatpush1.msra.mxu0 %v872
    %2026 = vmatprep.subr.mxu0 %v841
    %2027 = vmatpush1.msra.mxu0 %v840
    %2028 = vmatprep.subr.mxu0 0.0
    %2029 = vmatpush2.msra.mxu0 0.0
    %2030 = vmatprep.subr.mxu0 0.0
    %2031 = vmatpush2.msra.mxu0 0.0
    %2032 = vmatprep.subr.mxu0 0.0
    %2033 = vmatpush2.msra.mxu0 0.0
    %2034 = vmatprep.subr.mxu0 0.0
    %2035 = vmatpush2.msra.mxu0 0.0
    %2036 = vmatprep.subr.mxu0 0.0
    %2037 = vmatpush2.msra.mxu0 0.0
    %2038 = vmatprep.subr.mxu0 0.0
    %2039 = vmatpush2.msra.mxu0 0.0
    %2040 = vmatprep.subr.mxu0 0.0
    %2041 = vmatpush2.msra.mxu0 0.0
    %2042 = vmatprep.subr.mxu0 0.0
    %2043 = vmatpush2.msra.mxu0 0.0
    %2044 = vmatprep.subr.mxu0 0.0
    %2045 = vmatpush2.msra.mxu0 0.0
    %2046 = vmatprep.subr.mxu0 0.0
    %2047 = vmatpush2.msra.mxu0 0.0
    %2048 = vmatprep.subr.mxu0 0.0
    %2049 = vmatpush2.msra.mxu0 0.0
    %2050 = vmatprep.subr.mxu0 0.0
    %2051 = vmatpush2.msra.mxu0 0.0
    %2052 = vmatprep.subr.mxu0 0.0
    %2053 = vmatpush2.msra.mxu0 0.0
    %2054 = vmatprep.subr.mxu0 0.0
    %2055 = vmatpush2.msra.mxu0 0.0
    %2056 = vmatprep.subr.mxu0 0.0
    %2057 = vmatpush2.msra.mxu0 0.0
    %2058 = vmatprep.subr.mxu0 0.0
    %2059 = vmatpush2.msra.mxu0 0.0
    %2060 = vmatprep.mubr.f32.mxu0 0.0
    %2061 = vmatmul.mubr.f32.gmra.mxu0 %v1071
    %v2062 = vpop.f32.mrf.mxu0
    %v2063 = vadd.f32 0.0, %v2062
    %v2064 = vpop.f32.mrf.mxu0
    %v2065 = vadd.f32 0.0, %v2064
    %2066 = vdwg.mxu0
    %2067 = vmatprep.subr.mxu0 0.0
    %2068 = vmatpush1.msra.mxu0 0.0
    %2069 = vmatprep.subr.mxu0 0.0
    %2070 = vmatpush1.msra.mxu0 0.0
    %2071 = vmatprep.subr.mxu0 0.0
    %2072 = vmatpush1.msra.mxu0 0.0
    %2073 = vmatprep.subr.mxu0 0.0
    %2074 = vmatpush1.msra.mxu0 0.0
    %2075 = vmatprep.subr.mxu0 0.0
    %2076 = vmatpush1.msra.mxu0 0.0
    %2077 = vmatprep.subr.mxu0 0.0
    %2078 = vmatpush1.msra.mxu0 0.0
    %2079 = vmatprep.subr.mxu0 0.0
    %2080 = vmatpush1.msra.mxu0 0.0
    %2081 = vmatprep.subr.mxu0 0.0
    %2082 = vmatpush1.msra.mxu0 0.0
    %2083 = vmatprep.subr.mxu0 %v1067
    %2084 = vmatpush1.msra.mxu0 %v1066
    %2085 = vmatprep.subr.mxu0 %v1035
    %2086 = vmatpush1.msra.mxu0 %v1034
    %2087 = vmatprep.subr.mxu0 %v1003
    %2088 = vmatpush1.msra.mxu0 %v1002
    %2089 = vmatprep.subr.mxu0 %v971
    %2090 = vmatpush1.msra.mxu0 %v970
    %2091 = vmatprep.subr.mxu0 %v939
    %2092 = vmatpush1.msra.mxu0 %v938
    %2093 = vmatprep.subr.mxu0 %v907
    %2094 = vmatpush1.msra.mxu0 %v906
    %2095 = vmatprep.subr.mxu0 %v875
    %2096 = vmatpush1.msra.mxu0 %v874
    %2097 = vmatprep.subr.mxu0 %v843
    %2098 = vmatpush1.msra.mxu0 %v842
    %2099 = vmatprep.subr.mxu0 0.0
    %2100 = vmatpush2.msra.mxu0 0.0
    %2101 = vmatprep.subr.mxu0 0.0
    %2102 = vmatpush2.msra.mxu0 0.0
    %2103 = vmatprep.subr.mxu0 0.0
    %2104 = vmatpush2.msra.mxu0 0.0
    %2105 = vmatprep.subr.mxu0 0.0
    %2106 = vmatpush2.msra.mxu0 0.0
    %2107 = vmatprep.subr.mxu0 0.0
    %2108 = vmatpush2.msra.mxu0 0.0
    %2109 = vmatprep.subr.mxu0 0.0
    %2110 = vmatpush2.msra.mxu0 0.0
    %2111 = vmatprep.subr.mxu0 0.0
    %2112 = vmatpush2.msra.mxu0 0.0
    %2113 = vmatprep.subr.mxu0 0.0
    %2114 = vmatpush2.msra.mxu0 0.0
    %2115 = vmatprep.subr.mxu0 0.0
    %2116 = vmatpush2.msra.mxu0 0.0
    %2117 = vmatprep.subr.mxu0 0.0
    %2118 = vmatpush2.msra.mxu0 0.0
    %2119 = vmatprep.subr.mxu0 0.0
    %2120 = vmatpush2.msra.mxu0 0.0
    %2121 = vmatprep.subr.mxu0 0.0
    %2122 = vmatpush2.msra.mxu0 0.0
    %2123 = vmatprep.subr.mxu0 0.0
    %2124 = vmatpush2.msra.mxu0 0.0
    %2125 = vmatprep.subr.mxu0 0.0
    %2126 = vmatpush2.msra.mxu0 0.0
    %2127 = vmatprep.subr.mxu0 0.0
    %2128 = vmatpush2.msra.mxu0 0.0
    %2129 = vmatprep.subr.mxu0 0.0
    %2130 = vmatpush2.msra.mxu0 0.0
    %2131 = vmatprep.mubr.f32.mxu0 0.0
    %2132 = vmatmul.mubr.f32.gmra.mxu0 %v1071
    %v2133 = vpop.f32.mrf.mxu0
    %v2134 = vadd.f32 0.0, %v2133
    %v2135 = vpop.f32.mrf.mxu0
    %v2136 = vadd.f32 0.0, %v2135
    %2137 = vdwg.mxu0
    %2138 = vmatprep.subr.mxu0 0.0
    %2139 = vmatpush1.msra.mxu0 0.0
    %2140 = vmatprep.subr.mxu0 0.0
    %2141 = vmatpush1.msra.mxu0 0.0
    %2142 = vmatprep.subr.mxu0 0.0
    %2143 = vmatpush1.msra.mxu0 0.0
    %2144 = vmatprep.subr.mxu0 0.0
    %2145 = vmatpush1.msra.mxu0 0.0
    %2146 = vmatprep.subr.mxu0 0.0
    %2147 = vmatpush1.msra.mxu0 0.0
    %2148 = vmatprep.subr.mxu0 0.0
    %2149 = vmatpush1.msra.mxu0 0.0
    %2150 = vmatprep.subr.mxu0 0.0
    %2151 = vmatpush1.msra.mxu0 0.0
    %2152 = vmatprep.subr.mxu0 0.0
    %2153 = vmatpush1.msra.mxu0 0.0
    %2154 = vmatprep.subr.mxu0 %v1069
    %2155 = vmatpush1.msra.mxu0 %v1068
    %2156 = vmatprep.subr.mxu0 %v1037
    %2157 = vmatpush1.msra.mxu0 %v1036
    %2158 = vmatprep.subr.mxu0 %v1005
    %2159 = vmatpush1.msra.mxu0 %v1004
    %2160 = vmatprep.subr.mxu0 %v973
    %2161 = vmatpush1.msra.mxu0 %v972
    %2162 = vmatprep.subr.mxu0 %v941
    %2163 = vmatpush1.msra.mxu0 %v940
    %2164 = vmatprep.subr.mxu0 %v909
    %2165 = vmatpush1.msra.mxu0 %v908
    %2166 = vmatprep.subr.mxu0 %v877
    %2167 = vmatpush1.msra.mxu0 %v876
    %2168 = vmatprep.subr.mxu0 %v845
    %2169 = vmatpush1.msra.mxu0 %v844
    %2170 = vmatprep.subr.mxu0 0.0
    %2171 = vmatpush2.msra.mxu0 0.0
    %2172 = vmatprep.subr.mxu0 0.0
    %2173 = vmatpush2.msra.mxu0 0.0
    %2174 = vmatprep.subr.mxu0 0.0
    %2175 = vmatpush2.msra.mxu0 0.0
    %2176 = vmatprep.subr.mxu0 0.0
    %2177 = vmatpush2.msra.mxu0 0.0
    %2178 = vmatprep.subr.mxu0 0.0
    %2179 = vmatpush2.msra.mxu0 0.0
    %2180 = vmatprep.subr.mxu0 0.0
    %2181 = vmatpush2.msra.mxu0 0.0
    %2182 = vmatprep.subr.mxu0 0.0
    %2183 = vmatpush2.msra.mxu0 0.0
    %2184 = vmatprep.subr.mxu0 0.0
    %2185 = vmatpush2.msra.mxu0 0.0
    %2186 = vmatprep.subr.mxu0 0.0
    %2187 = vmatpush2.msra.mxu0 0.0
    %2188 = vmatprep.subr.mxu0 0.0
    %2189 = vmatpush2.msra.mxu0 0.0
    %2190 = vmatprep.subr.mxu0 0.0
    %2191 = vmatpush2.msra.mxu0 0.0
    %2192 = vmatprep.subr.mxu0 0.0
    %2193 = vmatpush2.msra.mxu0 0.0
    %2194 = vmatprep.subr.mxu0 0.0
    %2195 = vmatpush2.msra.mxu0 0.0
    %2196 = vmatprep.subr.mxu0 0.0
    %2197 = vmatpush2.msra.mxu0 0.0
    %2198 = vmatprep.subr.mxu0 0.0
    %2199 = vmatpush2.msra.mxu0 0.0
    %2200 = vmatprep.subr.mxu0 0.0
    %2201 = vmatpush2.msra.mxu0 0.0
    %2202 = vmatprep.mubr.f32.mxu0 0.0
    %2203 = vmatmul.mubr.f32.gmra.mxu0 %v1071
    %v2204 = vpop.f32.mrf.mxu0
    %v2205 = vadd.f32 0.0, %v2204
    %v2206 = vpop.f32.mrf.mxu0
    %v2207 = vadd.f32 0.0, %v2206
    %2208 = vdwg.mxu0
    %v2209 = vxor.u32 %v1140, 2147483648
    %v2210 = vxor.u32 %v1142, 2147483648
    %v2211 = vxor.u32 %v1211, 2147483648
    %v2212 = vxor.u32 %v1213, 2147483648
    %v2213 = vxor.u32 %v1282, 2147483648
    %v2214 = vxor.u32 %v1284, 2147483648
    %v2215 = vxor.u32 %v1353, 2147483648
    %v2216 = vxor.u32 %v1355, 2147483648
    %v2217 = vxor.u32 %v1424, 2147483648
    %v2218 = vxor.u32 %v1426, 2147483648
    %v2219 = vxor.u32 %v1495, 2147483648
    %v2220 = vxor.u32 %v1497, 2147483648
    %v2221 = vxor.u32 %v1566, 2147483648
    %v2222 = vxor.u32 %v1568, 2147483648
    %v2223 = vxor.u32 %v1637, 2147483648
    %v2224 = vxor.u32 %v1639, 2147483648
    %v2225 = vxor.u32 %v1708, 2147483648
    %v2226 = vxor.u32 %v1710, 2147483648
    %v2227 = vxor.u32 %v1779, 2147483648
    %v2228 = vxor.u32 %v1781, 2147483648
    %v2229 = vxor.u32 %v1850, 2147483648
    %v2230 = vxor.u32 %v1852, 2147483648
    %v2231 = vxor.u32 %v1921, 2147483648
    %v2232 = vxor.u32 %v1923, 2147483648
    %v2233 = vxor.u32 %v1992, 2147483648
    %v2234 = vxor.u32 %v1994, 2147483648
    %v2235 = vxor.u32 %v2063, 2147483648
    %v2236 = vxor.u32 %v2065, 2147483648
    %v2237 = vxor.u32 %v2134, 2147483648
    %v2238 = vxor.u32 %v2136, 2147483648
    %v2239 = vxor.u32 %v2205, 2147483648
    %v2240 = vxor.u32 %v2207, 2147483648
    %v2241 = vmul.f32 %v2209, 1.442695
    %v2242 = vpow.pop %v2241
    %v2243 = vmul.f32 %v2210, 1.442695
    %v2244 = vpow.pop %v2243
    %v2245 = vmul.f32 %v2211, 1.442695
    %v2246 = vpow.pop %v2245
    %v2247 = vmul.f32 %v2212, 1.442695
    %v2248 = vpow.pop %v2247
    %v2249 = vmul.f32 %v2213, 1.442695
    %v2250 = vpow.pop %v2249
    %v2251 = vmul.f32 %v2214, 1.442695
    %v2252 = vpow.pop %v2251
    %v2253 = vmul.f32 %v2215, 1.442695
    %v2254 = vpow.pop %v2253
    %v2255 = vmul.f32 %v2216, 1.442695
    %v2256 = vpow.pop %v2255
    %v2257 = vmul.f32 %v2217, 1.442695
    %v2258 = vpow.pop %v2257
    %v2259 = vmul.f32 %v2218, 1.442695
    %v2260 = vpow.pop %v2259
    %v2261 = vmul.f32 %v2219, 1.442695
    %v2262 = vpow.pop %v2261
    %v2263 = vmul.f32 %v2220, 1.442695
    %v2264 = vpow.pop %v2263
    %v2265 = vmul.f32 %v2221, 1.442695
    %v2266 = vpow.pop %v2265
    %v2267 = vmul.f32 %v2222, 1.442695
    %v2268 = vpow.pop %v2267
    %v2269 = vmul.f32 %v2223, 1.442695
    %v2270 = vpow.pop %v2269
    %v2271 = vmul.f32 %v2224, 1.442695
    %v2272 = vpow.pop %v2271
    %v2273 = vmul.f32 %v2225, 1.442695
    %v2274 = vpow.pop %v2273
    %v2275 = vmul.f32 %v2226, 1.442695
    %v2276 = vpow.pop %v2275
    %v2277 = vmul.f32 %v2227, 1.442695
    %v2278 = vpow.pop %v2277
    %v2279 = vmul.f32 %v2228, 1.442695
    %v2280 = vpow.pop %v2279
    %v2281 = vmul.f32 %v2229, 1.442695
    %v2282 = vpow.pop %v2281
    %v2283 = vmul.f32 %v2230, 1.442695
    %v2284 = vpow.pop %v2283
    %v2285 = vmul.f32 %v2231, 1.442695
    %v2286 = vpow.pop %v2285
    %v2287 = vmul.f32 %v2232, 1.442695
    %v2288 = vpow.pop %v2287
    %v2289 = vmul.f32 %v2233, 1.442695
    %v2290 = vpow.pop %v2289
    %v2291 = vmul.f32 %v2234, 1.442695
    %v2292 = vpow.pop %v2291
    %v2293 = vmul.f32 %v2235, 1.442695
    %v2294 = vpow.pop %v2293
    %v2295 = vmul.f32 %v2236, 1.442695
    %v2296 = vpow.pop %v2295
    %v2297 = vmul.f32 %v2237, 1.442695
    %v2298 = vpow.pop %v2297
    %v2299 = vmul.f32 %v2238, 1.442695
    %v2300 = vpow.pop %v2299
    %v2301 = vmul.f32 %v2239, 1.442695
    %v2302 = vpow.pop %v2301
    %v2303 = vmul.f32 %v2240, 1.442695
    %v2304 = vpow.pop %v2303
    %v2305 = vadd.f32 %v2242, 1.0
    %v2306 = vadd.f32 %v2244, 1.0
    %v2307 = vadd.f32 %v2246, 1.0
    %v2308 = vadd.f32 %v2248, 1.0
    %v2309 = vadd.f32 %v2250, 1.0
    %v2310 = vadd.f32 %v2252, 1.0
    %v2311 = vadd.f32 %v2254, 1.0
    %v2312 = vadd.f32 %v2256, 1.0
    %v2313 = vadd.f32 %v2258, 1.0
    %v2314 = vadd.f32 %v2260, 1.0
    %v2315 = vadd.f32 %v2262, 1.0
    %v2316 = vadd.f32 %v2264, 1.0
    %v2317 = vadd.f32 %v2266, 1.0
    %v2318 = vadd.f32 %v2268, 1.0
    %v2319 = vadd.f32 %v2270, 1.0
    %v2320 = vadd.f32 %v2272, 1.0
    %v2321 = vadd.f32 %v2274, 1.0
    %v2322 = vadd.f32 %v2276, 1.0
    %v2323 = vadd.f32 %v2278, 1.0
    %v2324 = vadd.f32 %v2280, 1.0
    %v2325 = vadd.f32 %v2282, 1.0
    %v2326 = vadd.f32 %v2284, 1.0
    %v2327 = vadd.f32 %v2286, 1.0
    %v2328 = vadd.f32 %v2288, 1.0
    %v2329 = vadd.f32 %v2290, 1.0
    %v2330 = vadd.f32 %v2292, 1.0
    %v2331 = vadd.f32 %v2294, 1.0
    %v2332 = vadd.f32 %v2296, 1.0
    %v2333 = vadd.f32 %v2298, 1.0
    %v2334 = vadd.f32 %v2300, 1.0
    %v2335 = vadd.f32 %v2302, 1.0
    %v2336 = vadd.f32 %v2304, 1.0
    %v2337 = vrcp.pop %v2305
    %v2338 = vmul.f32 1.0, %v2337
    %v2339 = vrcp.pop %v2306
    %v2340 = vmul.f32 1.0, %v2339
    %v2341 = vrcp.pop %v2307
    %v2342 = vmul.f32 1.0, %v2341
    %v2343 = vrcp.pop %v2308
    %v2344 = vmul.f32 1.0, %v2343
    %v2345 = vrcp.pop %v2309
    %v2346 = vmul.f32 1.0, %v2345
    %v2347 = vrcp.pop %v2310
    %v2348 = vmul.f32 1.0, %v2347
    %v2349 = vrcp.pop %v2311
    %v2350 = vmul.f32 1.0, %v2349
    %v2351 = vrcp.pop %v2312
    %v2352 = vmul.f32 1.0, %v2351
    %v2353 = vrcp.pop %v2313
    %v2354 = vmul.f32 1.0, %v2353
    %v2355 = vrcp.pop %v2314
    %v2356 = vmul.f32 1.0, %v2355
    %v2357 = vrcp.pop %v2315
    %v2358 = vmul.f32 1.0, %v2357
    %v2359 = vrcp.pop %v2316
    %v2360 = vmul.f32 1.0, %v2359
    %v2361 = vrcp.pop %v2317
    %v2362 = vmul.f32 1.0, %v2361
    %v2363 = vrcp.pop %v2318
    %v2364 = vmul.f32 1.0, %v2363
    %v2365 = vrcp.pop %v2319
    %v2366 = vmul.f32 1.0, %v2365
    %v2367 = vrcp.pop %v2320
    %v2368 = vmul.f32 1.0, %v2367
    %v2369 = vrcp.pop %v2321
    %v2370 = vmul.f32 1.0, %v2369
    %v2371 = vrcp.pop %v2322
    %v2372 = vmul.f32 1.0, %v2371
    %v2373 = vrcp.pop %v2323
    %v2374 = vmul.f32 1.0, %v2373
    %v2375 = vrcp.pop %v2324
    %v2376 = vmul.f32 1.0, %v2375
    %v2377 = vrcp.pop %v2325
    %v2378 = vmul.f32 1.0, %v2377
    %v2379 = vrcp.pop %v2326
    %v2380 = vmul.f32 1.0, %v2379
    %v2381 = vrcp.pop %v2327
    %v2382 = vmul.f32 1.0, %v2381
    %v2383 = vrcp.pop %v2328
    %v2384 = vmul.f32 1.0, %v2383
    %v2385 = vrcp.pop %v2329
    %v2386 = vmul.f32 1.0, %v2385
    %v2387 = vrcp.pop %v2330
    %v2388 = vmul.f32 1.0, %v2387
    %v2389 = vrcp.pop %v2331
    %v2390 = vmul.f32 1.0, %v2389
    %v2391 = vrcp.pop %v2332
    %v2392 = vmul.f32 1.0, %v2391
    %v2393 = vrcp.pop %v2333
    %v2394 = vmul.f32 1.0, %v2393
    %v2395 = vrcp.pop %v2334
    %v2396 = vmul.f32 1.0, %v2395
    %v2397 = vrcp.pop %v2335
    %v2398 = vmul.f32 1.0, %v2397
    %v2399 = vrcp.pop %v2336
    %v2400 = vmul.f32 1.0, %v2399
    %vm2401 = vcmp.gt.f32.partialorder %v2338, 0.35
    %vm2402 = vcmp.gt.f32.partialorder %v2340, 0.35
    %vm2403 = vcmp.gt.f32.partialorder %v2342, 0.35
    %vm2404 = vcmp.gt.f32.partialorder %v2344, 0.35
    %vm2405 = vcmp.gt.f32.partialorder %v2346, 0.35
    %vm2406 = vcmp.gt.f32.partialorder %v2348, 0.35
    %vm2407 = vcmp.gt.f32.partialorder %v2350, 0.35
    %vm2408 = vcmp.gt.f32.partialorder %v2352, 0.35
    %vm2409 = vcmp.gt.f32.partialorder %v2354, 0.35
    %vm2410 = vcmp.gt.f32.partialorder %v2356, 0.35
    %vm2411 = vcmp.gt.f32.partialorder %v2358, 0.35
    %vm2412 = vcmp.gt.f32.partialorder %v2360, 0.35
    %vm2413 = vcmp.gt.f32.partialorder %v2362, 0.35
    %vm2414 = vcmp.gt.f32.partialorder %v2364, 0.35
    %vm2415 = vcmp.gt.f32.partialorder %v2366, 0.35
    %vm2416 = vcmp.gt.f32.partialorder %v2368, 0.35
    %vm2417 = vcmp.gt.f32.partialorder %v2370, 0.35
    %vm2418 = vcmp.gt.f32.partialorder %v2372, 0.35
    %vm2419 = vcmp.gt.f32.partialorder %v2374, 0.35
    %vm2420 = vcmp.gt.f32.partialorder %v2376, 0.35
    %vm2421 = vcmp.gt.f32.partialorder %v2378, 0.35
    %vm2422 = vcmp.gt.f32.partialorder %v2380, 0.35
    %vm2423 = vcmp.gt.f32.partialorder %v2382, 0.35
    %vm2424 = vcmp.gt.f32.partialorder %v2384, 0.35
    %vm2425 = vcmp.gt.f32.partialorder %v2386, 0.35
    %vm2426 = vcmp.gt.f32.partialorder %v2388, 0.35
    %vm2427 = vcmp.gt.f32.partialorder %v2390, 0.35
    %vm2428 = vcmp.gt.f32.partialorder %v2392, 0.35
    %vm2429 = vcmp.gt.f32.partialorder %v2394, 0.35
    %vm2430 = vcmp.gt.f32.partialorder %v2396, 0.35
    %vm2431 = vcmp.gt.f32.partialorder %v2398, 0.35
    %vm2432 = vcmp.gt.f32.partialorder %v2400, 0.35
    %v2433 = vsel %vm2401, 1, 0
    %v2434 = vsel %vm2402, 1, 0
    %v2435 = vsel %vm2403, 1, 0
    %v2436 = vsel %vm2404, 1, 0
    %v2437 = vsel %vm2405, 1, 0
    %v2438 = vsel %vm2406, 1, 0
    %v2439 = vsel %vm2407, 1, 0
    %v2440 = vsel %vm2408, 1, 0
    %v2441 = vsel %vm2409, 1, 0
    %v2442 = vsel %vm2410, 1, 0
    %v2443 = vsel %vm2411, 1, 0
    %v2444 = vsel %vm2412, 1, 0
    %v2445 = vsel %vm2413, 1, 0
    %v2446 = vsel %vm2414, 1, 0
    %v2447 = vsel %vm2415, 1, 0
    %v2448 = vsel %vm2416, 1, 0
    %v2449 = vsel %vm2417, 1, 0
    %v2450 = vsel %vm2418, 1, 0
    %v2451 = vsel %vm2419, 1, 0
    %v2452 = vsel %vm2420, 1, 0
    %v2453 = vsel %vm2421, 1, 0
    %v2454 = vsel %vm2422, 1, 0
    %v2455 = vsel %vm2423, 1, 0
    %v2456 = vsel %vm2424, 1, 0
    %v2457 = vsel %vm2425, 1, 0
    %v2458 = vsel %vm2426, 1, 0
    %v2459 = vsel %vm2427, 1, 0
    %v2460 = vsel %vm2428, 1, 0
    %v2461 = vsel %vm2429, 1, 0
    %v2462 = vsel %vm2430, 1, 0
    %v2463 = vsel %vm2431, 1, 0
    %v2464 = vsel %vm2432, 1, 0
    %v2465 = vcvt.s32.f32 %v2433
    %v2466 = vcvt.s32.f32 %v2434
    %v2467 = vcvt.s32.f32 %v2435
    %v2468 = vcvt.s32.f32 %v2436
    %v2469 = vcvt.s32.f32 %v2437
    %v2470 = vcvt.s32.f32 %v2438
    %v2471 = vcvt.s32.f32 %v2439
    %v2472 = vcvt.s32.f32 %v2440
    %v2473 = vcvt.s32.f32 %v2441
    %v2474 = vcvt.s32.f32 %v2442
    %v2475 = vcvt.s32.f32 %v2443
    %v2476 = vcvt.s32.f32 %v2444
    %v2477 = vcvt.s32.f32 %v2445
    %v2478 = vcvt.s32.f32 %v2446
    %v2479 = vcvt.s32.f32 %v2447
    %v2480 = vcvt.s32.f32 %v2448
    %v2481 = vcvt.s32.f32 %v2449
    %v2482 = vcvt.s32.f32 %v2450
    %v2483 = vcvt.s32.f32 %v2451
    %v2484 = vcvt.s32.f32 %v2452
    %v2485 = vcvt.s32.f32 %v2453
    %v2486 = vcvt.s32.f32 %v2454
    %v2487 = vcvt.s32.f32 %v2455
    %v2488 = vcvt.s32.f32 %v2456
    %v2489 = vcvt.s32.f32 %v2457
    %v2490 = vcvt.s32.f32 %v2458
    %v2491 = vcvt.s32.f32 %v2459
    %v2492 = vcvt.s32.f32 %v2460
    %v2493 = vcvt.s32.f32 %v2461
    %v2494 = vcvt.s32.f32 %v2462
    %v2495 = vcvt.s32.f32 %v2463
    %v2496 = vcvt.s32.f32 %v2464
    %v2529 = vcombine.low %v2465, %v2466
    %v2530 = vcombine.low %v2467, %v2468
    %v2532 = vunpack.c.l.s4 1983009808
    %v2533 = vunpack.c.0.s8 %v2532
    %v2534 = vlaneseq
    %v2535 = vshrl.u32 %v2534, 7
    %v2536 = vsub.s32 %v2533, %v2535
    %v2537 = vrot.slane %v2529, %v2536
    %v2539 = vunpack.c.l.s4 1983009808
    %v2540 = vunpack.c.0.s8 %v2539
    %v2541 = vlaneseq
    %v2542 = vshrl.u32 %v2541, 7
    %v2543 = vsub.s32 %v2540, %v2542
    %v2544 = vrot.slane %v2530, %v2543
    %v2545 = vcombine.low %v2537, %v2544
    %v2546 = vcombine.low %v2469, %v2470
    %v2547 = vcombine.low %v2471, %v2472
    %v2549 = vunpack.c.l.s4 1983009808
    %v2550 = vunpack.c.0.s8 %v2549
    %v2551 = vlaneseq
    %v2552 = vshrl.u32 %v2551, 7
    %v2553 = vsub.s32 %v2550, %v2552
    %v2554 = vrot.slane %v2546, %v2553
    %v2556 = vunpack.c.l.s4 1983009808
    %v2557 = vunpack.c.0.s8 %v2556
    %v2558 = vlaneseq
    %v2559 = vshrl.u32 %v2558, 7
    %v2560 = vsub.s32 %v2557, %v2559
    %v2561 = vrot.slane %v2547, %v2560
    %v2562 = vcombine.low %v2554, %v2561
    %v2563 = vcombine.low %v2473, %v2474
    %v2564 = vcombine.low %v2475, %v2476
    %v2566 = vunpack.c.l.s4 1983009808
    %v2567 = vunpack.c.0.s8 %v2566
    %v2568 = vlaneseq
    %v2569 = vshrl.u32 %v2568, 7
    %v2570 = vsub.s32 %v2567, %v2569
    %v2571 = vrot.slane %v2563, %v2570
    %v2573 = vunpack.c.l.s4 1983009808
    %v2574 = vunpack.c.0.s8 %v2573
    %v2575 = vlaneseq
    %v2576 = vshrl.u32 %v2575, 7
    %v2577 = vsub.s32 %v2574, %v2576
    %v2578 = vrot.slane %v2564, %v2577
    %v2579 = vcombine.low %v2571, %v2578
    %v2580 = vcombine.low %v2477, %v2478
    %v2581 = vcombine.low %v2479, %v2480
    %v2583 = vunpack.c.l.s4 1983009808
    %v2584 = vunpack.c.0.s8 %v2583
    %v2585 = vlaneseq
    %v2586 = vshrl.u32 %v2585, 7
    %v2587 = vsub.s32 %v2584, %v2586
    %v2588 = vrot.slane %v2580, %v2587
    %v2590 = vunpack.c.l.s4 1983009808
    %v2591 = vunpack.c.0.s8 %v2590
    %v2592 = vlaneseq
    %v2593 = vshrl.u32 %v2592, 7
    %v2594 = vsub.s32 %v2591, %v2593
    %v2595 = vrot.slane %v2581, %v2594
    %v2596 = vcombine.low %v2588, %v2595
    %v2597 = vcombine.low %v2481, %v2482
    %v2598 = vcombine.low %v2483, %v2484
    %v2600 = vunpack.c.l.s4 1983009808
    %v2601 = vunpack.c.0.s8 %v2600
    %v2602 = vlaneseq
    %v2603 = vshrl.u32 %v2602, 7
    %v2604 = vsub.s32 %v2601, %v2603
    %v2605 = vrot.slane %v2597, %v2604
    %v2607 = vunpack.c.l.s4 1983009808
    %v2608 = vunpack.c.0.s8 %v2607
    %v2609 = vlaneseq
    %v2610 = vshrl.u32 %v2609, 7
    %v2611 = vsub.s32 %v2608, %v2610
    %v2612 = vrot.slane %v2598, %v2611
    %v2613 = vcombine.low %v2605, %v2612
    %v2614 = vcombine.low %v2485, %v2486
    %v2615 = vcombine.low %v2487, %v2488
    %v2617 = vunpack.c.l.s4 1983009808
    %v2618 = vunpack.c.0.s8 %v2617
    %v2619 = vlaneseq
    %v2620 = vshrl.u32 %v2619, 7
    %v2621 = vsub.s32 %v2618, %v2620
    %v2622 = vrot.slane %v2614, %v2621
    %v2624 = vunpack.c.l.s4 1983009808
    %v2625 = vunpack.c.0.s8 %v2624
    %v2626 = vlaneseq
    %v2627 = vshrl.u32 %v2626, 7
    %v2628 = vsub.s32 %v2625, %v2627
    %v2629 = vrot.slane %v2615, %v2628
    %v2630 = vcombine.low %v2622, %v2629
    %v2631 = vcombine.low %v2489, %v2490
    %v2632 = vcombine.low %v2491, %v2492
    %v2634 = vunpack.c.l.s4 1983009808
    %v2635 = vunpack.c.0.s8 %v2634
    %v2636 = vlaneseq
    %v2637 = vshrl.u32 %v2636, 7
    %v2638 = vsub.s32 %v2635, %v2637
    %v2639 = vrot.slane %v2631, %v2638
    %v2641 = vunpack.c.l.s4 1983009808
    %v2642 = vunpack.c.0.s8 %v2641
    %v2643 = vlaneseq
    %v2644 = vshrl.u32 %v2643, 7
    %v2645 = vsub.s32 %v2642, %v2644
    %v2646 = vrot.slane %v2632, %v2645
    %v2647 = vcombine.low %v2639, %v2646
    %v2648 = vcombine.low %v2493, %v2494
    %v2649 = vcombine.low %v2495, %v2496
    %v2651 = vunpack.c.l.s4 1983009808
    %v2652 = vunpack.c.0.s8 %v2651
    %v2653 = vlaneseq
    %v2654 = vshrl.u32 %v2653, 7
    %v2655 = vsub.s32 %v2652, %v2654
    %v2656 = vrot.slane %v2648, %v2655
    %v2658 = vunpack.c.l.s4 1983009808
    %v2659 = vunpack.c.0.s8 %v2658
    %v2660 = vlaneseq
    %v2661 = vshrl.u32 %v2660, 7
    %v2662 = vsub.s32 %v2659, %v2661
    %v2663 = vrot.slane %v2649, %v2662
    %v2664 = vcombine.low %v2656, %v2663
    %2673 = vst [vmem:[#allocation9] sm:$0xff] %v2545
    %2674 = vst [vmem:[#allocation9 + $0x8] sm:$0xff] %v2562
    %2675 = vst [vmem:[#allocation9 + $0x10] sm:$0xff] %v2579
    %2676 = vst [vmem:[#allocation9 + $0x18] sm:$0xff] %v2596
    %2677 = vst [vmem:[#allocation9 + $0x20] sm:$0xff] %v2613
    %2678 = vst [vmem:[#allocation9 + $0x28] sm:$0xff] %v2630
    %2679 = vst [vmem:[#allocation9 + $0x30] sm:$0xff] %v2647
    %2680 = vst [vmem:[#allocation9 + $0x38] sm:$0xff] %v2664
    // Predicated region
    $region42: #{tpu_custom_call.1} parent=1 // pred_check
      _
    $region43: #{tpu_custom_call.1} parent=1 // pred_check_branch
      %2682 = sbr.rel (0) target = $region45
    $region44: #{tpu_custom_call.1} parent=1 // pred_region
      _
    $region45: #{tpu_custom_call.1} parent=1 // pred_fallthru
      _
    // Predicated region
    $region46: #{tpu_custom_call.1} parent=1 // pred_check
      _
    $region47: #{tpu_custom_call.1} parent=1 // pred_check_branch
      %2684 = sbr.rel (0) target = $region49
    $region48: #{tpu_custom_call.1} parent=1 // pred_region
      %s2686 = ssub.s32 1024, 1024
      %2687 = vsyncadd [#allocation5], %s2686
      %s2689 = sshll.u32 [#allocation9], 4
      %s2690 = int_to_ptr.vmem [resolvable:$true] %s2689
      %2692 = dma.vmem_to_hbm [thread:$0]  %s2690, 1024, %s8, [#allocation5]
    $region49: #{tpu_custom_call.1} parent=1 // pred_fallthru
      _
    // Predicated region
    $region50: #{tpu_custom_call.1} parent=1 // pred_check
      _
    $region51: #{tpu_custom_call.1} parent=1 // pred_check_branch
      %2694 = sbr.rel (0) target = $region53
    $region52: #{tpu_custom_call.1} parent=1 // pred_region
      _
    $region53: #{tpu_custom_call.1} parent=1 // pred_fallthru
      _
    // Predicated region
    $region54: #{tpu_custom_call.1} parent=1 // pred_check
      _
    $region55: #{tpu_custom_call.1} parent=1 // pred_check_branch
      %2696 = sbr.rel (0) target = $region57
    $region56: #{tpu_custom_call.1} parent=1 // pred_region
      %2697 = dma.done [#allocation5], 1024
    $region57: #{tpu_custom_call.1} parent=1 // pred_fallthru
      _
    %2698 = vsyncpa [#allocation4], 1
    %2699 = vsyncpa [#allocation7], 1
    %2700 = vsyncpa [#allocation5], 1

</llo_original>
